<compile_context>
chip_gen: v6e
topology: v6e:2x2x1
jax: 0.10.0
libtpu: 0.0.40
codegen_flags: <defaults>
</compile_context>

<pallas_src>
import functools

import jax
import jax.numpy as jnp
import numpy as np
from jax.experimental import pallas as pl
from jax.experimental.pallas import tpu as pltpu

H = 51            # real hidden size of both LSTM cells
HP = 128          # hidden size padded to one lane group
G = 4 * HP        # padded gate width (each gate on its own 128-lane block)
IN = 1            # scalar input per timestep


# ---------------------------------------------------------------------------
# kernel
# ---------------------------------------------------------------------------
def _sequence_kernel(T, future,
                     xproj_ref,              # (T, B, G)  precomputed x_t * w_ih1 + b1
                     w_hh1_ref,              # (HP, G)
                     w2_ref, b2_ref,         # (2*HP, G) = [w_ih2; w_hh2], (1, G)
                     w1ar_ref, b1ar_ref,     # (2*HP, G) = [w_lin@w_ih1; w_hh1], (1, G)
                     wlin_ref, blin_ref,     # (1, HP), (1, 1)
                     out_ref,                # (T+future, B)
                     h2_hist):               # VMEM scratch (T+future, B, HP)
    B = out_ref.shape[1]

    w_hh1 = w_hh1_ref[...]
    w2 = w2_ref[...]
    b2 = b2_ref[...]
    w1ar = w1ar_ref[...]
    b1ar = b1ar_ref[...]

    def gate_update(gates, c):
        # PyTorch gate order (i, f, g, o); each gate is a 128-lane-aligned block,
        # so these slices are free vreg views (no cross-lane shuffles).
        i = jax.nn.sigmoid(gates[:, 0 * HP:1 * HP])
        f = jax.nn.sigmoid(gates[:, 1 * HP:2 * HP])
        g = jnp.tanh(gates[:, 2 * HP:3 * HP])
        o = jax.nn.sigmoid(gates[:, 3 * HP:4 * HP])
        c_new = f * c + i * g          # padded lanes: 0.5*0 + 0.5*0 = 0
        h_new = o * jnp.tanh(c_new)    # padded lanes: 0.5*tanh(0)   = 0
        return h_new, c_new

    def lstm2_step(h1_new, h2, c2):
        # fused [h1, h2] @ [w_ih2; w_hh2] — one K=256 MXU matmul instead of two
        cat = jnp.concatenate([h1_new, h2], axis=-1)                  # (B, 2*HP)
        gates2 = jnp.dot(cat, w2, preferred_element_type=jnp.float32) + b2
        return gate_update(gates2, c2)

    zeros = jnp.zeros((B, HP), jnp.float32)

    # ---- teacher-forced part: x-projection + bias hoisted out of the loop ----
    def tf_body(t, carry):
        h1, c1, h2, c2 = carry
        gates1 = xproj_ref[t] + jnp.dot(h1, w_hh1,
                                        preferred_element_type=jnp.float32)
        h1, c1 = gate_update(gates1, c1)
        h2, c2 = lstm2_step(h1, h2, c2)
        h2_hist[t] = h2                                               # lane-dense row store
        return (h1, c1, h2, c2)

    carry = jax.lax.fori_loop(0, T, tf_body, (zeros, zeros, zeros, zeros),
                              unroll=True)

    # ---- autoregressive part: linear layer folded into lstm1 input weights ----
    def ar_body(t, carry):
        h1, c1, h2, c2 = carry
        cat1 = jnp.concatenate([h2, h1], axis=-1)                     # (B, 2*HP)
        gates1 = jnp.dot(cat1, w1ar, preferred_element_type=jnp.float32) + b1ar
        h1, c1 = gate_update(gates1, c1)
        h2, c2 = lstm2_step(h1, h2, c2)
        h2_hist[T + t] = h2
        return (h1, c1, h2, c2)

    if future > 0:
        carry = jax.lax.fori_loop(0, future, ar_body, carry, unroll=True)

    # ---- linear output layer for all timesteps at once (off the critical path) ----
    w_lin_3d = wlin_ref[...][None]                                    # (1, 1, HP)
    out_all = jnp.sum(h2_hist[...] * w_lin_3d, axis=-1) + blin_ref[...]   # (T+future, B)
    out_ref[...] = out_all.astype(out_ref.dtype)


# ---------------------------------------------------------------------------
# wrapper: weight layout prep + pallas_call
# ---------------------------------------------------------------------------
def _pad_gate_cols(w):
    """(rows, 4*H) -> (rows, 4*HP); gate g occupies cols [g*HP, g*HP+H), rest 0."""
    r = w.shape[0]
    w4 = w.reshape(r, 4, H)
    w4 = jnp.pad(w4, ((0, 0), (0, 0), (0, HP - H)))
    return w4.reshape(r, G)


def _pad_rows(w):
    """(H, cols) -> (HP, cols) with zero rows for the padded hidden lanes."""
    return jnp.pad(w, ((0, HP - H), (0, 0)))


def sequence_forward(x, params, future=0):
    """x: (B, T) float32 -> (B, T + future) float32."""
    B, T = x.shape
    TT = T + future
    (w_ih1, w_hh1, b_ih1, b_hh1,
     w_ih2, w_hh2, b_ih2, b_hh2,
     w_lin, b_lin) = params

    # --- weight layout prep (plain JAX glue, done once) ---
    w_ih1_row = _pad_gate_cols(w_ih1.T)                     # (1, G)
    w_hh1_p = _pad_rows(_pad_gate_cols(w_hh1.T))            # (HP, G)
    b1 = _pad_gate_cols((b_ih1 + b_hh1)[None, :])           # (1, G)

    w_ih2_p = _pad_rows(_pad_gate_cols(w_ih2.T))            # (HP, G)
    w_hh2_p = _pad_rows(_pad_gate_cols(w_hh2.T))            # (HP, G)
    w2cat = jnp.concatenate([w_ih2_p, w_hh2_p], axis=0)     # (2*HP, G), rows = [h1; h2]
    b2 = _pad_gate_cols((b_ih2 + b_hh2)[None, :])           # (1, G)

    w_lin_col = _pad_rows(w_lin.T)                          # (HP, 1)
    w_lin_row = jnp.pad(w_lin, ((0, 0), (0, HP - H)))       # (1, HP)
    w_comb = w_lin_col @ w_ih1_row                          # (HP, G) = w_lin @ w_ih1
    w1ar = jnp.concatenate([w_comb, w_hh1_p], axis=0)       # (2*HP, G), rows = [h2; h1]
    b1ar = b1 + b_lin[0] * w_ih1_row                        # (1, G)
    b_lin_2d = b_lin.reshape(1, 1)                          # (1, 1)

    # hoisted lstm1 input projection (with bias folded in) for all
    # teacher-forced steps: (T, B, G)
    x_proj = jnp.einsum('bt,g->tbg', x.astype(jnp.float32), w_ih1_row[0]) + b1

    kernel = functools.partial(_sequence_kernel, T, future)
    full = lambda s: pl.BlockSpec(s, lambda: tuple(0 for _ in s))

    out_tb = pl.pallas_call(
        kernel,
        out_shape=jax.ShapeDtypeStruct((TT, B), jnp.float32),
        grid_spec=pltpu.PrefetchScalarGridSpec(
            num_scalar_prefetch=0,
            grid=(),
            in_specs=[
                full((T, B, G)),
                full((HP, G)),
                full((2 * HP, G)), full((1, G)),
                full((2 * HP, G)), full((1, G)),
                full((1, HP)), full((1, 1)),
            ],
            out_specs=full((TT, B)),
            scratch_shapes=[pltpu.VMEM((TT, B, HP), jnp.float32)],
        ),
    )(x_proj, w_hh1_p, w2cat, b2, w1ar, b1ar, w_lin_row, b_lin_2d)

    return out_tb.T                                          # (B, T + future)


# ---------------------------------------------------------------------------
# pure-JAX reference (mirrors the PyTorch forward) for correctness checking
# ---------------------------------------------------------------------------
def sequence_forward_ref(x, params, future=0):
    (w_ih1, w_hh1, b_ih1, b_hh1,
     w_ih2, w_hh2, b_ih2, b_hh2,
     w_lin, b_lin) = params
    B, T = x.shape

    def cell(x_t, h, c, w_ih, w_hh, b_ih, b_hh):
        gates = x_t @ w_ih.T + b_ih + h @ w_hh.T + b_hh
        i, f, g, o = jnp.split(gates, 4, axis=1)
        i, f, o = jax.nn.sigmoid(i), jax.nn.sigmoid(f), jax.nn.sigmoid(o)
        g = jnp.tanh(g)
        c_new = f * c + i * g
        h_new = o * jnp.tanh(c_new)
        return h_new, c_new

    h1 = c1 = h2 = c2 = jnp.zeros((B, H), jnp.float32)
    outs = []
    out = None
    for t in range(T):
        x_t = x[:, t:t + 1]
        h1, c1 = cell(x_t, h1, c1, w_ih1, w_hh1, b_ih1, b_hh1)
        h2, c2 = cell(h1, h2, c2, w_ih2, w_hh2, b_ih2, b_hh2)
        out = h2 @ w_lin.T + b_lin[None, :]
        outs.append(out)
    for _ in range(future):
        h1, c1 = cell(out, h1, c1, w_ih1, w_hh1, b_ih1, b_hh1)
        h2, c2 = cell(h1, h2, c2, w_ih2, w_hh2, b_ih2, b_hh2)
        out = h2 @ w_lin.T + b_lin[None, :]
        outs.append(out)
    return jnp.concatenate(outs, axis=1)  # (B, T + future)


def init_params(key):
    """Deterministic parameter init, PyTorch-style uniform(-1/sqrt(H), 1/sqrt(H))."""
    bound = 1.0 / np.sqrt(H)
    ks = jax.random.split(key, 10)
    u = lambda k, shape: jax.random.uniform(k, shape, jnp.float32, -bound, bound)
    return (
        u(ks[0], (4 * H, IN)),  u(ks[1], (4 * H, H)),  u(ks[2], (4 * H,)), u(ks[3], (4 * H,)),  # lstm1
        u(ks[4], (4 * H, H)),   u(ks[5], (4 * H, H)),  u(ks[6], (4 * H,)), u(ks[7], (4 * H,)),  # lstm2
        u(ks[8], (1, H)),       u(ks[9], (1,)),                                                 # linear
    )


if __name__ == "__main__":
    key = jax.random.PRNGKey(0)
    k_x, k_p = jax.random.split(key)

    B, T, FUTURE = 2, 8, 4
    x = jax.random.normal(k_x, (B, T), jnp.float32)
    params = init_params(k_p)

    out = sequence_forward(x, params, future=FUTURE)
    out = jax.block_until_ready(out)

    ref = sequence_forward_ref(x, params, future=FUTURE)
    assert out.shape == (B, T + FUTURE), out.shape
    np.testing.assert_allclose(np.asarray(out), np.asarray(ref), rtol=2e-5, atol=2e-5)

    print("KERNEL_OK")
</pallas_src>

<mosaic_0001>
module attributes {stable_mosaic.version = 11 : i64} {
  func.func @_sequence_kernel(%arg0: memref<8x2x512xf32, #tpu.memory_space<vmem>>, %arg1: memref<128x512xf32, #tpu.memory_space<vmem>>, %arg2: memref<256x512xf32, #tpu.memory_space<vmem>>, %arg3: memref<1x512xf32, #tpu.memory_space<vmem>>, %arg4: memref<256x512xf32, #tpu.memory_space<vmem>>, %arg5: memref<1x512xf32, #tpu.memory_space<vmem>>, %arg6: memref<1x128xf32, #tpu.memory_space<vmem>>, %arg7: memref<1x1xf32, #tpu.memory_space<vmem>>, %arg8: memref<12x2xf32, #tpu.memory_space<vmem>>, %arg9: memref<12x2x128xf32, #tpu.memory_space<vmem>>) attributes {dimension_semantics = [], scalar_prefetch = 0 : i64, scratch_operands = 1 : i64, tpu.core_type = #tpu.core_type<tc>} {
    %c0 = arith.constant 0 : index
    %c0_0 = arith.constant 0 : index
    %0 = vector.load %arg1[%c0, %c0_0] : memref<128x512xf32, #tpu.memory_space<vmem>>, vector<128x512xf32>
    %c0_1 = arith.constant 0 : index
    %c0_2 = arith.constant 0 : index
    %1 = vector.load %arg2[%c0_1, %c0_2] : memref<256x512xf32, #tpu.memory_space<vmem>>, vector<256x512xf32>
    %c0_3 = arith.constant 0 : index
    %c0_4 = arith.constant 0 : index
    %2 = vector.load %arg3[%c0_3, %c0_4] : memref<1x512xf32, #tpu.memory_space<vmem>>, vector<1x512xf32>
    %c0_5 = arith.constant 0 : index
    %c0_6 = arith.constant 0 : index
    %3 = vector.load %arg4[%c0_5, %c0_6] : memref<256x512xf32, #tpu.memory_space<vmem>>, vector<256x512xf32>
    %c0_7 = arith.constant 0 : index
    %c0_8 = arith.constant 0 : index
    %4 = vector.load %arg5[%c0_7, %c0_8] : memref<1x512xf32, #tpu.memory_space<vmem>>, vector<1x512xf32>
    %cst = arith.constant 0.000000e+00 : f32
    %5 = vector.broadcast %cst : f32 to vector<2x128xf32>
    %c0_i32 = arith.constant 0 : i32
    %6 = arith.index_cast %c0_i32 : i32 to index
    %c0_9 = arith.constant 0 : index
    %c0_10 = arith.constant 0 : index
    %7 = vector.load %arg0[%6, %c0_9, %c0_10] : memref<8x2x512xf32, #tpu.memory_space<vmem>>, vector<1x2x512xf32>
    %8 = vector.shape_cast %7 : vector<1x2x512xf32> to vector<2x512xf32>
    %cst_11 = arith.constant dense<0.000000e+00> : vector<2x512xf32>
    %9 = tpu.matmul %5, %0, %cst_11 {dimension_numbers = #tpu.dot_dimension_numbers<[1], [0], [0], [1], [0, 0, 1, 1], [], []>} : vector<2x128xf32>, vector<128x512xf32>, vector<2x512xf32> -> vector<2x512xf32>
    %10 = arith.addf %8, %9 : vector<2x512xf32>
    %11 = vector.extract_strided_slice %10 {offsets = [0, 0], sizes = [2, 128], strides = [1, 1]} : vector<2x512xf32> to vector<2x128xf32>
    %12 = arith.negf %11 : vector<2x128xf32>
    %13 = math.exp %12 : vector<2x128xf32>
    %cst_12 = arith.constant 1.000000e+00 : f32
    %14 = vector.broadcast %cst_12 : f32 to vector<2x128xf32>
    %15 = arith.addf %14, %13 : vector<2x128xf32>
    %16 = arith.divf %14, %15 : vector<2x128xf32>
    %17 = vector.extract_strided_slice %10 {offsets = [0, 128], sizes = [2, 128], strides = [1, 1]} : vector<2x512xf32> to vector<2x128xf32>
    %18 = arith.negf %17 : vector<2x128xf32>
    %19 = math.exp %18 : vector<2x128xf32>
    %cst_13 = arith.constant 1.000000e+00 : f32
    %20 = vector.broadcast %cst_13 : f32 to vector<2x128xf32>
    %21 = arith.addf %20, %19 : vector<2x128xf32>
    %22 = arith.divf %20, %21 : vector<2x128xf32>
    %23 = vector.extract_strided_slice %10 {offsets = [0, 256], sizes = [2, 128], strides = [1, 1]} : vector<2x512xf32> to vector<2x128xf32>
    %24 = math.tanh %23 : vector<2x128xf32>
    %25 = vector.extract_strided_slice %10 {offsets = [0, 384], sizes = [2, 128], strides = [1, 1]} : vector<2x512xf32> to vector<2x128xf32>
    %26 = arith.negf %25 : vector<2x128xf32>
    %27 = math.exp %26 : vector<2x128xf32>
    %cst_14 = arith.constant 1.000000e+00 : f32
    %28 = vector.broadcast %cst_14 : f32 to vector<2x128xf32>
    %29 = arith.addf %28, %27 : vector<2x128xf32>
    %30 = arith.divf %28, %29 : vector<2x128xf32>
    %31 = arith.mulf %22, %5 : vector<2x128xf32>
    %32 = arith.mulf %16, %24 : vector<2x128xf32>
    %33 = arith.addf %31, %32 : vector<2x128xf32>
    %34 = math.tanh %33 : vector<2x128xf32>
    %35 = arith.mulf %30, %34 : vector<2x128xf32>
    %36 = tpu.concatenate %35, %5 in 1 : vector<2x128xf32>, vector<2x128xf32> -> vector<2x256xf32>
    %cst_15 = arith.constant dense<0.000000e+00> : vector<2x512xf32>
    %37 = tpu.matmul %36, %1, %cst_15 {dimension_numbers = #tpu.dot_dimension_numbers<[1], [0], [0], [1], [0, 0, 1, 1], [], []>} : vector<2x256xf32>, vector<256x512xf32>, vector<2x512xf32> -> vector<2x512xf32>
    %38 = vector.broadcast %2 : vector<1x512xf32> to vector<2x512xf32>
    %39 = arith.addf %37, %38 : vector<2x512xf32>
    %40 = vector.extract_strided_slice %39 {offsets = [0, 0], sizes = [2, 128], strides = [1, 1]} : vector<2x512xf32> to vector<2x128xf32>
    %41 = arith.negf %40 : vector<2x128xf32>
    %42 = math.exp %41 : vector<2x128xf32>
    %cst_16 = arith.constant 1.000000e+00 : f32
    %43 = vector.broadcast %cst_16 : f32 to vector<2x128xf32>
    %44 = arith.addf %43, %42 : vector<2x128xf32>
    %45 = arith.divf %43, %44 : vector<2x128xf32>
    %46 = vector.extract_strided_slice %39 {offsets = [0, 128], sizes = [2, 128], strides = [1, 1]} : vector<2x512xf32> to vector<2x128xf32>
    %47 = arith.negf %46 : vector<2x128xf32>
    %48 = math.exp %47 : vector<2x128xf32>
    %cst_17 = arith.constant 1.000000e+00 : f32
    %49 = vector.broadcast %cst_17 : f32 to vector<2x128xf32>
    %50 = arith.addf %49, %48 : vector<2x128xf32>
    %51 = arith.divf %49, %50 : vector<2x128xf32>
    %52 = vector.extract_strided_slice %39 {offsets = [0, 256], sizes = [2, 128], strides = [1, 1]} : vector<2x512xf32> to vector<2x128xf32>
    %53 = math.tanh %52 : vector<2x128xf32>
    %54 = vector.extract_strided_slice %39 {offsets = [0, 384], sizes = [2, 128], strides = [1, 1]} : vector<2x512xf32> to vector<2x128xf32>
    %55 = arith.negf %54 : vector<2x128xf32>
    %56 = math.exp %55 : vector<2x128xf32>
    %cst_18 = arith.constant 1.000000e+00 : f32
    %57 = vector.broadcast %cst_18 : f32 to vector<2x128xf32>
    %58 = arith.addf %57, %56 : vector<2x128xf32>
    %59 = arith.divf %57, %58 : vector<2x128xf32>
    %60 = arith.mulf %51, %5 : vector<2x128xf32>
    %61 = arith.mulf %45, %53 : vector<2x128xf32>
    %62 = arith.addf %60, %61 : vector<2x128xf32>
    %63 = math.tanh %62 : vector<2x128xf32>
    %64 = arith.mulf %59, %63 : vector<2x128xf32>
    %65 = arith.index_cast %c0_i32 : i32 to index
    %c0_19 = arith.constant 0 : index
    %c0_20 = arith.constant 0 : index
    %66 = vector.load %arg9[%65, %c0_19, %c0_20] : memref<12x2x128xf32, #tpu.memory_space<vmem>>, vector<1x2x128xf32>
    %67 = vector.shape_cast %66 : vector<1x2x128xf32> to vector<2x128xf32>
    %68 = vector.shape_cast %64 : vector<2x128xf32> to vector<1x2x128xf32>
    tpu.vector_store %arg9[%65, %c0_19, %c0_20], %68 {strides = array<i32>} : memref<12x2x128xf32, #tpu.memory_space<vmem>>, vector<1x2x128xf32>,
    %c1_i32 = arith.constant 1 : i32
    %69 = arith.index_cast %c1_i32 : i32 to index
    %c0_21 = arith.constant 0 : index
    %c0_22 = arith.constant 0 : index
    %70 = vector.load %arg0[%69, %c0_21, %c0_22] : memref<8x2x512xf32, #tpu.memory_space<vmem>>, vector<1x2x512xf32>
    %71 = vector.shape_cast %70 : vector<1x2x512xf32> to vector<2x512xf32>
    %cst_23 = arith.constant dense<0.000000e+00> : vector<2x512xf32>
    %72 = tpu.matmul %35, %0, %cst_23 {dimension_numbers = #tpu.dot_dimension_numbers<[1], [0], [0], [1], [0, 0, 1, 1], [], []>} : vector<2x128xf32>, vector<128x512xf32>, vector<2x512xf32> -> vector<2x512xf32>
    %73 = arith.addf %71, %72 : vector<2x512xf32>
    %74 = vector.extract_strided_slice %73 {offsets = [0, 0], sizes = [2, 128], strides = [1, 1]} : vector<2x512xf32> to vector<2x128xf32>
    %75 = arith.negf %74 : vector<2x128xf32>
    %76 = math.exp %75 : vector<2x128xf32>
    %cst_24 = arith.constant 1.000000e+00 : f32
    %77 = vector.broadcast %cst_24 : f32 to vector<2x128xf32>
    %78 = arith.addf %77, %76 : vector<2x128xf32>
    %79 = arith.divf %77, %78 : vector<2x128xf32>
    %80 = vector.extract_strided_slice %73 {offsets = [0, 128], sizes = [2, 128], strides = [1, 1]} : vector<2x512xf32> to vector<2x128xf32>
    %81 = arith.negf %80 : vector<2x128xf32>
    %82 = math.exp %81 : vector<2x128xf32>
    %cst_25 = arith.constant 1.000000e+00 : f32
    %83 = vector.broadcast %cst_25 : f32 to vector<2x128xf32>
    %84 = arith.addf %83, %82 : vector<2x128xf32>
    %85 = arith.divf %83, %84 : vector<2x128xf32>
    %86 = vector.extract_strided_slice %73 {offsets = [0, 256], sizes = [2, 128], strides = [1, 1]} : vector<2x512xf32> to vector<2x128xf32>
    %87 = math.tanh %86 : vector<2x128xf32>
    %88 = vector.extract_strided_slice %73 {offsets = [0, 384], sizes = [2, 128], strides = [1, 1]} : vector<2x512xf32> to vector<2x128xf32>
    %89 = arith.negf %88 : vector<2x128xf32>
    %90 = math.exp %89 : vector<2x128xf32>
    %cst_26 = arith.constant 1.000000e+00 : f32
    %91 = vector.broadcast %cst_26 : f32 to vector<2x128xf32>
    %92 = arith.addf %91, %90 : vector<2x128xf32>
    %93 = arith.divf %91, %92 : vector<2x128xf32>
    %94 = arith.mulf %85, %33 : vector<2x128xf32>
    %95 = arith.mulf %79, %87 : vector<2x128xf32>
    %96 = arith.addf %94, %95 : vector<2x128xf32>
    %97 = math.tanh %96 : vector<2x128xf32>
    %98 = arith.mulf %93, %97 : vector<2x128xf32>
    %99 = tpu.concatenate %98, %64 in 1 : vector<2x128xf32>, vector<2x128xf32> -> vector<2x256xf32>
    %cst_27 = arith.constant dense<0.000000e+00> : vector<2x512xf32>
    %100 = tpu.matmul %99, %1, %cst_27 {dimension_numbers = #tpu.dot_dimension_numbers<[1], [0], [0], [1], [0, 0, 1, 1], [], []>} : vector<2x256xf32>, vector<256x512xf32>, vector<2x512xf32> -> vector<2x512xf32>
    %101 = vector.broadcast %2 : vector<1x512xf32> to vector<2x512xf32>
    %102 = arith.addf %100, %101 : vector<2x512xf32>
    %103 = vector.extract_strided_slice %102 {offsets = [0, 0], sizes = [2, 128], strides = [1, 1]} : vector<2x512xf32> to vector<2x128xf32>
    %104 = arith.negf %103 : vector<2x128xf32>
    %105 = math.exp %104 : vector<2x128xf32>
    %cst_28 = arith.constant 1.000000e+00 : f32
    %106 = vector.broadcast %cst_28 : f32 to vector<2x128xf32>
    %107 = arith.addf %106, %105 : vector<2x128xf32>
    %108 = arith.divf %106, %107 : vector<2x128xf32>
    %109 = vector.extract_strided_slice %102 {offsets = [0, 128], sizes = [2, 128], strides = [1, 1]} : vector<2x512xf32> to vector<2x128xf32>
    %110 = arith.negf %109 : vector<2x128xf32>
    %111 = math.exp %110 : vector<2x128xf32>
    %cst_29 = arith.constant 1.000000e+00 : f32
    %112 = vector.broadcast %cst_29 : f32 to vector<2x128xf32>
    %113 = arith.addf %112, %111 : vector<2x128xf32>
    %114 = arith.divf %112, %113 : vector<2x128xf32>
    %115 = vector.extract_strided_slice %102 {offsets = [0, 256], sizes = [2, 128], strides = [1, 1]} : vector<2x512xf32> to vector<2x128xf32>
    %116 = math.tanh %115 : vector<2x128xf32>
    %117 = vector.extract_strided_slice %102 {offsets = [0, 384], sizes = [2, 128], strides = [1, 1]} : vector<2x512xf32> to vector<2x128xf32>
    %118 = arith.negf %117 : vector<2x128xf32>
    %119 = math.exp %118 : vector<2x128xf32>
    %cst_30 = arith.constant 1.000000e+00 : f32
    %120 = vector.broadcast %cst_30 : f32 to vector<2x128xf32>
    %121 = arith.addf %120, %119 : vector<2x128xf32>
    %122 = arith.divf %120, %121 : vector<2x128xf32>
    %123 = arith.mulf %114, %62 : vector<2x128xf32>
    %124 = arith.mulf %108, %116 : vector<2x128xf32>
    %125 = arith.addf %123, %124 : vector<2x128xf32>
    %126 = math.tanh %125 : vector<2x128xf32>
    %127 = arith.mulf %122, %126 : vector<2x128xf32>
    %128 = arith.index_cast %c1_i32 : i32 to index
    %c0_31 = arith.constant 0 : index
    %c0_32 = arith.constant 0 : index
    %129 = vector.load %arg9[%128, %c0_31, %c0_32] : memref<12x2x128xf32, #tpu.memory_space<vmem>>, vector<1x2x128xf32>
    %130 = vector.shape_cast %129 : vector<1x2x128xf32> to vector<2x128xf32>
    %131 = vector.shape_cast %127 : vector<2x128xf32> to vector<1x2x128xf32>
    tpu.vector_store %arg9[%128, %c0_31, %c0_32], %131 {strides = array<i32>} : memref<12x2x128xf32, #tpu.memory_space<vmem>>, vector<1x2x128xf32>,
    %c2_i32 = arith.constant 2 : i32
    %132 = arith.index_cast %c2_i32 : i32 to index
    %c0_33 = arith.constant 0 : index
    %c0_34 = arith.constant 0 : index
    %133 = vector.load %arg0[%132, %c0_33, %c0_34] : memref<8x2x512xf32, #tpu.memory_space<vmem>>, vector<1x2x512xf32>
    %134 = vector.shape_cast %133 : vector<1x2x512xf32> to vector<2x512xf32>
    %cst_35 = arith.constant dense<0.000000e+00> : vector<2x512xf32>
    %135 = tpu.matmul %98, %0, %cst_35 {dimension_numbers = #tpu.dot_dimension_numbers<[1], [0], [0], [1], [0, 0, 1, 1], [], []>} : vector<2x128xf32>, vector<128x512xf32>, vector<2x512xf32> -> vector<2x512xf32>
    %136 = arith.addf %134, %135 : vector<2x512xf32>
    %137 = vector.extract_strided_slice %136 {offsets = [0, 0], sizes = [2, 128], strides = [1, 1]} : vector<2x512xf32> to vector<2x128xf32>
    %138 = arith.negf %137 : vector<2x128xf32>
    %139 = math.exp %138 : vector<2x128xf32>
    %cst_36 = arith.constant 1.000000e+00 : f32
    %140 = vector.broadcast %cst_36 : f32 to vector<2x128xf32>
    %141 = arith.addf %140, %139 : vector<2x128xf32>
    %142 = arith.divf %140, %141 : vector<2x128xf32>
    %143 = vector.extract_strided_slice %136 {offsets = [0, 128], sizes = [2, 128], strides = [1, 1]} : vector<2x512xf32> to vector<2x128xf32>
    %144 = arith.negf %143 : vector<2x128xf32>
    %145 = math.exp %144 : vector<2x128xf32>
    %cst_37 = arith.constant 1.000000e+00 : f32
    %146 = vector.broadcast %cst_37 : f32 to vector<2x128xf32>
    %147 = arith.addf %146, %145 : vector<2x128xf32>
    %148 = arith.divf %146, %147 : vector<2x128xf32>
    %149 = vector.extract_strided_slice %136 {offsets = [0, 256], sizes = [2, 128], strides = [1, 1]} : vector<2x512xf32> to vector<2x128xf32>
    %150 = math.tanh %149 : vector<2x128xf32>
    %151 = vector.extract_strided_slice %136 {offsets = [0, 384], sizes = [2, 128], strides = [1, 1]} : vector<2x512xf32> to vector<2x128xf32>
    %152 = arith.negf %151 : vector<2x128xf32>
    %153 = math.exp %152 : vector<2x128xf32>
    %cst_38 = arith.constant 1.000000e+00 : f32
    %154 = vector.broadcast %cst_38 : f32 to vector<2x128xf32>
    %155 = arith.addf %154, %153 : vector<2x128xf32>
    %156 = arith.divf %154, %155 : vector<2x128xf32>
    %157 = arith.mulf %148, %96 : vector<2x128xf32>
    %158 = arith.mulf %142, %150 : vector<2x128xf32>
    %159 = arith.addf %157, %158 : vector<2x128xf32>
    %160 = math.tanh %159 : vector<2x128xf32>
    %161 = arith.mulf %156, %160 : vector<2x128xf32>
    %162 = tpu.concatenate %161, %127 in 1 : vector<2x128xf32>, vector<2x128xf32> -> vector<2x256xf32>
    %cst_39 = arith.constant dense<0.000000e+00> : vector<2x512xf32>
    %163 = tpu.matmul %162, %1, %cst_39 {dimension_numbers = #tpu.dot_dimension_numbers<[1], [0], [0], [1], [0, 0, 1, 1], [], []>} : vector<2x256xf32>, vector<256x512xf32>, vector<2x512xf32> -> vector<2x512xf32>
    %164 = vector.broadcast %2 : vector<1x512xf32> to vector<2x512xf32>
    %165 = arith.addf %163, %164 : vector<2x512xf32>
    %166 = vector.extract_strided_slice %165 {offsets = [0, 0], sizes = [2, 128], strides = [1, 1]} : vector<2x512xf32> to vector<2x128xf32>
    %167 = arith.negf %166 : vector<2x128xf32>
    %168 = math.exp %167 : vector<2x128xf32>
    %cst_40 = arith.constant 1.000000e+00 : f32
    %169 = vector.broadcast %cst_40 : f32 to vector<2x128xf32>
    %170 = arith.addf %169, %168 : vector<2x128xf32>
    %171 = arith.divf %169, %170 : vector<2x128xf32>
    %172 = vector.extract_strided_slice %165 {offsets = [0, 128], sizes = [2, 128], strides = [1, 1]} : vector<2x512xf32> to vector<2x128xf32>
    %173 = arith.negf %172 : vector<2x128xf32>
    %174 = math.exp %173 : vector<2x128xf32>
    %cst_41 = arith.constant 1.000000e+00 : f32
    %175 = vector.broadcast %cst_41 : f32 to vector<2x128xf32>
    %176 = arith.addf %175, %174 : vector<2x128xf32>
    %177 = arith.divf %175, %176 : vector<2x128xf32>
    %178 = vector.extract_strided_slice %165 {offsets = [0, 256], sizes = [2, 128], strides = [1, 1]} : vector<2x512xf32> to vector<2x128xf32>
    %179 = math.tanh %178 : vector<2x128xf32>
    %180 = vector.extract_strided_slice %165 {offsets = [0, 384], sizes = [2, 128], strides = [1, 1]} : vector<2x512xf32> to vector<2x128xf32>
    %181 = arith.negf %180 : vector<2x128xf32>
    %182 = math.exp %181 : vector<2x128xf32>
    %cst_42 = arith.constant 1.000000e+00 : f32
    %183 = vector.broadcast %cst_42 : f32 to vector<2x128xf32>
    %184 = arith.addf %183, %182 : vector<2x128xf32>
    %185 = arith.divf %183, %184 : vector<2x128xf32>
    %186 = arith.mulf %177, %125 : vector<2x128xf32>
    %187 = arith.mulf %171, %179 : vector<2x128xf32>
    %188 = arith.addf %186, %187 : vector<2x128xf32>
    %189 = math.tanh %188 : vector<2x128xf32>
    %190 = arith.mulf %185, %189 : vector<2x128xf32>
    %191 = arith.index_cast %c2_i32 : i32 to index
    %c0_43 = arith.constant 0 : index
    %c0_44 = arith.constant 0 : index
    %192 = vector.load %arg9[%191, %c0_43, %c0_44] : memref<12x2x128xf32, #tpu.memory_space<vmem>>, vector<1x2x128xf32>
    %193 = vector.shape_cast %192 : vector<1x2x128xf32> to vector<2x128xf32>
    %194 = vector.shape_cast %190 : vector<2x128xf32> to vector<1x2x128xf32>
    tpu.vector_store %arg9[%191, %c0_43, %c0_44], %194 {strides = array<i32>} : memref<12x2x128xf32, #tpu.memory_space<vmem>>, vector<1x2x128xf32>,
    %c3_i32 = arith.constant 3 : i32
    %195 = arith.index_cast %c3_i32 : i32 to index
    %c0_45 = arith.constant 0 : index
    %c0_46 = arith.constant 0 : index
    %196 = vector.load %arg0[%195, %c0_45, %c0_46] : memref<8x2x512xf32, #tpu.memory_space<vmem>>, vector<1x2x512xf32>
    %197 = vector.shape_cast %196 : vector<1x2x512xf32> to vector<2x512xf32>
    %cst_47 = arith.constant dense<0.000000e+00> : vector<2x512xf32>
    %198 = tpu.matmul %161, %0, %cst_47 {dimension_numbers = #tpu.dot_dimension_numbers<[1], [0], [0], [1], [0, 0, 1, 1], [], []>} : vector<2x128xf32>, vector<128x512xf32>, vector<2x512xf32> -> vector<2x512xf32>
    %199 = arith.addf %197, %198 : vector<2x512xf32>
    %200 = vector.extract_strided_slice %199 {offsets = [0, 0], sizes = [2, 128], strides = [1, 1]} : vector<2x512xf32> to vector<2x128xf32>
    %201 = arith.negf %200 : vector<2x128xf32>
    %202 = math.exp %201 : vector<2x128xf32>
    %cst_48 = arith.constant 1.000000e+00 : f32
    %203 = vector.broadcast %cst_48 : f32 to vector<2x128xf32>
    %204 = arith.addf %203, %202 : vector<2x128xf32>
    %205 = arith.divf %203, %204 : vector<2x128xf32>
    %206 = vector.extract_strided_slice %199 {offsets = [0, 128], sizes = [2, 128], strides = [1, 1]} : vector<2x512xf32> to vector<2x128xf32>
    %207 = arith.negf %206 : vector<2x128xf32>
    %208 = math.exp %207 : vector<2x128xf32>
    %cst_49 = arith.constant 1.000000e+00 : f32
    %209 = vector.broadcast %cst_49 : f32 to vector<2x128xf32>
    %210 = arith.addf %209, %208 : vector<2x128xf32>
    %211 = arith.divf %209, %210 : vector<2x128xf32>
    %212 = vector.extract_strided_slice %199 {offsets = [0, 256], sizes = [2, 128], strides = [1, 1]} : vector<2x512xf32> to vector<2x128xf32>
    %213 = math.tanh %212 : vector<2x128xf32>
    %214 = vector.extract_strided_slice %199 {offsets = [0, 384], sizes = [2, 128], strides = [1, 1]} : vector<2x512xf32> to vector<2x128xf32>
    %215 = arith.negf %214 : vector<2x128xf32>
    %216 = math.exp %215 : vector<2x128xf32>
    %cst_50 = arith.constant 1.000000e+00 : f32
    %217 = vector.broadcast %cst_50 : f32 to vector<2x128xf32>
    %218 = arith.addf %217, %216 : vector<2x128xf32>
    %219 = arith.divf %217, %218 : vector<2x128xf32>
    %220 = arith.mulf %211, %159 : vector<2x128xf32>
    %221 = arith.mulf %205, %213 : vector<2x128xf32>
    %222 = arith.addf %220, %221 : vector<2x128xf32>
    %223 = math.tanh %222 : vector<2x128xf32>
    %224 = arith.mulf %219, %223 : vector<2x128xf32>
    %225 = tpu.concatenate %224, %190 in 1 : vector<2x128xf32>, vector<2x128xf32> -> vector<2x256xf32>
    %cst_51 = arith.constant dense<0.000000e+00> : vector<2x512xf32>
    %226 = tpu.matmul %225, %1, %cst_51 {dimension_numbers = #tpu.dot_dimension_numbers<[1], [0], [0], [1], [0, 0, 1, 1], [], []>} : vector<2x256xf32>, vector<256x512xf32>, vector<2x512xf32> -> vector<2x512xf32>
    %227 = vector.broadcast %2 : vector<1x512xf32> to vector<2x512xf32>
    %228 = arith.addf %226, %227 : vector<2x512xf32>
    %229 = vector.extract_strided_slice %228 {offsets = [0, 0], sizes = [2, 128], strides = [1, 1]} : vector<2x512xf32> to vector<2x128xf32>
    %230 = arith.negf %229 : vector<2x128xf32>
    %231 = math.exp %230 : vector<2x128xf32>
    %cst_52 = arith.constant 1.000000e+00 : f32
    %232 = vector.broadcast %cst_52 : f32 to vector<2x128xf32>
    %233 = arith.addf %232, %231 : vector<2x128xf32>
    %234 = arith.divf %232, %233 : vector<2x128xf32>
    %235 = vector.extract_strided_slice %228 {offsets = [0, 128], sizes = [2, 128], strides = [1, 1]} : vector<2x512xf32> to vector<2x128xf32>
    %236 = arith.negf %235 : vector<2x128xf32>
    %237 = math.exp %236 : vector<2x128xf32>
    %cst_53 = arith.constant 1.000000e+00 : f32
    %238 = vector.broadcast %cst_53 : f32 to vector<2x128xf32>
    %239 = arith.addf %238, %237 : vector<2x128xf32>
    %240 = arith.divf %238, %239 : vector<2x128xf32>
    %241 = vector.extract_strided_slice %228 {offsets = [0, 256], sizes = [2, 128], strides = [1, 1]} : vector<2x512xf32> to vector<2x128xf32>
    %242 = math.tanh %241 : vector<2x128xf32>
    %243 = vector.extract_strided_slice %228 {offsets = [0, 384], sizes = [2, 128], strides = [1, 1]} : vector<2x512xf32> to vector<2x128xf32>
    %244 = arith.negf %243 : vector<2x128xf32>
    %245 = math.exp %244 : vector<2x128xf32>
    %cst_54 = arith.constant 1.000000e+00 : f32
    %246 = vector.broadcast %cst_54 : f32 to vector<2x128xf32>
    %247 = arith.addf %246, %245 : vector<2x128xf32>
    %248 = arith.divf %246, %247 : vector<2x128xf32>
    %249 = arith.mulf %240, %188 : vector<2x128xf32>
    %250 = arith.mulf %234, %242 : vector<2x128xf32>
    %251 = arith.addf %249, %250 : vector<2x128xf32>
    %252 = math.tanh %251 : vector<2x128xf32>
    %253 = arith.mulf %248, %252 : vector<2x128xf32>
    %254 = arith.index_cast %c3_i32 : i32 to index
    %c0_55 = arith.constant 0 : index
    %c0_56 = arith.constant 0 : index
    %255 = vector.load %arg9[%254, %c0_55, %c0_56] : memref<12x2x128xf32, #tpu.memory_space<vmem>>, vector<1x2x128xf32>
    %256 = vector.shape_cast %255 : vector<1x2x128xf32> to vector<2x128xf32>
    %257 = vector.shape_cast %253 : vector<2x128xf32> to vector<1x2x128xf32>
    tpu.vector_store %arg9[%254, %c0_55, %c0_56], %257 {strides = array<i32>} : memref<12x2x128xf32, #tpu.memory_space<vmem>>, vector<1x2x128xf32>,
    %c4_i32 = arith.constant 4 : i32
    %258 = arith.index_cast %c4_i32 : i32 to index
    %c0_57 = arith.constant 0 : index
    %c0_58 = arith.constant 0 : index
    %259 = vector.load %arg0[%258, %c0_57, %c0_58] : memref<8x2x512xf32, #tpu.memory_space<vmem>>, vector<1x2x512xf32>
    %260 = vector.shape_cast %259 : vector<1x2x512xf32> to vector<2x512xf32>
    %cst_59 = arith.constant dense<0.000000e+00> : vector<2x512xf32>
    %261 = tpu.matmul %224, %0, %cst_59 {dimension_numbers = #tpu.dot_dimension_numbers<[1], [0], [0], [1], [0, 0, 1, 1], [], []>} : vector<2x128xf32>, vector<128x512xf32>, vector<2x512xf32> -> vector<2x512xf32>
    %262 = arith.addf %260, %261 : vector<2x512xf32>
    %263 = vector.extract_strided_slice %262 {offsets = [0, 0], sizes = [2, 128], strides = [1, 1]} : vector<2x512xf32> to vector<2x128xf32>
    %264 = arith.negf %263 : vector<2x128xf32>
    %265 = math.exp %264 : vector<2x128xf32>
    %cst_60 = arith.constant 1.000000e+00 : f32
    %266 = vector.broadcast %cst_60 : f32 to vector<2x128xf32>
    %267 = arith.addf %266, %265 : vector<2x128xf32>
    %268 = arith.divf %266, %267 : vector<2x128xf32>
    %269 = vector.extract_strided_slice %262 {offsets = [0, 128], sizes = [2, 128], strides = [1, 1]} : vector<2x512xf32> to vector<2x128xf32>
    %270 = arith.negf %269 : vector<2x128xf32>
    %271 = math.exp %270 : vector<2x128xf32>
    %cst_61 = arith.constant 1.000000e+00 : f32
    %272 = vector.broadcast %cst_61 : f32 to vector<2x128xf32>
    %273 = arith.addf %272, %271 : vector<2x128xf32>
    %274 = arith.divf %272, %273 : vector<2x128xf32>
    %275 = vector.extract_strided_slice %262 {offsets = [0, 256], sizes = [2, 128], strides = [1, 1]} : vector<2x512xf32> to vector<2x128xf32>
    %276 = math.tanh %275 : vector<2x128xf32>
    %277 = vector.extract_strided_slice %262 {offsets = [0, 384], sizes = [2, 128], strides = [1, 1]} : vector<2x512xf32> to vector<2x128xf32>
    %278 = arith.negf %277 : vector<2x128xf32>
    %279 = math.exp %278 : vector<2x128xf32>
    %cst_62 = arith.constant 1.000000e+00 : f32
    %280 = vector.broadcast %cst_62 : f32 to vector<2x128xf32>
    %281 = arith.addf %280, %279 : vector<2x128xf32>
    %282 = arith.divf %280, %281 : vector<2x128xf32>
    %283 = arith.mulf %274, %222 : vector<2x128xf32>
    %284 = arith.mulf %268, %276 : vector<2x128xf32>
    %285 = arith.addf %283, %284 : vector<2x128xf32>
    %286 = math.tanh %285 : vector<2x128xf32>
    %287 = arith.mulf %282, %286 : vector<2x128xf32>
    %288 = tpu.concatenate %287, %253 in 1 : vector<2x128xf32>, vector<2x128xf32> -> vector<2x256xf32>
    %cst_63 = arith.constant dense<0.000000e+00> : vector<2x512xf32>
    %289 = tpu.matmul %288, %1, %cst_63 {dimension_numbers = #tpu.dot_dimension_numbers<[1], [0], [0], [1], [0, 0, 1, 1], [], []>} : vector<2x256xf32>, vector<256x512xf32>, vector<2x512xf32> -> vector<2x512xf32>
    %290 = vector.broadcast %2 : vector<1x512xf32> to vector<2x512xf32>
    %291 = arith.addf %289, %290 : vector<2x512xf32>
    %292 = vector.extract_strided_slice %291 {offsets = [0, 0], sizes = [2, 128], strides = [1, 1]} : vector<2x512xf32> to vector<2x128xf32>
    %293 = arith.negf %292 : vector<2x128xf32>
    %294 = math.exp %293 : vector<2x128xf32>
    %cst_64 = arith.constant 1.000000e+00 : f32
    %295 = vector.broadcast %cst_64 : f32 to vector<2x128xf32>
    %296 = arith.addf %295, %294 : vector<2x128xf32>
    %297 = arith.divf %295, %296 : vector<2x128xf32>
    %298 = vector.extract_strided_slice %291 {offsets = [0, 128], sizes = [2, 128], strides = [1, 1]} : vector<2x512xf32> to vector<2x128xf32>
    %299 = arith.negf %298 : vector<2x128xf32>
    %300 = math.exp %299 : vector<2x128xf32>
    %cst_65 = arith.constant 1.000000e+00 : f32
    %301 = vector.broadcast %cst_65 : f32 to vector<2x128xf32>
    %302 = arith.addf %301, %300 : vector<2x128xf32>
    %303 = arith.divf %301, %302 : vector<2x128xf32>
    %304 = vector.extract_strided_slice %291 {offsets = [0, 256], sizes = [2, 128], strides = [1, 1]} : vector<2x512xf32> to vector<2x128xf32>
    %305 = math.tanh %304 : vector<2x128xf32>
    %306 = vector.extract_strided_slice %291 {offsets = [0, 384], sizes = [2, 128], strides = [1, 1]} : vector<2x512xf32> to vector<2x128xf32>
    %307 = arith.negf %306 : vector<2x128xf32>
    %308 = math.exp %307 : vector<2x128xf32>
    %cst_66 = arith.constant 1.000000e+00 : f32
    %309 = vector.broadcast %cst_66 : f32 to vector<2x128xf32>
    %310 = arith.addf %309, %308 : vector<2x128xf32>
    %311 = arith.divf %309, %310 : vector<2x128xf32>
    %312 = arith.mulf %303, %251 : vector<2x128xf32>
    %313 = arith.mulf %297, %305 : vector<2x128xf32>
    %314 = arith.addf %312, %313 : vector<2x128xf32>
    %315 = math.tanh %314 : vector<2x128xf32>
    %316 = arith.mulf %311, %315 : vector<2x128xf32>
    %317 = arith.index_cast %c4_i32 : i32 to index
    %c0_67 = arith.constant 0 : index
    %c0_68 = arith.constant 0 : index
    %318 = vector.load %arg9[%317, %c0_67, %c0_68] : memref<12x2x128xf32, #tpu.memory_space<vmem>>, vector<1x2x128xf32>
    %319 = vector.shape_cast %318 : vector<1x2x128xf32> to vector<2x128xf32>
    %320 = vector.shape_cast %316 : vector<2x128xf32> to vector<1x2x128xf32>
    tpu.vector_store %arg9[%317, %c0_67, %c0_68], %320 {strides = array<i32>} : memref<12x2x128xf32, #tpu.memory_space<vmem>>, vector<1x2x128xf32>,
    %c5_i32 = arith.constant 5 : i32
    %321 = arith.index_cast %c5_i32 : i32 to index
    %c0_69 = arith.constant 0 : index
    %c0_70 = arith.constant 0 : index
    %322 = vector.load %arg0[%321, %c0_69, %c0_70] : memref<8x2x512xf32, #tpu.memory_space<vmem>>, vector<1x2x512xf32>
    %323 = vector.shape_cast %322 : vector<1x2x512xf32> to vector<2x512xf32>
    %cst_71 = arith.constant dense<0.000000e+00> : vector<2x512xf32>
    %324 = tpu.matmul %287, %0, %cst_71 {dimension_numbers = #tpu.dot_dimension_numbers<[1], [0], [0], [1], [0, 0, 1, 1], [], []>} : vector<2x128xf32>, vector<128x512xf32>, vector<2x512xf32> -> vector<2x512xf32>
    %325 = arith.addf %323, %324 : vector<2x512xf32>
    %326 = vector.extract_strided_slice %325 {offsets = [0, 0], sizes = [2, 128], strides = [1, 1]} : vector<2x512xf32> to vector<2x128xf32>
    %327 = arith.negf %326 : vector<2x128xf32>
    %328 = math.exp %327 : vector<2x128xf32>
    %cst_72 = arith.constant 1.000000e+00 : f32
    %329 = vector.broadcast %cst_72 : f32 to vector<2x128xf32>
    %330 = arith.addf %329, %328 : vector<2x128xf32>
    %331 = arith.divf %329, %330 : vector<2x128xf32>
    %332 = vector.extract_strided_slice %325 {offsets = [0, 128], sizes = [2, 128], strides = [1, 1]} : vector<2x512xf32> to vector<2x128xf32>
    %333 = arith.negf %332 : vector<2x128xf32>
    %334 = math.exp %333 : vector<2x128xf32>
    %cst_73 = arith.constant 1.000000e+00 : f32
    %335 = vector.broadcast %cst_73 : f32 to vector<2x128xf32>
    %336 = arith.addf %335, %334 : vector<2x128xf32>
    %337 = arith.divf %335, %336 : vector<2x128xf32>
    %338 = vector.extract_strided_slice %325 {offsets = [0, 256], sizes = [2, 128], strides = [1, 1]} : vector<2x512xf32> to vector<2x128xf32>
    %339 = math.tanh %338 : vector<2x128xf32>
    %340 = vector.extract_strided_slice %325 {offsets = [0, 384], sizes = [2, 128], strides = [1, 1]} : vector<2x512xf32> to vector<2x128xf32>
    %341 = arith.negf %340 : vector<2x128xf32>
    %342 = math.exp %341 : vector<2x128xf32>
    %cst_74 = arith.constant 1.000000e+00 : f32
    %343 = vector.broadcast %cst_74 : f32 to vector<2x128xf32>
    %344 = arith.addf %343, %342 : vector<2x128xf32>
    %345 = arith.divf %343, %344 : vector<2x128xf32>
    %346 = arith.mulf %337, %285 : vector<2x128xf32>
    %347 = arith.mulf %331, %339 : vector<2x128xf32>
    %348 = arith.addf %346, %347 : vector<2x128xf32>
    %349 = math.tanh %348 : vector<2x128xf32>
    %350 = arith.mulf %345, %349 : vector<2x128xf32>
    %351 = tpu.concatenate %350, %316 in 1 : vector<2x128xf32>, vector<2x128xf32> -> vector<2x256xf32>
    %cst_75 = arith.constant dense<0.000000e+00> : vector<2x512xf32>
    %352 = tpu.matmul %351, %1, %cst_75 {dimension_numbers = #tpu.dot_dimension_numbers<[1], [0], [0], [1], [0, 0, 1, 1], [], []>} : vector<2x256xf32>, vector<256x512xf32>, vector<2x512xf32> -> vector<2x512xf32>
    %353 = vector.broadcast %2 : vector<1x512xf32> to vector<2x512xf32>
    %354 = arith.addf %352, %353 : vector<2x512xf32>
    %355 = vector.extract_strided_slice %354 {offsets = [0, 0], sizes = [2, 128], strides = [1, 1]} : vector<2x512xf32> to vector<2x128xf32>
    %356 = arith.negf %355 : vector<2x128xf32>
    %357 = math.exp %356 : vector<2x128xf32>
    %cst_76 = arith.constant 1.000000e+00 : f32
    %358 = vector.broadcast %cst_76 : f32 to vector<2x128xf32>
    %359 = arith.addf %358, %357 : vector<2x128xf32>
    %360 = arith.divf %358, %359 : vector<2x128xf32>
    %361 = vector.extract_strided_slice %354 {offsets = [0, 128], sizes = [2, 128], strides = [1, 1]} : vector<2x512xf32> to vector<2x128xf32>
    %362 = arith.negf %361 : vector<2x128xf32>
    %363 = math.exp %362 : vector<2x128xf32>
    %cst_77 = arith.constant 1.000000e+00 : f32
    %364 = vector.broadcast %cst_77 : f32 to vector<2x128xf32>
    %365 = arith.addf %364, %363 : vector<2x128xf32>
    %366 = arith.divf %364, %365 : vector<2x128xf32>
    %367 = vector.extract_strided_slice %354 {offsets = [0, 256], sizes = [2, 128], strides = [1, 1]} : vector<2x512xf32> to vector<2x128xf32>
    %368 = math.tanh %367 : vector<2x128xf32>
    %369 = vector.extract_strided_slice %354 {offsets = [0, 384], sizes = [2, 128], strides = [1, 1]} : vector<2x512xf32> to vector<2x128xf32>
    %370 = arith.negf %369 : vector<2x128xf32>
    %371 = math.exp %370 : vector<2x128xf32>
    %cst_78 = arith.constant 1.000000e+00 : f32
    %372 = vector.broadcast %cst_78 : f32 to vector<2x128xf32>
    %373 = arith.addf %372, %371 : vector<2x128xf32>
    %374 = arith.divf %372, %373 : vector<2x128xf32>
    %375 = arith.mulf %366, %314 : vector<2x128xf32>
    %376 = arith.mulf %360, %368 : vector<2x128xf32>
    %377 = arith.addf %375, %376 : vector<2x128xf32>
    %378 = math.tanh %377 : vector<2x128xf32>
    %379 = arith.mulf %374, %378 : vector<2x128xf32>
    %380 = arith.index_cast %c5_i32 : i32 to index
    %c0_79 = arith.constant 0 : index
    %c0_80 = arith.constant 0 : index
    %381 = vector.load %arg9[%380, %c0_79, %c0_80] : memref<12x2x128xf32, #tpu.memory_space<vmem>>, vector<1x2x128xf32>
    %382 = vector.shape_cast %381 : vector<1x2x128xf32> to vector<2x128xf32>
    %383 = vector.shape_cast %379 : vector<2x128xf32> to vector<1x2x128xf32>
    tpu.vector_store %arg9[%380, %c0_79, %c0_80], %383 {strides = array<i32>} : memref<12x2x128xf32, #tpu.memory_space<vmem>>, vector<1x2x128xf32>,
    %c6_i32 = arith.constant 6 : i32
    %384 = arith.index_cast %c6_i32 : i32 to index
    %c0_81 = arith.constant 0 : index
    %c0_82 = arith.constant 0 : index
    %385 = vector.load %arg0[%384, %c0_81, %c0_82] : memref<8x2x512xf32, #tpu.memory_space<vmem>>, vector<1x2x512xf32>
    %386 = vector.shape_cast %385 : vector<1x2x512xf32> to vector<2x512xf32>
    %cst_83 = arith.constant dense<0.000000e+00> : vector<2x512xf32>
    %387 = tpu.matmul %350, %0, %cst_83 {dimension_numbers = #tpu.dot_dimension_numbers<[1], [0], [0], [1], [0, 0, 1, 1], [], []>} : vector<2x128xf32>, vector<128x512xf32>, vector<2x512xf32> -> vector<2x512xf32>
    %388 = arith.addf %386, %387 : vector<2x512xf32>
    %389 = vector.extract_strided_slice %388 {offsets = [0, 0], sizes = [2, 128], strides = [1, 1]} : vector<2x512xf32> to vector<2x128xf32>
    %390 = arith.negf %389 : vector<2x128xf32>
    %391 = math.exp %390 : vector<2x128xf32>
    %cst_84 = arith.constant 1.000000e+00 : f32
    %392 = vector.broadcast %cst_84 : f32 to vector<2x128xf32>
    %393 = arith.addf %392, %391 : vector<2x128xf32>
    %394 = arith.divf %392, %393 : vector<2x128xf32>
    %395 = vector.extract_strided_slice %388 {offsets = [0, 128], sizes = [2, 128], strides = [1, 1]} : vector<2x512xf32> to vector<2x128xf32>
    %396 = arith.negf %395 : vector<2x128xf32>
    %397 = math.exp %396 : vector<2x128xf32>
    %cst_85 = arith.constant 1.000000e+00 : f32
    %398 = vector.broadcast %cst_85 : f32 to vector<2x128xf32>
    %399 = arith.addf %398, %397 : vector<2x128xf32>
    %400 = arith.divf %398, %399 : vector<2x128xf32>
    %401 = vector.extract_strided_slice %388 {offsets = [0, 256], sizes = [2, 128], strides = [1, 1]} : vector<2x512xf32> to vector<2x128xf32>
    %402 = math.tanh %401 : vector<2x128xf32>
    %403 = vector.extract_strided_slice %388 {offsets = [0, 384], sizes = [2, 128], strides = [1, 1]} : vector<2x512xf32> to vector<2x128xf32>
    %404 = arith.negf %403 : vector<2x128xf32>
    %405 = math.exp %404 : vector<2x128xf32>
    %cst_86 = arith.constant 1.000000e+00 : f32
    %406 = vector.broadcast %cst_86 : f32 to vector<2x128xf32>
    %407 = arith.addf %406, %405 : vector<2x128xf32>
    %408 = arith.divf %406, %407 : vector<2x128xf32>
    %409 = arith.mulf %400, %348 : vector<2x128xf32>
    %410 = arith.mulf %394, %402 : vector<2x128xf32>
    %411 = arith.addf %409, %410 : vector<2x128xf32>
    %412 = math.tanh %411 : vector<2x128xf32>
    %413 = arith.mulf %408, %412 : vector<2x128xf32>
    %414 = tpu.concatenate %413, %379 in 1 : vector<2x128xf32>, vector<2x128xf32> -> vector<2x256xf32>
    %cst_87 = arith.constant dense<0.000000e+00> : vector<2x512xf32>
    %415 = tpu.matmul %414, %1, %cst_87 {dimension_numbers = #tpu.dot_dimension_numbers<[1], [0], [0], [1], [0, 0, 1, 1], [], []>} : vector<2x256xf32>, vector<256x512xf32>, vector<2x512xf32> -> vector<2x512xf32>
    %416 = vector.broadcast %2 : vector<1x512xf32> to vector<2x512xf32>
    %417 = arith.addf %415, %416 : vector<2x512xf32>
    %418 = vector.extract_strided_slice %417 {offsets = [0, 0], sizes = [2, 128], strides = [1, 1]} : vector<2x512xf32> to vector<2x128xf32>
    %419 = arith.negf %418 : vector<2x128xf32>
    %420 = math.exp %419 : vector<2x128xf32>
    %cst_88 = arith.constant 1.000000e+00 : f32
    %421 = vector.broadcast %cst_88 : f32 to vector<2x128xf32>
    %422 = arith.addf %421, %420 : vector<2x128xf32>
    %423 = arith.divf %421, %422 : vector<2x128xf32>
    %424 = vector.extract_strided_slice %417 {offsets = [0, 128], sizes = [2, 128], strides = [1, 1]} : vector<2x512xf32> to vector<2x128xf32>
    %425 = arith.negf %424 : vector<2x128xf32>
    %426 = math.exp %425 : vector<2x128xf32>
    %cst_89 = arith.constant 1.000000e+00 : f32
    %427 = vector.broadcast %cst_89 : f32 to vector<2x128xf32>
    %428 = arith.addf %427, %426 : vector<2x128xf32>
    %429 = arith.divf %427, %428 : vector<2x128xf32>
    %430 = vector.extract_strided_slice %417 {offsets = [0, 256], sizes = [2, 128], strides = [1, 1]} : vector<2x512xf32> to vector<2x128xf32>
    %431 = math.tanh %430 : vector<2x128xf32>
    %432 = vector.extract_strided_slice %417 {offsets = [0, 384], sizes = [2, 128], strides = [1, 1]} : vector<2x512xf32> to vector<2x128xf32>
    %433 = arith.negf %432 : vector<2x128xf32>
    %434 = math.exp %433 : vector<2x128xf32>
    %cst_90 = arith.constant 1.000000e+00 : f32
    %435 = vector.broadcast %cst_90 : f32 to vector<2x128xf32>
    %436 = arith.addf %435, %434 : vector<2x128xf32>
    %437 = arith.divf %435, %436 : vector<2x128xf32>
    %438 = arith.mulf %429, %377 : vector<2x128xf32>
    %439 = arith.mulf %423, %431 : vector<2x128xf32>
    %440 = arith.addf %438, %439 : vector<2x128xf32>
    %441 = math.tanh %440 : vector<2x128xf32>
    %442 = arith.mulf %437, %441 : vector<2x128xf32>
    %443 = arith.index_cast %c6_i32 : i32 to index
    %c0_91 = arith.constant 0 : index
    %c0_92 = arith.constant 0 : index
    %444 = vector.load %arg9[%443, %c0_91, %c0_92] : memref<12x2x128xf32, #tpu.memory_space<vmem>>, vector<1x2x128xf32>
    %445 = vector.shape_cast %444 : vector<1x2x128xf32> to vector<2x128xf32>
    %446 = vector.shape_cast %442 : vector<2x128xf32> to vector<1x2x128xf32>
    tpu.vector_store %arg9[%443, %c0_91, %c0_92], %446 {strides = array<i32>} : memref<12x2x128xf32, #tpu.memory_space<vmem>>, vector<1x2x128xf32>,
    %c7_i32 = arith.constant 7 : i32
    %447 = arith.index_cast %c7_i32 : i32 to index
    %c0_93 = arith.constant 0 : index
    %c0_94 = arith.constant 0 : index
    %448 = vector.load %arg0[%447, %c0_93, %c0_94] : memref<8x2x512xf32, #tpu.memory_space<vmem>>, vector<1x2x512xf32>
    %449 = vector.shape_cast %448 : vector<1x2x512xf32> to vector<2x512xf32>
    %cst_95 = arith.constant dense<0.000000e+00> : vector<2x512xf32>
    %450 = tpu.matmul %413, %0, %cst_95 {dimension_numbers = #tpu.dot_dimension_numbers<[1], [0], [0], [1], [0, 0, 1, 1], [], []>} : vector<2x128xf32>, vector<128x512xf32>, vector<2x512xf32> -> vector<2x512xf32>
    %451 = arith.addf %449, %450 : vector<2x512xf32>
    %452 = vector.extract_strided_slice %451 {offsets = [0, 0], sizes = [2, 128], strides = [1, 1]} : vector<2x512xf32> to vector<2x128xf32>
    %453 = arith.negf %452 : vector<2x128xf32>
    %454 = math.exp %453 : vector<2x128xf32>
    %cst_96 = arith.constant 1.000000e+00 : f32
    %455 = vector.broadcast %cst_96 : f32 to vector<2x128xf32>
    %456 = arith.addf %455, %454 : vector<2x128xf32>
    %457 = arith.divf %455, %456 : vector<2x128xf32>
    %458 = vector.extract_strided_slice %451 {offsets = [0, 128], sizes = [2, 128], strides = [1, 1]} : vector<2x512xf32> to vector<2x128xf32>
    %459 = arith.negf %458 : vector<2x128xf32>
    %460 = math.exp %459 : vector<2x128xf32>
    %cst_97 = arith.constant 1.000000e+00 : f32
    %461 = vector.broadcast %cst_97 : f32 to vector<2x128xf32>
    %462 = arith.addf %461, %460 : vector<2x128xf32>
    %463 = arith.divf %461, %462 : vector<2x128xf32>
    %464 = vector.extract_strided_slice %451 {offsets = [0, 256], sizes = [2, 128], strides = [1, 1]} : vector<2x512xf32> to vector<2x128xf32>
    %465 = math.tanh %464 : vector<2x128xf32>
    %466 = vector.extract_strided_slice %451 {offsets = [0, 384], sizes = [2, 128], strides = [1, 1]} : vector<2x512xf32> to vector<2x128xf32>
    %467 = arith.negf %466 : vector<2x128xf32>
    %468 = math.exp %467 : vector<2x128xf32>
    %cst_98 = arith.constant 1.000000e+00 : f32
    %469 = vector.broadcast %cst_98 : f32 to vector<2x128xf32>
    %470 = arith.addf %469, %468 : vector<2x128xf32>
    %471 = arith.divf %469, %470 : vector<2x128xf32>
    %472 = arith.mulf %463, %411 : vector<2x128xf32>
    %473 = arith.mulf %457, %465 : vector<2x128xf32>
    %474 = arith.addf %472, %473 : vector<2x128xf32>
    %475 = math.tanh %474 : vector<2x128xf32>
    %476 = arith.mulf %471, %475 : vector<2x128xf32>
    %477 = tpu.concatenate %476, %442 in 1 : vector<2x128xf32>, vector<2x128xf32> -> vector<2x256xf32>
    %cst_99 = arith.constant dense<0.000000e+00> : vector<2x512xf32>
    %478 = tpu.matmul %477, %1, %cst_99 {dimension_numbers = #tpu.dot_dimension_numbers<[1], [0], [0], [1], [0, 0, 1, 1], [], []>} : vector<2x256xf32>, vector<256x512xf32>, vector<2x512xf32> -> vector<2x512xf32>
    %479 = vector.broadcast %2 : vector<1x512xf32> to vector<2x512xf32>
    %480 = arith.addf %478, %479 : vector<2x512xf32>
    %481 = vector.extract_strided_slice %480 {offsets = [0, 0], sizes = [2, 128], strides = [1, 1]} : vector<2x512xf32> to vector<2x128xf32>
    %482 = arith.negf %481 : vector<2x128xf32>
    %483 = math.exp %482 : vector<2x128xf32>
    %cst_100 = arith.constant 1.000000e+00 : f32
    %484 = vector.broadcast %cst_100 : f32 to vector<2x128xf32>
    %485 = arith.addf %484, %483 : vector<2x128xf32>
    %486 = arith.divf %484, %485 : vector<2x128xf32>
    %487 = vector.extract_strided_slice %480 {offsets = [0, 128], sizes = [2, 128], strides = [1, 1]} : vector<2x512xf32> to vector<2x128xf32>
    %488 = arith.negf %487 : vector<2x128xf32>
    %489 = math.exp %488 : vector<2x128xf32>
    %cst_101 = arith.constant 1.000000e+00 : f32
    %490 = vector.broadcast %cst_101 : f32 to vector<2x128xf32>
    %491 = arith.addf %490, %489 : vector<2x128xf32>
    %492 = arith.divf %490, %491 : vector<2x128xf32>
    %493 = vector.extract_strided_slice %480 {offsets = [0, 256], sizes = [2, 128], strides = [1, 1]} : vector<2x512xf32> to vector<2x128xf32>
    %494 = math.tanh %493 : vector<2x128xf32>
    %495 = vector.extract_strided_slice %480 {offsets = [0, 384], sizes = [2, 128], strides = [1, 1]} : vector<2x512xf32> to vector<2x128xf32>
    %496 = arith.negf %495 : vector<2x128xf32>
    %497 = math.exp %496 : vector<2x128xf32>
    %cst_102 = arith.constant 1.000000e+00 : f32
    %498 = vector.broadcast %cst_102 : f32 to vector<2x128xf32>
    %499 = arith.addf %498, %497 : vector<2x128xf32>
    %500 = arith.divf %498, %499 : vector<2x128xf32>
    %501 = arith.mulf %492, %440 : vector<2x128xf32>
    %502 = arith.mulf %486, %494 : vector<2x128xf32>
    %503 = arith.addf %501, %502 : vector<2x128xf32>
    %504 = math.tanh %503 : vector<2x128xf32>
    %505 = arith.mulf %500, %504 : vector<2x128xf32>
    %506 = arith.index_cast %c7_i32 : i32 to index
    %c0_103 = arith.constant 0 : index
    %c0_104 = arith.constant 0 : index
    %507 = vector.load %arg9[%506, %c0_103, %c0_104] : memref<12x2x128xf32, #tpu.memory_space<vmem>>, vector<1x2x128xf32>
    %508 = vector.shape_cast %507 : vector<1x2x128xf32> to vector<2x128xf32>
    %509 = vector.shape_cast %505 : vector<2x128xf32> to vector<1x2x128xf32>
    tpu.vector_store %arg9[%506, %c0_103, %c0_104], %509 {strides = array<i32>} : memref<12x2x128xf32, #tpu.memory_space<vmem>>, vector<1x2x128xf32>,
    %c8_i32 = arith.constant 8 : i32
    %c0_i32_105 = arith.constant 0 : i32
    %510 = tpu.concatenate %505, %476 in 1 : vector<2x128xf32>, vector<2x128xf32> -> vector<2x256xf32>
    %cst_106 = arith.constant dense<0.000000e+00> : vector<2x512xf32>
    %511 = tpu.matmul %510, %3, %cst_106 {dimension_numbers = #tpu.dot_dimension_numbers<[1], [0], [0], [1], [0, 0, 1, 1], [], []>} : vector<2x256xf32>, vector<256x512xf32>, vector<2x512xf32> -> vector<2x512xf32>
    %512 = vector.broadcast %4 : vector<1x512xf32> to vector<2x512xf32>
    %513 = arith.addf %511, %512 : vector<2x512xf32>
    %514 = vector.extract_strided_slice %513 {offsets = [0, 0], sizes = [2, 128], strides = [1, 1]} : vector<2x512xf32> to vector<2x128xf32>
    %515 = arith.negf %514 : vector<2x128xf32>
    %516 = math.exp %515 : vector<2x128xf32>
    %cst_107 = arith.constant 1.000000e+00 : f32
    %517 = vector.broadcast %cst_107 : f32 to vector<2x128xf32>
    %518 = arith.addf %517, %516 : vector<2x128xf32>
    %519 = arith.divf %517, %518 : vector<2x128xf32>
    %520 = vector.extract_strided_slice %513 {offsets = [0, 128], sizes = [2, 128], strides = [1, 1]} : vector<2x512xf32> to vector<2x128xf32>
    %521 = arith.negf %520 : vector<2x128xf32>
    %522 = math.exp %521 : vector<2x128xf32>
    %cst_108 = arith.constant 1.000000e+00 : f32
    %523 = vector.broadcast %cst_108 : f32 to vector<2x128xf32>
    %524 = arith.addf %523, %522 : vector<2x128xf32>
    %525 = arith.divf %523, %524 : vector<2x128xf32>
    %526 = vector.extract_strided_slice %513 {offsets = [0, 256], sizes = [2, 128], strides = [1, 1]} : vector<2x512xf32> to vector<2x128xf32>
    %527 = math.tanh %526 : vector<2x128xf32>
    %528 = vector.extract_strided_slice %513 {offsets = [0, 384], sizes = [2, 128], strides = [1, 1]} : vector<2x512xf32> to vector<2x128xf32>
    %529 = arith.negf %528 : vector<2x128xf32>
    %530 = math.exp %529 : vector<2x128xf32>
    %cst_109 = arith.constant 1.000000e+00 : f32
    %531 = vector.broadcast %cst_109 : f32 to vector<2x128xf32>
    %532 = arith.addf %531, %530 : vector<2x128xf32>
    %533 = arith.divf %531, %532 : vector<2x128xf32>
    %534 = arith.mulf %525, %474 : vector<2x128xf32>
    %535 = arith.mulf %519, %527 : vector<2x128xf32>
    %536 = arith.addf %534, %535 : vector<2x128xf32>
    %537 = math.tanh %536 : vector<2x128xf32>
    %538 = arith.mulf %533, %537 : vector<2x128xf32>
    %539 = tpu.concatenate %538, %505 in 1 : vector<2x128xf32>, vector<2x128xf32> -> vector<2x256xf32>
    %cst_110 = arith.constant dense<0.000000e+00> : vector<2x512xf32>
    %540 = tpu.matmul %539, %1, %cst_110 {dimension_numbers = #tpu.dot_dimension_numbers<[1], [0], [0], [1], [0, 0, 1, 1], [], []>} : vector<2x256xf32>, vector<256x512xf32>, vector<2x512xf32> -> vector<2x512xf32>
    %541 = vector.broadcast %2 : vector<1x512xf32> to vector<2x512xf32>
    %542 = arith.addf %540, %541 : vector<2x512xf32>
    %543 = vector.extract_strided_slice %542 {offsets = [0, 0], sizes = [2, 128], strides = [1, 1]} : vector<2x512xf32> to vector<2x128xf32>
    %544 = arith.negf %543 : vector<2x128xf32>
    %545 = math.exp %544 : vector<2x128xf32>
    %cst_111 = arith.constant 1.000000e+00 : f32
    %546 = vector.broadcast %cst_111 : f32 to vector<2x128xf32>
    %547 = arith.addf %546, %545 : vector<2x128xf32>
    %548 = arith.divf %546, %547 : vector<2x128xf32>
    %549 = vector.extract_strided_slice %542 {offsets = [0, 128], sizes = [2, 128], strides = [1, 1]} : vector<2x512xf32> to vector<2x128xf32>
    %550 = arith.negf %549 : vector<2x128xf32>
    %551 = math.exp %550 : vector<2x128xf32>
    %cst_112 = arith.constant 1.000000e+00 : f32
    %552 = vector.broadcast %cst_112 : f32 to vector<2x128xf32>
    %553 = arith.addf %552, %551 : vector<2x128xf32>
    %554 = arith.divf %552, %553 : vector<2x128xf32>
    %555 = vector.extract_strided_slice %542 {offsets = [0, 256], sizes = [2, 128], strides = [1, 1]} : vector<2x512xf32> to vector<2x128xf32>
    %556 = math.tanh %555 : vector<2x128xf32>
    %557 = vector.extract_strided_slice %542 {offsets = [0, 384], sizes = [2, 128], strides = [1, 1]} : vector<2x512xf32> to vector<2x128xf32>
    %558 = arith.negf %557 : vector<2x128xf32>
    %559 = math.exp %558 : vector<2x128xf32>
    %cst_113 = arith.constant 1.000000e+00 : f32
    %560 = vector.broadcast %cst_113 : f32 to vector<2x128xf32>
    %561 = arith.addf %560, %559 : vector<2x128xf32>
    %562 = arith.divf %560, %561 : vector<2x128xf32>
    %563 = arith.mulf %554, %503 : vector<2x128xf32>
    %564 = arith.mulf %548, %556 : vector<2x128xf32>
    %565 = arith.addf %563, %564 : vector<2x128xf32>
    %566 = math.tanh %565 : vector<2x128xf32>
    %567 = arith.mulf %562, %566 : vector<2x128xf32>
    %c8_i32_114 = arith.constant 8 : i32
    %568 = arith.addi %c8_i32_114, %c0_i32_105 : i32
    %569 = arith.index_cast %568 : i32 to index
    %c0_115 = arith.constant 0 : index
    %c0_116 = arith.constant 0 : index
    %570 = vector.load %arg9[%569, %c0_115, %c0_116] : memref<12x2x128xf32, #tpu.memory_space<vmem>>, vector<1x2x128xf32>
    %571 = vector.shape_cast %570 : vector<1x2x128xf32> to vector<2x128xf32>
    %572 = vector.shape_cast %567 : vector<2x128xf32> to vector<1x2x128xf32>
    tpu.vector_store %arg9[%569, %c0_115, %c0_116], %572 {strides = array<i32>} : memref<12x2x128xf32, #tpu.memory_space<vmem>>, vector<1x2x128xf32>,
    %c1_i32_117 = arith.constant 1 : i32
    %573 = tpu.concatenate %567, %538 in 1 : vector<2x128xf32>, vector<2x128xf32> -> vector<2x256xf32>
    %cst_118 = arith.constant dense<0.000000e+00> : vector<2x512xf32>
    %574 = tpu.matmul %573, %3, %cst_118 {dimension_numbers = #tpu.dot_dimension_numbers<[1], [0], [0], [1], [0, 0, 1, 1], [], []>} : vector<2x256xf32>, vector<256x512xf32>, vector<2x512xf32> -> vector<2x512xf32>
    %575 = vector.broadcast %4 : vector<1x512xf32> to vector<2x512xf32>
    %576 = arith.addf %574, %575 : vector<2x512xf32>
    %577 = vector.extract_strided_slice %576 {offsets = [0, 0], sizes = [2, 128], strides = [1, 1]} : vector<2x512xf32> to vector<2x128xf32>
    %578 = arith.negf %577 : vector<2x128xf32>
    %579 = math.exp %578 : vector<2x128xf32>
    %cst_119 = arith.constant 1.000000e+00 : f32
    %580 = vector.broadcast %cst_119 : f32 to vector<2x128xf32>
    %581 = arith.addf %580, %579 : vector<2x128xf32>
    %582 = arith.divf %580, %581 : vector<2x128xf32>
    %583 = vector.extract_strided_slice %576 {offsets = [0, 128], sizes = [2, 128], strides = [1, 1]} : vector<2x512xf32> to vector<2x128xf32>
    %584 = arith.negf %583 : vector<2x128xf32>
    %585 = math.exp %584 : vector<2x128xf32>
    %cst_120 = arith.constant 1.000000e+00 : f32
    %586 = vector.broadcast %cst_120 : f32 to vector<2x128xf32>
    %587 = arith.addf %586, %585 : vector<2x128xf32>
    %588 = arith.divf %586, %587 : vector<2x128xf32>
    %589 = vector.extract_strided_slice %576 {offsets = [0, 256], sizes = [2, 128], strides = [1, 1]} : vector<2x512xf32> to vector<2x128xf32>
    %590 = math.tanh %589 : vector<2x128xf32>
    %591 = vector.extract_strided_slice %576 {offsets = [0, 384], sizes = [2, 128], strides = [1, 1]} : vector<2x512xf32> to vector<2x128xf32>
    %592 = arith.negf %591 : vector<2x128xf32>
    %593 = math.exp %592 : vector<2x128xf32>
    %cst_121 = arith.constant 1.000000e+00 : f32
    %594 = vector.broadcast %cst_121 : f32 to vector<2x128xf32>
    %595 = arith.addf %594, %593 : vector<2x128xf32>
    %596 = arith.divf %594, %595 : vector<2x128xf32>
    %597 = arith.mulf %588, %536 : vector<2x128xf32>
    %598 = arith.mulf %582, %590 : vector<2x128xf32>
    %599 = arith.addf %597, %598 : vector<2x128xf32>
    %600 = math.tanh %599 : vector<2x128xf32>
    %601 = arith.mulf %596, %600 : vector<2x128xf32>
    %602 = tpu.concatenate %601, %567 in 1 : vector<2x128xf32>, vector<2x128xf32> -> vector<2x256xf32>
    %cst_122 = arith.constant dense<0.000000e+00> : vector<2x512xf32>
    %603 = tpu.matmul %602, %1, %cst_122 {dimension_numbers = #tpu.dot_dimension_numbers<[1], [0], [0], [1], [0, 0, 1, 1], [], []>} : vector<2x256xf32>, vector<256x512xf32>, vector<2x512xf32> -> vector<2x512xf32>
    %604 = vector.broadcast %2 : vector<1x512xf32> to vector<2x512xf32>
    %605 = arith.addf %603, %604 : vector<2x512xf32>
    %606 = vector.extract_strided_slice %605 {offsets = [0, 0], sizes = [2, 128], strides = [1, 1]} : vector<2x512xf32> to vector<2x128xf32>
    %607 = arith.negf %606 : vector<2x128xf32>
    %608 = math.exp %607 : vector<2x128xf32>
    %cst_123 = arith.constant 1.000000e+00 : f32
    %609 = vector.broadcast %cst_123 : f32 to vector<2x128xf32>
    %610 = arith.addf %609, %608 : vector<2x128xf32>
    %611 = arith.divf %609, %610 : vector<2x128xf32>
    %612 = vector.extract_strided_slice %605 {offsets = [0, 128], sizes = [2, 128], strides = [1, 1]} : vector<2x512xf32> to vector<2x128xf32>
    %613 = arith.negf %612 : vector<2x128xf32>
    %614 = math.exp %613 : vector<2x128xf32>
    %cst_124 = arith.constant 1.000000e+00 : f32
    %615 = vector.broadcast %cst_124 : f32 to vector<2x128xf32>
    %616 = arith.addf %615, %614 : vector<2x128xf32>
    %617 = arith.divf %615, %616 : vector<2x128xf32>
    %618 = vector.extract_strided_slice %605 {offsets = [0, 256], sizes = [2, 128], strides = [1, 1]} : vector<2x512xf32> to vector<2x128xf32>
    %619 = math.tanh %618 : vector<2x128xf32>
    %620 = vector.extract_strided_slice %605 {offsets = [0, 384], sizes = [2, 128], strides = [1, 1]} : vector<2x512xf32> to vector<2x128xf32>
    %621 = arith.negf %620 : vector<2x128xf32>
    %622 = math.exp %621 : vector<2x128xf32>
    %cst_125 = arith.constant 1.000000e+00 : f32
    %623 = vector.broadcast %cst_125 : f32 to vector<2x128xf32>
    %624 = arith.addf %623, %622 : vector<2x128xf32>
    %625 = arith.divf %623, %624 : vector<2x128xf32>
    %626 = arith.mulf %617, %565 : vector<2x128xf32>
    %627 = arith.mulf %611, %619 : vector<2x128xf32>
    %628 = arith.addf %626, %627 : vector<2x128xf32>
    %629 = math.tanh %628 : vector<2x128xf32>
    %630 = arith.mulf %625, %629 : vector<2x128xf32>
    %c8_i32_126 = arith.constant 8 : i32
    %631 = arith.addi %c8_i32_126, %c1_i32_117 : i32
    %632 = arith.index_cast %631 : i32 to index
    %c0_127 = arith.constant 0 : index
    %c0_128 = arith.constant 0 : index
    %633 = vector.load %arg9[%632, %c0_127, %c0_128] : memref<12x2x128xf32, #tpu.memory_space<vmem>>, vector<1x2x128xf32>
    %634 = vector.shape_cast %633 : vector<1x2x128xf32> to vector<2x128xf32>
    %635 = vector.shape_cast %630 : vector<2x128xf32> to vector<1x2x128xf32>
    tpu.vector_store %arg9[%632, %c0_127, %c0_128], %635 {strides = array<i32>} : memref<12x2x128xf32, #tpu.memory_space<vmem>>, vector<1x2x128xf32>,
    %c2_i32_129 = arith.constant 2 : i32
    %636 = tpu.concatenate %630, %601 in 1 : vector<2x128xf32>, vector<2x128xf32> -> vector<2x256xf32>
    %cst_130 = arith.constant dense<0.000000e+00> : vector<2x512xf32>
    %637 = tpu.matmul %636, %3, %cst_130 {dimension_numbers = #tpu.dot_dimension_numbers<[1], [0], [0], [1], [0, 0, 1, 1], [], []>} : vector<2x256xf32>, vector<256x512xf32>, vector<2x512xf32> -> vector<2x512xf32>
    %638 = vector.broadcast %4 : vector<1x512xf32> to vector<2x512xf32>
    %639 = arith.addf %637, %638 : vector<2x512xf32>
    %640 = vector.extract_strided_slice %639 {offsets = [0, 0], sizes = [2, 128], strides = [1, 1]} : vector<2x512xf32> to vector<2x128xf32>
    %641 = arith.negf %640 : vector<2x128xf32>
    %642 = math.exp %641 : vector<2x128xf32>
    %cst_131 = arith.constant 1.000000e+00 : f32
    %643 = vector.broadcast %cst_131 : f32 to vector<2x128xf32>
    %644 = arith.addf %643, %642 : vector<2x128xf32>
    %645 = arith.divf %643, %644 : vector<2x128xf32>
    %646 = vector.extract_strided_slice %639 {offsets = [0, 128], sizes = [2, 128], strides = [1, 1]} : vector<2x512xf32> to vector<2x128xf32>
    %647 = arith.negf %646 : vector<2x128xf32>
    %648 = math.exp %647 : vector<2x128xf32>
    %cst_132 = arith.constant 1.000000e+00 : f32
    %649 = vector.broadcast %cst_132 : f32 to vector<2x128xf32>
    %650 = arith.addf %649, %648 : vector<2x128xf32>
    %651 = arith.divf %649, %650 : vector<2x128xf32>
    %652 = vector.extract_strided_slice %639 {offsets = [0, 256], sizes = [2, 128], strides = [1, 1]} : vector<2x512xf32> to vector<2x128xf32>
    %653 = math.tanh %652 : vector<2x128xf32>
    %654 = vector.extract_strided_slice %639 {offsets = [0, 384], sizes = [2, 128], strides = [1, 1]} : vector<2x512xf32> to vector<2x128xf32>
    %655 = arith.negf %654 : vector<2x128xf32>
    %656 = math.exp %655 : vector<2x128xf32>
    %cst_133 = arith.constant 1.000000e+00 : f32
    %657 = vector.broadcast %cst_133 : f32 to vector<2x128xf32>
    %658 = arith.addf %657, %656 : vector<2x128xf32>
    %659 = arith.divf %657, %658 : vector<2x128xf32>
    %660 = arith.mulf %651, %599 : vector<2x128xf32>
    %661 = arith.mulf %645, %653 : vector<2x128xf32>
    %662 = arith.addf %660, %661 : vector<2x128xf32>
    %663 = math.tanh %662 : vector<2x128xf32>
    %664 = arith.mulf %659, %663 : vector<2x128xf32>
    %665 = tpu.concatenate %664, %630 in 1 : vector<2x128xf32>, vector<2x128xf32> -> vector<2x256xf32>
    %cst_134 = arith.constant dense<0.000000e+00> : vector<2x512xf32>
    %666 = tpu.matmul %665, %1, %cst_134 {dimension_numbers = #tpu.dot_dimension_numbers<[1], [0], [0], [1], [0, 0, 1, 1], [], []>} : vector<2x256xf32>, vector<256x512xf32>, vector<2x512xf32> -> vector<2x512xf32>
    %667 = vector.broadcast %2 : vector<1x512xf32> to vector<2x512xf32>
    %668 = arith.addf %666, %667 : vector<2x512xf32>
    %669 = vector.extract_strided_slice %668 {offsets = [0, 0], sizes = [2, 128], strides = [1, 1]} : vector<2x512xf32> to vector<2x128xf32>
    %670 = arith.negf %669 : vector<2x128xf32>
    %671 = math.exp %670 : vector<2x128xf32>
    %cst_135 = arith.constant 1.000000e+00 : f32
    %672 = vector.broadcast %cst_135 : f32 to vector<2x128xf32>
    %673 = arith.addf %672, %671 : vector<2x128xf32>
    %674 = arith.divf %672, %673 : vector<2x128xf32>
    %675 = vector.extract_strided_slice %668 {offsets = [0, 128], sizes = [2, 128], strides = [1, 1]} : vector<2x512xf32> to vector<2x128xf32>
    %676 = arith.negf %675 : vector<2x128xf32>
    %677 = math.exp %676 : vector<2x128xf32>
    %cst_136 = arith.constant 1.000000e+00 : f32
    %678 = vector.broadcast %cst_136 : f32 to vector<2x128xf32>
    %679 = arith.addf %678, %677 : vector<2x128xf32>
    %680 = arith.divf %678, %679 : vector<2x128xf32>
    %681 = vector.extract_strided_slice %668 {offsets = [0, 256], sizes = [2, 128], strides = [1, 1]} : vector<2x512xf32> to vector<2x128xf32>
    %682 = math.tanh %681 : vector<2x128xf32>
    %683 = vector.extract_strided_slice %668 {offsets = [0, 384], sizes = [2, 128], strides = [1, 1]} : vector<2x512xf32> to vector<2x128xf32>
    %684 = arith.negf %683 : vector<2x128xf32>
    %685 = math.exp %684 : vector<2x128xf32>
    %cst_137 = arith.constant 1.000000e+00 : f32
    %686 = vector.broadcast %cst_137 : f32 to vector<2x128xf32>
    %687 = arith.addf %686, %685 : vector<2x128xf32>
    %688 = arith.divf %686, %687 : vector<2x128xf32>
    %689 = arith.mulf %680, %628 : vector<2x128xf32>
    %690 = arith.mulf %674, %682 : vector<2x128xf32>
    %691 = arith.addf %689, %690 : vector<2x128xf32>
    %692 = math.tanh %691 : vector<2x128xf32>
    %693 = arith.mulf %688, %692 : vector<2x128xf32>
    %c8_i32_138 = arith.constant 8 : i32
    %694 = arith.addi %c8_i32_138, %c2_i32_129 : i32
    %695 = arith.index_cast %694 : i32 to index
    %c0_139 = arith.constant 0 : index
    %c0_140 = arith.constant 0 : index
    %696 = vector.load %arg9[%695, %c0_139, %c0_140] : memref<12x2x128xf32, #tpu.memory_space<vmem>>, vector<1x2x128xf32>
    %697 = vector.shape_cast %696 : vector<1x2x128xf32> to vector<2x128xf32>
    %698 = vector.shape_cast %693 : vector<2x128xf32> to vector<1x2x128xf32>
    tpu.vector_store %arg9[%695, %c0_139, %c0_140], %698 {strides = array<i32>} : memref<12x2x128xf32, #tpu.memory_space<vmem>>, vector<1x2x128xf32>,
    %c3_i32_141 = arith.constant 3 : i32
    %699 = tpu.concatenate %693, %664 in 1 : vector<2x128xf32>, vector<2x128xf32> -> vector<2x256xf32>
    %cst_142 = arith.constant dense<0.000000e+00> : vector<2x512xf32>
    %700 = tpu.matmul %699, %3, %cst_142 {dimension_numbers = #tpu.dot_dimension_numbers<[1], [0], [0], [1], [0, 0, 1, 1], [], []>} : vector<2x256xf32>, vector<256x512xf32>, vector<2x512xf32> -> vector<2x512xf32>
    %701 = vector.broadcast %4 : vector<1x512xf32> to vector<2x512xf32>
    %702 = arith.addf %700, %701 : vector<2x512xf32>
    %703 = vector.extract_strided_slice %702 {offsets = [0, 0], sizes = [2, 128], strides = [1, 1]} : vector<2x512xf32> to vector<2x128xf32>
    %704 = arith.negf %703 : vector<2x128xf32>
    %705 = math.exp %704 : vector<2x128xf32>
    %cst_143 = arith.constant 1.000000e+00 : f32
    %706 = vector.broadcast %cst_143 : f32 to vector<2x128xf32>
    %707 = arith.addf %706, %705 : vector<2x128xf32>
    %708 = arith.divf %706, %707 : vector<2x128xf32>
    %709 = vector.extract_strided_slice %702 {offsets = [0, 128], sizes = [2, 128], strides = [1, 1]} : vector<2x512xf32> to vector<2x128xf32>
    %710 = arith.negf %709 : vector<2x128xf32>
    %711 = math.exp %710 : vector<2x128xf32>
    %cst_144 = arith.constant 1.000000e+00 : f32
    %712 = vector.broadcast %cst_144 : f32 to vector<2x128xf32>
    %713 = arith.addf %712, %711 : vector<2x128xf32>
    %714 = arith.divf %712, %713 : vector<2x128xf32>
    %715 = vector.extract_strided_slice %702 {offsets = [0, 256], sizes = [2, 128], strides = [1, 1]} : vector<2x512xf32> to vector<2x128xf32>
    %716 = math.tanh %715 : vector<2x128xf32>
    %717 = vector.extract_strided_slice %702 {offsets = [0, 384], sizes = [2, 128], strides = [1, 1]} : vector<2x512xf32> to vector<2x128xf32>
    %718 = arith.negf %717 : vector<2x128xf32>
    %719 = math.exp %718 : vector<2x128xf32>
    %cst_145 = arith.constant 1.000000e+00 : f32
    %720 = vector.broadcast %cst_145 : f32 to vector<2x128xf32>
    %721 = arith.addf %720, %719 : vector<2x128xf32>
    %722 = arith.divf %720, %721 : vector<2x128xf32>
    %723 = arith.mulf %714, %662 : vector<2x128xf32>
    %724 = arith.mulf %708, %716 : vector<2x128xf32>
    %725 = arith.addf %723, %724 : vector<2x128xf32>
    %726 = math.tanh %725 : vector<2x128xf32>
    %727 = arith.mulf %722, %726 : vector<2x128xf32>
    %728 = tpu.concatenate %727, %693 in 1 : vector<2x128xf32>, vector<2x128xf32> -> vector<2x256xf32>
    %cst_146 = arith.constant dense<0.000000e+00> : vector<2x512xf32>
    %729 = tpu.matmul %728, %1, %cst_146 {dimension_numbers = #tpu.dot_dimension_numbers<[1], [0], [0], [1], [0, 0, 1, 1], [], []>} : vector<2x256xf32>, vector<256x512xf32>, vector<2x512xf32> -> vector<2x512xf32>
    %730 = vector.broadcast %2 : vector<1x512xf32> to vector<2x512xf32>
    %731 = arith.addf %729, %730 : vector<2x512xf32>
    %732 = vector.extract_strided_slice %731 {offsets = [0, 0], sizes = [2, 128], strides = [1, 1]} : vector<2x512xf32> to vector<2x128xf32>
    %733 = arith.negf %732 : vector<2x128xf32>
    %734 = math.exp %733 : vector<2x128xf32>
    %cst_147 = arith.constant 1.000000e+00 : f32
    %735 = vector.broadcast %cst_147 : f32 to vector<2x128xf32>
    %736 = arith.addf %735, %734 : vector<2x128xf32>
    %737 = arith.divf %735, %736 : vector<2x128xf32>
    %738 = vector.extract_strided_slice %731 {offsets = [0, 128], sizes = [2, 128], strides = [1, 1]} : vector<2x512xf32> to vector<2x128xf32>
    %739 = arith.negf %738 : vector<2x128xf32>
    %740 = math.exp %739 : vector<2x128xf32>
    %cst_148 = arith.constant 1.000000e+00 : f32
    %741 = vector.broadcast %cst_148 : f32 to vector<2x128xf32>
    %742 = arith.addf %741, %740 : vector<2x128xf32>
    %743 = arith.divf %741, %742 : vector<2x128xf32>
    %744 = vector.extract_strided_slice %731 {offsets = [0, 256], sizes = [2, 128], strides = [1, 1]} : vector<2x512xf32> to vector<2x128xf32>
    %745 = math.tanh %744 : vector<2x128xf32>
    %746 = vector.extract_strided_slice %731 {offsets = [0, 384], sizes = [2, 128], strides = [1, 1]} : vector<2x512xf32> to vector<2x128xf32>
    %747 = arith.negf %746 : vector<2x128xf32>
    %748 = math.exp %747 : vector<2x128xf32>
    %cst_149 = arith.constant 1.000000e+00 : f32
    %749 = vector.broadcast %cst_149 : f32 to vector<2x128xf32>
    %750 = arith.addf %749, %748 : vector<2x128xf32>
    %751 = arith.divf %749, %750 : vector<2x128xf32>
    %752 = arith.mulf %743, %691 : vector<2x128xf32>
    %753 = arith.mulf %737, %745 : vector<2x128xf32>
    %754 = arith.addf %752, %753 : vector<2x128xf32>
    %755 = math.tanh %754 : vector<2x128xf32>
    %756 = arith.mulf %751, %755 : vector<2x128xf32>
    %c8_i32_150 = arith.constant 8 : i32
    %757 = arith.addi %c8_i32_150, %c3_i32_141 : i32
    %758 = arith.index_cast %757 : i32 to index
    %c0_151 = arith.constant 0 : index
    %c0_152 = arith.constant 0 : index
    %759 = vector.load %arg9[%758, %c0_151, %c0_152] : memref<12x2x128xf32, #tpu.memory_space<vmem>>, vector<1x2x128xf32>
    %760 = vector.shape_cast %759 : vector<1x2x128xf32> to vector<2x128xf32>
    %761 = vector.shape_cast %756 : vector<2x128xf32> to vector<1x2x128xf32>
    tpu.vector_store %arg9[%758, %c0_151, %c0_152], %761 {strides = array<i32>} : memref<12x2x128xf32, #tpu.memory_space<vmem>>, vector<1x2x128xf32>,
    %c4_i32_153 = arith.constant 4 : i32
    %c0_154 = arith.constant 0 : index
    %c0_155 = arith.constant 0 : index
    %762 = vector.load %arg6[%c0_154, %c0_155] : memref<1x128xf32, #tpu.memory_space<vmem>>, vector<1x128xf32>
    %763 = vector.shape_cast %762 : vector<1x128xf32> to vector<1x1x128xf32>
    %c0_156 = arith.constant 0 : index
    %c0_157 = arith.constant 0 : index
    %c0_158 = arith.constant 0 : index
    %764 = vector.load %arg9[%c0_156, %c0_157, %c0_158] : memref<12x2x128xf32, #tpu.memory_space<vmem>>, vector<12x2x128xf32>
    %765 = vector.broadcast %763 : vector<1x1x128xf32> to vector<12x2x128xf32>
    %766 = arith.mulf %764, %765 : vector<12x2x128xf32>
    %cst_159 = arith.constant dense<0.000000e+00> : vector<12x2xf32>
    %767 = vector.multi_reduction <add>, %766, %cst_159 [2] : vector<12x2x128xf32> to vector<12x2xf32>
    %c0_160 = arith.constant 0 : index
    %c0_161 = arith.constant 0 : index
    %768 = vector.load %arg7[%c0_160, %c0_161] : memref<1x1xf32, #tpu.memory_space<vmem>>, vector<1x1xf32>
    %769 = vector.broadcast %768 : vector<1x1xf32> to vector<12x2xf32>
    %770 = arith.addf %767, %769 : vector<12x2xf32>
    %c0_162 = arith.constant 0 : index
    %c0_163 = arith.constant 0 : index
    %771 = vector.load %arg8[%c0_162, %c0_163] : memref<12x2xf32, #tpu.memory_space<vmem>>, vector<12x2xf32>
    tpu.vector_store %arg8[%c0_162, %c0_163], %770 {strides = array<i32>} : memref<12x2xf32, #tpu.memory_space<vmem>>, vector<12x2xf32>,
    return
  }
}

</mosaic_0001>

<llo_original>
// kernel: tpu_custom_call.1
$region0: #{tpu_custom_call.1}
  #allocation0 [shape = 'u32[]', space=smem, size = 0x4, offset = 0x4, fixed_abs, tag = 'smem constant byte address 0x4 - core index']
  #allocation1 [shape = 'u32[144,128]{1,0:T(1,128)}', space=vmem, size = 0x12000, scoped, tag = 'internal scratch']
  #allocation2 [shape = 'f32[12,2,128]{2,1,0:T(2,128)}', space=vmem, size = 0x3000, scoped, tag = 'scratch operand']
  #allocation3 [shape = 'f32[1,1]{1,0:T(1,128)S(1)}', space=vmem, size = 0x200, scoped, tag = 'scoped memory for tpu_custom_call.1']
  %s0 = inlined_call_operand.hbm [shape: f32[8,2,512], index: 0, kind: input, shape index: {}]
  %s1 = inlined_call_operand.hbm [shape: f32[128,512], index: 1, kind: input, shape index: {}]
  %s2 = inlined_call_operand.hbm [shape: f32[256,512], index: 2, kind: input, shape index: {}]
  %s3 = inlined_call_operand.vmem [shape: f32[1,512], index: 3, kind: input, shape index: {}]
  %s4 = inlined_call_operand.hbm [shape: f32[256,512], index: 4, kind: input, shape index: {}]
  %s5 = inlined_call_operand.vmem [shape: f32[1,512], index: 5, kind: input, shape index: {}]
  %s6 = inlined_call_operand.vmem [shape: f32[1,128], index: 6, kind: input, shape index: {}]
  %s7 = inlined_call_operand.<no memory space> [shape: f32[1,1], index: 7, kind: input, shape index: {}]
  %s8 = inlined_call_operand.vmem [shape: f32[12,2], index: 8, kind: output, shape index: {}]
  %s9 = sld [smem:[#allocation0]]
  $region58: #{tpu_custom_call.1} parent=0
    _
  %s11 = ssub.s32 1, %s9
  %s12 = scalar_select 0, %s11, %s9
  %v13 = vstv %s7
  %14 = vst [vmem:[#allocation3] sm:$0x1] %v13
  $region1: #{tpu_custom_call.1} parent=0
    #allocation4 [shape = 'u8[32768]{0}', space=vmem, size = 0x8000, scoped, tag = 'input window, operand 0, single buffered']
    #allocation5 [shape = 's32[1]{0}', space=sflag, size = 0x4, scoped, tag = 'scoped memory for tpu_custom_call.1']
    #allocation6 [shape = 'u8[262144]{0}', space=vmem, size = 0x40000, scoped, tag = 'input window, operand 1, single buffered']
    #allocation7 [shape = 's32[1]{0}', space=sflag, size = 0x4, scoped, tag = 'scoped memory for tpu_custom_call.1']
    #allocation8 [shape = 'u8[524288]{0}', space=vmem, size = 0x80000, scoped, tag = 'input window, operand 2, single buffered']
    #allocation9 [shape = 'u8[524288]{0}', space=vmem, size = 0x80000, scoped, tag = 'input window, operand 4, single buffered']
    #allocation10 [shape = 's32[1]{0}', space=sflag, size = 0x4, scoped, tag = 'scoped memory for tpu_custom_call.1']
    %15 = vsyncpa [#allocation5], 0
    %16 = vsyncpa [#allocation7], 0
    %17 = vsyncpa [#allocation10], 0
    // Predicated region
    $region2: #{tpu_custom_call.1} parent=1 // pred_check
      _
    $region3: #{tpu_custom_call.1} parent=1 // pred_check_branch
      %19 = sbr.rel (0) target = $region5
    $region4: #{tpu_custom_call.1} parent=1 // pred_region
      %s21 = ssub.s32 1024, 1024
      %22 = vsyncadd [#allocation5], %s21
      %s23 = sshll.u32 [#allocation4], 4
      %s24 = int_to_ptr.vmem [resolvable:$true] %s23
      %29 = dma.hbm_to_vmem [thread:$0]  %s0, 1024, %s24, [#allocation5], 128, 128, 8
    $region5: #{tpu_custom_call.1} parent=1 // pred_fallthru
      _
    // Predicated region
    $region6: #{tpu_custom_call.1} parent=1 // pred_check
      _
    $region7: #{tpu_custom_call.1} parent=1 // pred_check_branch
      %31 = sbr.rel (0) target = $region9
    $region8: #{tpu_custom_call.1} parent=1 // pred_region
      %s33 = ssub.s32 8192, 8192
      %34 = vsyncadd [#allocation7], %s33
      %s35 = sshll.u32 [#allocation6], 4
      %s36 = int_to_ptr.vmem [resolvable:$true] %s35
      %41 = dma.hbm_to_vmem [thread:$0]  %s1, 8192, %s36, [#allocation7], 512, 512, 32
    $region9: #{tpu_custom_call.1} parent=1 // pred_fallthru
      _
    // Predicated region
    $region10: #{tpu_custom_call.1} parent=1 // pred_check
      _
    $region11: #{tpu_custom_call.1} parent=1 // pred_check_branch
      %43 = sbr.rel (0) target = $region13
    $region12: #{tpu_custom_call.1} parent=1 // pred_region
      %s45 = ssub.s32 16384, 16384
      %46 = vsyncadd [#allocation7], %s45
      %s47 = sshll.u32 [#allocation8], 4
      %s48 = int_to_ptr.vmem [resolvable:$true] %s47
      %53 = dma.hbm_to_vmem [thread:$0]  %s2, 16384, %s48, [#allocation7], 512, 512, 32
    $region13: #{tpu_custom_call.1} parent=1 // pred_fallthru
      _
    // Predicated region
    $region14: #{tpu_custom_call.1} parent=1 // pred_check
      _
    $region15: #{tpu_custom_call.1} parent=1 // pred_check_branch
      %55 = sbr.rel (0) target = $region17
    $region16: #{tpu_custom_call.1} parent=1 // pred_region
      _
    $region17: #{tpu_custom_call.1} parent=1 // pred_fallthru
      _
    // Predicated region
    $region18: #{tpu_custom_call.1} parent=1 // pred_check
      _
    $region19: #{tpu_custom_call.1} parent=1 // pred_check_branch
      %57 = sbr.rel (0) target = $region21
    $region20: #{tpu_custom_call.1} parent=1 // pred_region
      %s59 = ssub.s32 16384, 16384
      %60 = vsyncadd [#allocation10], %s59
      %s61 = sshll.u32 [#allocation9], 4
      %s62 = int_to_ptr.vmem [resolvable:$true] %s61
      %67 = dma.hbm_to_vmem [thread:$0]  %s4, 16384, %s62, [#allocation10], 512, 512, 32
    $region21: #{tpu_custom_call.1} parent=1 // pred_fallthru
      _
    // Predicated region
    $region22: #{tpu_custom_call.1} parent=1 // pred_check
      _
    $region23: #{tpu_custom_call.1} parent=1 // pred_check_branch
      %69 = sbr.rel (0) target = $region25
    $region24: #{tpu_custom_call.1} parent=1 // pred_region
      _
    $region25: #{tpu_custom_call.1} parent=1 // pred_fallthru
      _
    // Predicated region
    $region26: #{tpu_custom_call.1} parent=1 // pred_check
      _
    $region27: #{tpu_custom_call.1} parent=1 // pred_check_branch
      %71 = sbr.rel (0) target = $region29
    $region28: #{tpu_custom_call.1} parent=1 // pred_region
      _
    $region29: #{tpu_custom_call.1} parent=1 // pred_fallthru
      _
    // Predicated region
    $region30: #{tpu_custom_call.1} parent=1 // pred_check
      _
    $region31: #{tpu_custom_call.1} parent=1 // pred_check_branch
      %73 = sbr.rel (0) target = $region33
    $region32: #{tpu_custom_call.1} parent=1 // pred_region
      _
    $region33: #{tpu_custom_call.1} parent=1 // pred_fallthru
      _
    // Predicated region
    $region34: #{tpu_custom_call.1} parent=1 // pred_check
      _
    $region35: #{tpu_custom_call.1} parent=1 // pred_check_branch
      %75 = sbr.rel (0) target = $region37
    $region36: #{tpu_custom_call.1} parent=1 // pred_region
      %76 = dma.done [#allocation5], 1024
    $region37: #{tpu_custom_call.1} parent=1 // pred_fallthru
      _
    // Predicated region
    $region38: #{tpu_custom_call.1} parent=1 // pred_check
      _
    $region39: #{tpu_custom_call.1} parent=1 // pred_check_branch
      %78 = sbr.rel (0) target = $region41
    $region40: #{tpu_custom_call.1} parent=1 // pred_region
      %79 = dma.done [#allocation7], 8192
    $region41: #{tpu_custom_call.1} parent=1 // pred_fallthru
      _
    // Predicated region
    $region42: #{tpu_custom_call.1} parent=1 // pred_check
      _
    $region43: #{tpu_custom_call.1} parent=1 // pred_check_branch
      %81 = sbr.rel (0) target = $region45
    $region44: #{tpu_custom_call.1} parent=1 // pred_region
      %82 = dma.done [#allocation7], 16384
    $region45: #{tpu_custom_call.1} parent=1 // pred_fallthru
      _
    // Predicated region
    $region46: #{tpu_custom_call.1} parent=1 // pred_check
      _
    $region47: #{tpu_custom_call.1} parent=1 // pred_check_branch
      %84 = sbr.rel (0) target = $region49
    $region48: #{tpu_custom_call.1} parent=1 // pred_region
      %85 = dma.done [#allocation10], 16384
    $region49: #{tpu_custom_call.1} parent=1 // pred_fallthru
      _
    %v86 = vld [vmem:[#allocation6] sm:$0xff]
    %v87 = vld [vmem:[#allocation6 + $0x8] sm:$0xff]
    %v88 = vld [vmem:[#allocation6 + $0x10] sm:$0xff]
    %v89 = vld [vmem:[#allocation6 + $0x18] sm:$0xff]
    %v90 = vld [vmem:[#allocation6 + $0x20] sm:$0xff]
    %v91 = vld [vmem:[#allocation6 + $0x28] sm:$0xff]
    %v92 = vld [vmem:[#allocation6 + $0x30] sm:$0xff]
    %v93 = vld [vmem:[#allocation6 + $0x38] sm:$0xff]
    %v94 = vld [vmem:[#allocation6 + $0x40] sm:$0xff]
    %v95 = vld [vmem:[#allocation6 + $0x48] sm:$0xff]
    %v96 = vld [vmem:[#allocation6 + $0x50] sm:$0xff]
    %v97 = vld [vmem:[#allocation6 + $0x58] sm:$0xff]
    %v98 = vld [vmem:[#allocation6 + $0x60] sm:$0xff]
    %v99 = vld [vmem:[#allocation6 + $0x68] sm:$0xff]
    %v100 = vld [vmem:[#allocation6 + $0x70] sm:$0xff]
    %v101 = vld [vmem:[#allocation6 + $0x78] sm:$0xff]
    %v102 = vld [vmem:[#allocation6 + $0x80] sm:$0xff]
    %v103 = vld [vmem:[#allocation6 + $0x88] sm:$0xff]
    %v104 = vld [vmem:[#allocation6 + $0x90] sm:$0xff]
    %v105 = vld [vmem:[#allocation6 + $0x98] sm:$0xff]
    %v106 = vld [vmem:[#allocation6 + $0xa0] sm:$0xff]
    %v107 = vld [vmem:[#allocation6 + $0xa8] sm:$0xff]
    %v108 = vld [vmem:[#allocation6 + $0xb0] sm:$0xff]
    %v109 = vld [vmem:[#allocation6 + $0xb8] sm:$0xff]
    %v110 = vld [vmem:[#allocation6 + $0xc0] sm:$0xff]
    %v111 = vld [vmem:[#allocation6 + $0xc8] sm:$0xff]
    %v112 = vld [vmem:[#allocation6 + $0xd0] sm:$0xff]
    %v113 = vld [vmem:[#allocation6 + $0xd8] sm:$0xff]
    %v114 = vld [vmem:[#allocation6 + $0xe0] sm:$0xff]
    %v115 = vld [vmem:[#allocation6 + $0xe8] sm:$0xff]
    %v116 = vld [vmem:[#allocation6 + $0xf0] sm:$0xff]
    %v117 = vld [vmem:[#allocation6 + $0xf8] sm:$0xff]
    %v118 = vld [vmem:[#allocation6 + $0x100] sm:$0xff]
    %v119 = vld [vmem:[#allocation6 + $0x108] sm:$0xff]
    %v120 = vld [vmem:[#allocation6 + $0x110] sm:$0xff]
    %v121 = vld [vmem:[#allocation6 + $0x118] sm:$0xff]
    %v122 = vld [vmem:[#allocation6 + $0x120] sm:$0xff]
    %v123 = vld [vmem:[#allocation6 + $0x128] sm:$0xff]
    %v124 = vld [vmem:[#allocation6 + $0x130] sm:$0xff]
    %v125 = vld [vmem:[#allocation6 + $0x138] sm:$0xff]
    %v126 = vld [vmem:[#allocation6 + $0x140] sm:$0xff]
    %v127 = vld [vmem:[#allocation6 + $0x148] sm:$0xff]
    %v128 = vld [vmem:[#allocation6 + $0x150] sm:$0xff]
    %v129 = vld [vmem:[#allocation6 + $0x158] sm:$0xff]
    %v130 = vld [vmem:[#allocation6 + $0x160] sm:$0xff]
    %v131 = vld [vmem:[#allocation6 + $0x168] sm:$0xff]
    %v132 = vld [vmem:[#allocation6 + $0x170] sm:$0xff]
    %v133 = vld [vmem:[#allocation6 + $0x178] sm:$0xff]
    %v134 = vld [vmem:[#allocation6 + $0x180] sm:$0xff]
    %v135 = vld [vmem:[#allocation6 + $0x188] sm:$0xff]
    %v136 = vld [vmem:[#allocation6 + $0x190] sm:$0xff]
    %v137 = vld [vmem:[#allocation6 + $0x198] sm:$0xff]
    %v138 = vld [vmem:[#allocation6 + $0x1a0] sm:$0xff]
    %v139 = vld [vmem:[#allocation6 + $0x1a8] sm:$0xff]
    %v140 = vld [vmem:[#allocation6 + $0x1b0] sm:$0xff]
    %v141 = vld [vmem:[#allocation6 + $0x1b8] sm:$0xff]
    %v142 = vld [vmem:[#allocation6 + $0x1c0] sm:$0xff]
    %v143 = vld [vmem:[#allocation6 + $0x1c8] sm:$0xff]
    %v144 = vld [vmem:[#allocation6 + $0x1d0] sm:$0xff]
    %v145 = vld [vmem:[#allocation6 + $0x1d8] sm:$0xff]
    %v146 = vld [vmem:[#allocation6 + $0x1e0] sm:$0xff]
    %v147 = vld [vmem:[#allocation6 + $0x1e8] sm:$0xff]
    %v148 = vld [vmem:[#allocation6 + $0x1f0] sm:$0xff]
    %v149 = vld [vmem:[#allocation6 + $0x1f8] sm:$0xff]
    %v150 = vld [vmem:[#allocation8] sm:$0xff]
    %v151 = vld [vmem:[#allocation8 + $0x8] sm:$0xff]
    %v152 = vld [vmem:[#allocation8 + $0x10] sm:$0xff]
    %v153 = vld [vmem:[#allocation8 + $0x18] sm:$0xff]
    %v154 = vld [vmem:[#allocation8 + $0x20] sm:$0xff]
    %v155 = vld [vmem:[#allocation8 + $0x28] sm:$0xff]
    %v156 = vld [vmem:[#allocation8 + $0x30] sm:$0xff]
    %v157 = vld [vmem:[#allocation8 + $0x38] sm:$0xff]
    %v158 = vld [vmem:[#allocation8 + $0x40] sm:$0xff]
    %v159 = vld [vmem:[#allocation8 + $0x48] sm:$0xff]
    %v160 = vld [vmem:[#allocation8 + $0x50] sm:$0xff]
    %v161 = vld [vmem:[#allocation8 + $0x58] sm:$0xff]
    %v162 = vld [vmem:[#allocation8 + $0x60] sm:$0xff]
    %v163 = vld [vmem:[#allocation8 + $0x68] sm:$0xff]
    %v164 = vld [vmem:[#allocation8 + $0x70] sm:$0xff]
    %v165 = vld [vmem:[#allocation8 + $0x78] sm:$0xff]
    %v166 = vld [vmem:[#allocation8 + $0x80] sm:$0xff]
    %v167 = vld [vmem:[#allocation8 + $0x88] sm:$0xff]
    %v168 = vld [vmem:[#allocation8 + $0x90] sm:$0xff]
    %v169 = vld [vmem:[#allocation8 + $0x98] sm:$0xff]
    %v170 = vld [vmem:[#allocation8 + $0xa0] sm:$0xff]
    %v171 = vld [vmem:[#allocation8 + $0xa8] sm:$0xff]
    %v172 = vld [vmem:[#allocation8 + $0xb0] sm:$0xff]
    %v173 = vld [vmem:[#allocation8 + $0xb8] sm:$0xff]
    %v174 = vld [vmem:[#allocation8 + $0xc0] sm:$0xff]
    %v175 = vld [vmem:[#allocation8 + $0xc8] sm:$0xff]
    %v176 = vld [vmem:[#allocation8 + $0xd0] sm:$0xff]
    %v177 = vld [vmem:[#allocation8 + $0xd8] sm:$0xff]
    %v178 = vld [vmem:[#allocation8 + $0xe0] sm:$0xff]
    %v179 = vld [vmem:[#allocation8 + $0xe8] sm:$0xff]
    %v180 = vld [vmem:[#allocation8 + $0xf0] sm:$0xff]
    %v181 = vld [vmem:[#allocation8 + $0xf8] sm:$0xff]
    %v182 = vld [vmem:[#allocation8 + $0x100] sm:$0xff]
    %v183 = vld [vmem:[#allocation8 + $0x108] sm:$0xff]
    %v184 = vld [vmem:[#allocation8 + $0x110] sm:$0xff]
    %v185 = vld [vmem:[#allocation8 + $0x118] sm:$0xff]
    %v186 = vld [vmem:[#allocation8 + $0x120] sm:$0xff]
    %v187 = vld [vmem:[#allocation8 + $0x128] sm:$0xff]
    %v188 = vld [vmem:[#allocation8 + $0x130] sm:$0xff]
    %v189 = vld [vmem:[#allocation8 + $0x138] sm:$0xff]
    %v190 = vld [vmem:[#allocation8 + $0x140] sm:$0xff]
    %v191 = vld [vmem:[#allocation8 + $0x148] sm:$0xff]
    %v192 = vld [vmem:[#allocation8 + $0x150] sm:$0xff]
    %v193 = vld [vmem:[#allocation8 + $0x158] sm:$0xff]
    %v194 = vld [vmem:[#allocation8 + $0x160] sm:$0xff]
    %v195 = vld [vmem:[#allocation8 + $0x168] sm:$0xff]
    %v196 = vld [vmem:[#allocation8 + $0x170] sm:$0xff]
    %v197 = vld [vmem:[#allocation8 + $0x178] sm:$0xff]
    %v198 = vld [vmem:[#allocation8 + $0x180] sm:$0xff]
    %v199 = vld [vmem:[#allocation8 + $0x188] sm:$0xff]
    %v200 = vld [vmem:[#allocation8 + $0x190] sm:$0xff]
    %v201 = vld [vmem:[#allocation8 + $0x198] sm:$0xff]
    %v202 = vld [vmem:[#allocation8 + $0x1a0] sm:$0xff]
    %v203 = vld [vmem:[#allocation8 + $0x1a8] sm:$0xff]
    %v204 = vld [vmem:[#allocation8 + $0x1b0] sm:$0xff]
    %v205 = vld [vmem:[#allocation8 + $0x1b8] sm:$0xff]
    %v206 = vld [vmem:[#allocation8 + $0x1c0] sm:$0xff]
    %v207 = vld [vmem:[#allocation8 + $0x1c8] sm:$0xff]
    %v208 = vld [vmem:[#allocation8 + $0x1d0] sm:$0xff]
    %v209 = vld [vmem:[#allocation8 + $0x1d8] sm:$0xff]
    %v210 = vld [vmem:[#allocation8 + $0x1e0] sm:$0xff]
    %v211 = vld [vmem:[#allocation8 + $0x1e8] sm:$0xff]
    %v212 = vld [vmem:[#allocation8 + $0x1f0] sm:$0xff]
    %v213 = vld [vmem:[#allocation8 + $0x1f8] sm:$0xff]
    %v214 = vld [vmem:[#allocation8 + $0x200] sm:$0xff]
    %v215 = vld [vmem:[#allocation8 + $0x208] sm:$0xff]
    %v216 = vld [vmem:[#allocation8 + $0x210] sm:$0xff]
    %v217 = vld [vmem:[#allocation8 + $0x218] sm:$0xff]
    %v218 = vld [vmem:[#allocation8 + $0x220] sm:$0xff]
    %v219 = vld [vmem:[#allocation8 + $0x228] sm:$0xff]
    %v220 = vld [vmem:[#allocation8 + $0x230] sm:$0xff]
    %v221 = vld [vmem:[#allocation8 + $0x238] sm:$0xff]
    %v222 = vld [vmem:[#allocation8 + $0x240] sm:$0xff]
    %v223 = vld [vmem:[#allocation8 + $0x248] sm:$0xff]
    %v224 = vld [vmem:[#allocation8 + $0x250] sm:$0xff]
    %v225 = vld [vmem:[#allocation8 + $0x258] sm:$0xff]
    %v226 = vld [vmem:[#allocation8 + $0x260] sm:$0xff]
    %v227 = vld [vmem:[#allocation8 + $0x268] sm:$0xff]
    %v228 = vld [vmem:[#allocation8 + $0x270] sm:$0xff]
    %v229 = vld [vmem:[#allocation8 + $0x278] sm:$0xff]
    %v230 = vld [vmem:[#allocation8 + $0x280] sm:$0xff]
    %v231 = vld [vmem:[#allocation8 + $0x288] sm:$0xff]
    %v232 = vld [vmem:[#allocation8 + $0x290] sm:$0xff]
    %v233 = vld [vmem:[#allocation8 + $0x298] sm:$0xff]
    %v234 = vld [vmem:[#allocation8 + $0x2a0] sm:$0xff]
    %v235 = vld [vmem:[#allocation8 + $0x2a8] sm:$0xff]
    %v236 = vld [vmem:[#allocation8 + $0x2b0] sm:$0xff]
    %v237 = vld [vmem:[#allocation8 + $0x2b8] sm:$0xff]
    %v238 = vld [vmem:[#allocation8 + $0x2c0] sm:$0xff]
    %v239 = vld [vmem:[#allocation8 + $0x2c8] sm:$0xff]
    %v240 = vld [vmem:[#allocation8 + $0x2d0] sm:$0xff]
    %v241 = vld [vmem:[#allocation8 + $0x2d8] sm:$0xff]
    %v242 = vld [vmem:[#allocation8 + $0x2e0] sm:$0xff]
    %v243 = vld [vmem:[#allocation8 + $0x2e8] sm:$0xff]
    %v244 = vld [vmem:[#allocation8 + $0x2f0] sm:$0xff]
    %v245 = vld [vmem:[#allocation8 + $0x2f8] sm:$0xff]
    %v246 = vld [vmem:[#allocation8 + $0x300] sm:$0xff]
    %v247 = vld [vmem:[#allocation8 + $0x308] sm:$0xff]
    %v248 = vld [vmem:[#allocation8 + $0x310] sm:$0xff]
    %v249 = vld [vmem:[#allocation8 + $0x318] sm:$0xff]
    %v250 = vld [vmem:[#allocation8 + $0x320] sm:$0xff]
    %v251 = vld [vmem:[#allocation8 + $0x328] sm:$0xff]
    %v252 = vld [vmem:[#allocation8 + $0x330] sm:$0xff]
    %v253 = vld [vmem:[#allocation8 + $0x338] sm:$0xff]
    %v254 = vld [vmem:[#allocation8 + $0x340] sm:$0xff]
    %v255 = vld [vmem:[#allocation8 + $0x348] sm:$0xff]
    %v256 = vld [vmem:[#allocation8 + $0x350] sm:$0xff]
    %v257 = vld [vmem:[#allocation8 + $0x358] sm:$0xff]
    %v258 = vld [vmem:[#allocation8 + $0x360] sm:$0xff]
    %v259 = vld [vmem:[#allocation8 + $0x368] sm:$0xff]
    %v260 = vld [vmem:[#allocation8 + $0x370] sm:$0xff]
    %v261 = vld [vmem:[#allocation8 + $0x378] sm:$0xff]
    %v262 = vld [vmem:[#allocation8 + $0x380] sm:$0xff]
    %v263 = vld [vmem:[#allocation8 + $0x388] sm:$0xff]
    %v264 = vld [vmem:[#allocation8 + $0x390] sm:$0xff]
    %v265 = vld [vmem:[#allocation8 + $0x398] sm:$0xff]
    %v266 = vld [vmem:[#allocation8 + $0x3a0] sm:$0xff]
    %v267 = vld [vmem:[#allocation8 + $0x3a8] sm:$0xff]
    %v268 = vld [vmem:[#allocation8 + $0x3b0] sm:$0xff]
    %v269 = vld [vmem:[#allocation8 + $0x3b8] sm:$0xff]
    %v270 = vld [vmem:[#allocation8 + $0x3c0] sm:$0xff]
    %v271 = vld [vmem:[#allocation8 + $0x3c8] sm:$0xff]
    %v272 = vld [vmem:[#allocation8 + $0x3d0] sm:$0xff]
    %v273 = vld [vmem:[#allocation8 + $0x3d8] sm:$0xff]
    %v274 = vld [vmem:[#allocation8 + $0x3e0] sm:$0xff]
    %v275 = vld [vmem:[#allocation8 + $0x3e8] sm:$0xff]
    %v276 = vld [vmem:[#allocation8 + $0x3f0] sm:$0xff]
    %v277 = vld [vmem:[#allocation8 + $0x3f8] sm:$0xff]
    %v278 = vld [vmem:[%s3] sm:$0xf]
    %v279 = vld [vmem:[#allocation9] sm:$0xff]
    %v280 = vld [vmem:[#allocation9 + $0x8] sm:$0xff]
    %v281 = vld [vmem:[#allocation9 + $0x10] sm:$0xff]
    %v282 = vld [vmem:[#allocation9 + $0x18] sm:$0xff]
    %v283 = vld [vmem:[#allocation9 + $0x20] sm:$0xff]
    %v284 = vld [vmem:[#allocation9 + $0x28] sm:$0xff]
    %v285 = vld [vmem:[#allocation9 + $0x30] sm:$0xff]
    %v286 = vld [vmem:[#allocation9 + $0x38] sm:$0xff]
    %v287 = vld [vmem:[#allocation9 + $0x40] sm:$0xff]
    %v288 = vld [vmem:[#allocation9 + $0x48] sm:$0xff]
    %v289 = vld [vmem:[#allocation9 + $0x50] sm:$0xff]
    %v290 = vld [vmem:[#allocation9 + $0x58] sm:$0xff]
    %v291 = vld [vmem:[#allocation9 + $0x60] sm:$0xff]
    %v292 = vld [vmem:[#allocation9 + $0x68] sm:$0xff]
    %v293 = vld [vmem:[#allocation9 + $0x70] sm:$0xff]
    %v294 = vld [vmem:[#allocation9 + $0x78] sm:$0xff]
    %v295 = vld [vmem:[#allocation9 + $0x80] sm:$0xff]
    %v296 = vld [vmem:[#allocation9 + $0x88] sm:$0xff]
    %v297 = vld [vmem:[#allocation9 + $0x90] sm:$0xff]
    %v298 = vld [vmem:[#allocation9 + $0x98] sm:$0xff]
    %v299 = vld [vmem:[#allocation9 + $0xa0] sm:$0xff]
    %v300 = vld [vmem:[#allocation9 + $0xa8] sm:$0xff]
    %v301 = vld [vmem:[#allocation9 + $0xb0] sm:$0xff]
    %v302 = vld [vmem:[#allocation9 + $0xb8] sm:$0xff]
    %v303 = vld [vmem:[#allocation9 + $0xc0] sm:$0xff]
    %v304 = vld [vmem:[#allocation9 + $0xc8] sm:$0xff]
    %v305 = vld [vmem:[#allocation9 + $0xd0] sm:$0xff]
    %v306 = vld [vmem:[#allocation9 + $0xd8] sm:$0xff]
    %v307 = vld [vmem:[#allocation9 + $0xe0] sm:$0xff]
    %v308 = vld [vmem:[#allocation9 + $0xe8] sm:$0xff]
    %v309 = vld [vmem:[#allocation9 + $0xf0] sm:$0xff]
    %v310 = vld [vmem:[#allocation9 + $0xf8] sm:$0xff]
    %v311 = vld [vmem:[#allocation9 + $0x100] sm:$0xff]
    %v312 = vld [vmem:[#allocation9 + $0x108] sm:$0xff]
    %v313 = vld [vmem:[#allocation9 + $0x110] sm:$0xff]
    %v314 = vld [vmem:[#allocation9 + $0x118] sm:$0xff]
    %v315 = vld [vmem:[#allocation9 + $0x120] sm:$0xff]
    %v316 = vld [vmem:[#allocation9 + $0x128] sm:$0xff]
    %v317 = vld [vmem:[#allocation9 + $0x130] sm:$0xff]
    %v318 = vld [vmem:[#allocation9 + $0x138] sm:$0xff]
    %v319 = vld [vmem:[#allocation9 + $0x140] sm:$0xff]
    %v320 = vld [vmem:[#allocation9 + $0x148] sm:$0xff]
    %v321 = vld [vmem:[#allocation9 + $0x150] sm:$0xff]
    %v322 = vld [vmem:[#allocation9 + $0x158] sm:$0xff]
    %v323 = vld [vmem:[#allocation9 + $0x160] sm:$0xff]
    %v324 = vld [vmem:[#allocation9 + $0x168] sm:$0xff]
    %v325 = vld [vmem:[#allocation9 + $0x170] sm:$0xff]
    %v326 = vld [vmem:[#allocation9 + $0x178] sm:$0xff]
    %v327 = vld [vmem:[#allocation9 + $0x180] sm:$0xff]
    %v328 = vld [vmem:[#allocation9 + $0x188] sm:$0xff]
    %v329 = vld [vmem:[#allocation9 + $0x190] sm:$0xff]
    %v330 = vld [vmem:[#allocation9 + $0x198] sm:$0xff]
    %v331 = vld [vmem:[#allocation9 + $0x1a0] sm:$0xff]
    %v332 = vld [vmem:[#allocation9 + $0x1a8] sm:$0xff]
    %v333 = vld [vmem:[#allocation9 + $0x1b0] sm:$0xff]
    %v334 = vld [vmem:[#allocation9 + $0x1b8] sm:$0xff]
    %v335 = vld [vmem:[#allocation9 + $0x1c0] sm:$0xff]
    %v336 = vld [vmem:[#allocation9 + $0x1c8] sm:$0xff]
    %v337 = vld [vmem:[#allocation9 + $0x1d0] sm:$0xff]
    %v338 = vld [vmem:[#allocation9 + $0x1d8] sm:$0xff]
    %v339 = vld [vmem:[#allocation9 + $0x1e0] sm:$0xff]
    %v340 = vld [vmem:[#allocation9 + $0x1e8] sm:$0xff]
    %v341 = vld [vmem:[#allocation9 + $0x1f0] sm:$0xff]
    %v342 = vld [vmem:[#allocation9 + $0x1f8] sm:$0xff]
    %v343 = vld [vmem:[#allocation9 + $0x200] sm:$0xff]
    %v344 = vld [vmem:[#allocation9 + $0x208] sm:$0xff]
    %v345 = vld [vmem:[#allocation9 + $0x210] sm:$0xff]
    %v346 = vld [vmem:[#allocation9 + $0x218] sm:$0xff]
    %v347 = vld [vmem:[#allocation9 + $0x220] sm:$0xff]
    %v348 = vld [vmem:[#allocation9 + $0x228] sm:$0xff]
    %v349 = vld [vmem:[#allocation9 + $0x230] sm:$0xff]
    %v350 = vld [vmem:[#allocation9 + $0x238] sm:$0xff]
    %v351 = vld [vmem:[#allocation9 + $0x240] sm:$0xff]
    %v352 = vld [vmem:[#allocation9 + $0x248] sm:$0xff]
    %v353 = vld [vmem:[#allocation9 + $0x250] sm:$0xff]
    %v354 = vld [vmem:[#allocation9 + $0x258] sm:$0xff]
    %v355 = vld [vmem:[#allocation9 + $0x260] sm:$0xff]
    %v356 = vld [vmem:[#allocation9 + $0x268] sm:$0xff]
    %v357 = vld [vmem:[#allocation9 + $0x270] sm:$0xff]
    %v358 = vld [vmem:[#allocation9 + $0x278] sm:$0xff]
    %v359 = vld [vmem:[#allocation9 + $0x280] sm:$0xff]
    %v360 = vld [vmem:[#allocation9 + $0x288] sm:$0xff]
    %v361 = vld [vmem:[#allocation9 + $0x290] sm:$0xff]
    %v362 = vld [vmem:[#allocation9 + $0x298] sm:$0xff]
    %v363 = vld [vmem:[#allocation9 + $0x2a0] sm:$0xff]
    %v364 = vld [vmem:[#allocation9 + $0x2a8] sm:$0xff]
    %v365 = vld [vmem:[#allocation9 + $0x2b0] sm:$0xff]
    %v366 = vld [vmem:[#allocation9 + $0x2b8] sm:$0xff]
    %v367 = vld [vmem:[#allocation9 + $0x2c0] sm:$0xff]
    %v368 = vld [vmem:[#allocation9 + $0x2c8] sm:$0xff]
    %v369 = vld [vmem:[#allocation9 + $0x2d0] sm:$0xff]
    %v370 = vld [vmem:[#allocation9 + $0x2d8] sm:$0xff]
    %v371 = vld [vmem:[#allocation9 + $0x2e0] sm:$0xff]
    %v372 = vld [vmem:[#allocation9 + $0x2e8] sm:$0xff]
    %v373 = vld [vmem:[#allocation9 + $0x2f0] sm:$0xff]
    %v374 = vld [vmem:[#allocation9 + $0x2f8] sm:$0xff]
    %v375 = vld [vmem:[#allocation9 + $0x300] sm:$0xff]
    %v376 = vld [vmem:[#allocation9 + $0x308] sm:$0xff]
    %v377 = vld [vmem:[#allocation9 + $0x310] sm:$0xff]
    %v378 = vld [vmem:[#allocation9 + $0x318] sm:$0xff]
    %v379 = vld [vmem:[#allocation9 + $0x320] sm:$0xff]
    %v380 = vld [vmem:[#allocation9 + $0x328] sm:$0xff]
    %v381 = vld [vmem:[#allocation9 + $0x330] sm:$0xff]
    %v382 = vld [vmem:[#allocation9 + $0x338] sm:$0xff]
    %v383 = vld [vmem:[#allocation9 + $0x340] sm:$0xff]
    %v384 = vld [vmem:[#allocation9 + $0x348] sm:$0xff]
    %v385 = vld [vmem:[#allocation9 + $0x350] sm:$0xff]
    %v386 = vld [vmem:[#allocation9 + $0x358] sm:$0xff]
    %v387 = vld [vmem:[#allocation9 + $0x360] sm:$0xff]
    %v388 = vld [vmem:[#allocation9 + $0x368] sm:$0xff]
    %v389 = vld [vmem:[#allocation9 + $0x370] sm:$0xff]
    %v390 = vld [vmem:[#allocation9 + $0x378] sm:$0xff]
    %v391 = vld [vmem:[#allocation9 + $0x380] sm:$0xff]
    %v392 = vld [vmem:[#allocation9 + $0x388] sm:$0xff]
    %v393 = vld [vmem:[#allocation9 + $0x390] sm:$0xff]
    %v394 = vld [vmem:[#allocation9 + $0x398] sm:$0xff]
    %v395 = vld [vmem:[#allocation9 + $0x3a0] sm:$0xff]
    %v396 = vld [vmem:[#allocation9 + $0x3a8] sm:$0xff]
    %v397 = vld [vmem:[#allocation9 + $0x3b0] sm:$0xff]
    %v398 = vld [vmem:[#allocation9 + $0x3b8] sm:$0xff]
    %v399 = vld [vmem:[#allocation9 + $0x3c0] sm:$0xff]
    %v400 = vld [vmem:[#allocation9 + $0x3c8] sm:$0xff]
    %v401 = vld [vmem:[#allocation9 + $0x3d0] sm:$0xff]
    %v402 = vld [vmem:[#allocation9 + $0x3d8] sm:$0xff]
    %v403 = vld [vmem:[#allocation9 + $0x3e0] sm:$0xff]
    %v404 = vld [vmem:[#allocation9 + $0x3e8] sm:$0xff]
    %v405 = vld [vmem:[#allocation9 + $0x3f0] sm:$0xff]
    %v406 = vld [vmem:[#allocation9 + $0x3f8] sm:$0xff]
    %v407 = vld [vmem:[%s5] sm:$0xf]
    %v408 = vld [vmem:[#allocation4] sm:$0xff]
    %409 = vmatprep.subr.mxu0 %v147
    %410 = vmatpush1.msra.mxu0 %v146
    %411 = vmatprep.subr.mxu0 %v143
    %412 = vmatpush1.msra.mxu0 %v142
    %413 = vmatprep.subr.mxu0 %v139
    %414 = vmatpush1.msra.mxu0 %v138
    %415 = vmatprep.subr.mxu0 %v135
    %416 = vmatpush1.msra.mxu0 %v134
    %417 = vmatprep.subr.mxu0 %v131
    %418 = vmatpush1.msra.mxu0 %v130
    %419 = vmatprep.subr.mxu0 %v127
    %420 = vmatpush1.msra.mxu0 %v126
    %421 = vmatprep.subr.mxu0 %v123
    %422 = vmatpush1.msra.mxu0 %v122
    %423 = vmatprep.subr.mxu0 %v119
    %424 = vmatpush1.msra.mxu0 %v118
    %425 = vmatprep.subr.mxu0 %v115
    %426 = vmatpush1.msra.mxu0 %v114
    %427 = vmatprep.subr.mxu0 %v111
    %428 = vmatpush1.msra.mxu0 %v110
    %429 = vmatprep.subr.mxu0 %v107
    %430 = vmatpush1.msra.mxu0 %v106
    %431 = vmatprep.subr.mxu0 %v103
    %432 = vmatpush1.msra.mxu0 %v102
    %433 = vmatprep.subr.mxu0 %v99
    %434 = vmatpush1.msra.mxu0 %v98
    %435 = vmatprep.subr.mxu0 %v95
    %436 = vmatpush1.msra.mxu0 %v94
    %437 = vmatprep.subr.mxu0 %v91
    %438 = vmatpush1.msra.mxu0 %v90
    %439 = vmatprep.subr.mxu0 %v87
    %440 = vmatpush1.msra.mxu0 %v86
    %441 = vmatprep.subr.mxu0 0.0
    %442 = vmatpush2.msra.mxu0 0.0
    %443 = vmatprep.subr.mxu0 0.0
    %444 = vmatpush2.msra.mxu0 0.0
    %445 = vmatprep.subr.mxu0 0.0
    %446 = vmatpush2.msra.mxu0 0.0
    %447 = vmatprep.subr.mxu0 0.0
    %448 = vmatpush2.msra.mxu0 0.0
    %449 = vmatprep.subr.mxu0 0.0
    %450 = vmatpush2.msra.mxu0 0.0
    %451 = vmatprep.subr.mxu0 0.0
    %452 = vmatpush2.msra.mxu0 0.0
    %453 = vmatprep.subr.mxu0 0.0
    %454 = vmatpush2.msra.mxu0 0.0
    %455 = vmatprep.subr.mxu0 0.0
    %456 = vmatpush2.msra.mxu0 0.0
    %457 = vmatprep.subr.mxu0 0.0
    %458 = vmatpush2.msra.mxu0 0.0
    %459 = vmatprep.subr.mxu0 0.0
    %460 = vmatpush2.msra.mxu0 0.0
    %461 = vmatprep.subr.mxu0 0.0
    %462 = vmatpush2.msra.mxu0 0.0
    %463 = vmatprep.subr.mxu0 0.0
    %464 = vmatpush2.msra.mxu0 0.0
    %465 = vmatprep.subr.mxu0 0.0
    %466 = vmatpush2.msra.mxu0 0.0
    %467 = vmatprep.subr.mxu0 0.0
    %468 = vmatpush2.msra.mxu0 0.0
    %469 = vmatprep.subr.mxu0 0.0
    %470 = vmatpush2.msra.mxu0 0.0
    %471 = vmatprep.subr.mxu0 0.0
    %472 = vmatpush2.msra.mxu0 0.0
    %473 = vmatprep.mubr.f32.mxu0 0.0
    %474 = vmatmul.mubr.f32.gmra.mxu0 0.0
    %v475 = vpop.f32.mrf.mxu0
    %v476 = vadd.f32 0.0, %v475
    %v477 = vpop.f32.mrf.mxu0
    %v478 = vadd.f32 0.0, %v477
    %479 = vdwg.mxu0
    %480 = vmatprep.subr.mxu0 %v149
    %481 = vmatpush1.msra.mxu0 %v148
    %482 = vmatprep.subr.mxu0 %v145
    %483 = vmatpush1.msra.mxu0 %v144
    %484 = vmatprep.subr.mxu0 %v141
    %485 = vmatpush1.msra.mxu0 %v140
    %486 = vmatprep.subr.mxu0 %v137
    %487 = vmatpush1.msra.mxu0 %v136
    %488 = vmatprep.subr.mxu0 %v133
    %489 = vmatpush1.msra.mxu0 %v132
    %490 = vmatprep.subr.mxu0 %v129
    %491 = vmatpush1.msra.mxu0 %v128
    %492 = vmatprep.subr.mxu0 %v125
    %493 = vmatpush1.msra.mxu0 %v124
    %494 = vmatprep.subr.mxu0 %v121
    %495 = vmatpush1.msra.mxu0 %v120
    %496 = vmatprep.subr.mxu0 %v117
    %497 = vmatpush1.msra.mxu0 %v116
    %498 = vmatprep.subr.mxu0 %v113
    %499 = vmatpush1.msra.mxu0 %v112
    %500 = vmatprep.subr.mxu0 %v109
    %501 = vmatpush1.msra.mxu0 %v108
    %502 = vmatprep.subr.mxu0 %v105
    %503 = vmatpush1.msra.mxu0 %v104
    %504 = vmatprep.subr.mxu0 %v101
    %505 = vmatpush1.msra.mxu0 %v100
    %506 = vmatprep.subr.mxu0 %v97
    %507 = vmatpush1.msra.mxu0 %v96
    %508 = vmatprep.subr.mxu0 %v93
    %509 = vmatpush1.msra.mxu0 %v92
    %510 = vmatprep.subr.mxu0 %v89
    %511 = vmatpush1.msra.mxu0 %v88
    %512 = vmatprep.subr.mxu0 0.0
    %513 = vmatpush2.msra.mxu0 0.0
    %514 = vmatprep.subr.mxu0 0.0
    %515 = vmatpush2.msra.mxu0 0.0
    %516 = vmatprep.subr.mxu0 0.0
    %517 = vmatpush2.msra.mxu0 0.0
    %518 = vmatprep.subr.mxu0 0.0
    %519 = vmatpush2.msra.mxu0 0.0
    %520 = vmatprep.subr.mxu0 0.0
    %521 = vmatpush2.msra.mxu0 0.0
    %522 = vmatprep.subr.mxu0 0.0
    %523 = vmatpush2.msra.mxu0 0.0
    %524 = vmatprep.subr.mxu0 0.0
    %525 = vmatpush2.msra.mxu0 0.0
    %526 = vmatprep.subr.mxu0 0.0
    %527 = vmatpush2.msra.mxu0 0.0
    %528 = vmatprep.subr.mxu0 0.0
    %529 = vmatpush2.msra.mxu0 0.0
    %530 = vmatprep.subr.mxu0 0.0
    %531 = vmatpush2.msra.mxu0 0.0
    %532 = vmatprep.subr.mxu0 0.0
    %533 = vmatpush2.msra.mxu0 0.0
    %534 = vmatprep.subr.mxu0 0.0
    %535 = vmatpush2.msra.mxu0 0.0
    %536 = vmatprep.subr.mxu0 0.0
    %537 = vmatpush2.msra.mxu0 0.0
    %538 = vmatprep.subr.mxu0 0.0
    %539 = vmatpush2.msra.mxu0 0.0
    %540 = vmatprep.subr.mxu0 0.0
    %541 = vmatpush2.msra.mxu0 0.0
    %542 = vmatprep.subr.mxu0 0.0
    %543 = vmatpush2.msra.mxu0 0.0
    %544 = vmatprep.mubr.f32.mxu0 0.0
    %545 = vmatmul.mubr.f32.gmra.mxu0 0.0
    %v546 = vpop.f32.mrf.mxu0
    %v547 = vadd.f32 0.0, %v546
    %v548 = vpop.f32.mrf.mxu0
    %v549 = vadd.f32 0.0, %v548
    %550 = vdwg.mxu0
    %v555 = vcombine.low %v476, %v478
    %v556 = vcombine.low %v547, %v549
    %v558 = vunpack.c.l.s4 1983009808
    %v559 = vunpack.c.0.s8 %v558
    %v560 = vlaneseq
    %v561 = vshrl.u32 %v560, 7
    %v562 = vsub.s32 %v559, %v561
    %v563 = vrot.slane %v555, %v562
    %v565 = vunpack.c.l.s4 1983009808
    %v566 = vunpack.c.0.s8 %v565
    %v567 = vlaneseq
    %v568 = vshrl.u32 %v567, 7
    %v569 = vsub.s32 %v566, %v568
    %v570 = vrot.slane %v556, %v569
    %v571 = vcombine.low %v563, %v570
    %v573 = vadd.f32 %v408, %v571
    %v574 = vxor.u32 %v573, 2147483648
    %v575 = vmul.f32 %v574, 1.442695
    %v576 = vpow.pop %v575
    %v577 = vadd.f32 %v576, 1.0
    %v578 = vrcp.pop %v577
    %v579 = vmul.f32 1.0, %v578
    %v581 = vrot.slane %v573, 2
    %v583 = vxor.u32 %v581, 2147483648
    %v584 = vmul.f32 %v583, 1.442695
    %v585 = vpow.pop %v584
    %v586 = vadd.f32 %v585, 1.0
    %v587 = vrcp.pop %v586
    %v588 = vmul.f32 1.0, %v587
    %v589 = vrot.slane %v573, 4
    %v591 = vtanh.pop %v589
    %v592 = vrot.slane %v573, 6
    %v594 = vxor.u32 %v592, 2147483648
    %v595 = vmul.f32 %v594, 1.442695
    %v596 = vpow.pop %v595
    %v597 = vadd.f32 %v596, 1.0
    %v598 = vrcp.pop %v597
    %v599 = vmul.f32 1.0, %v598
    %v600 = vmul.f32 %v588, 0.0
    %v601 = vmul.f32 %v579, %v591
    %v602 = vadd.f32 %v600, %v601
    %v603 = vtanh.pop %v602
    %v604 = vmul.f32 %v599, %v603
    %v606 = vlaneseq
    %v607 = vshrl.u32 %v606, 7
    %v608 = vsub.s32 0, %v607
    %v609 = vrot.slane %v278, %v608
    %v610 = vlaneseq
    %v611 = vshrl.u32 %v610, 7
    %v612 = vsub.s32 1, %v611
    %v613 = vrot.slane %v278, %v612
    %v614 = vlaneseq
    %v615 = vshrl.u32 %v614, 7
    %v616 = vsub.s32 2, %v615
    %v617 = vrot.slane %v278, %v616
    %v618 = vlaneseq
    %v619 = vshrl.u32 %v618, 7
    %v620 = vsub.s32 3, %v619
    %v621 = vrot.slane %v278, %v620
    %626 = vmatprep.subr.mxu0 %v211
    %627 = vmatpush1.msra.mxu0 %v210
    %628 = vmatprep.subr.mxu0 %v207
    %629 = vmatpush1.msra.mxu0 %v206
    %630 = vmatprep.subr.mxu0 %v203
    %631 = vmatpush1.msra.mxu0 %v202
    %632 = vmatprep.subr.mxu0 %v199
    %633 = vmatpush1.msra.mxu0 %v198
    %634 = vmatprep.subr.mxu0 %v195
    %635 = vmatpush1.msra.mxu0 %v194
    %636 = vmatprep.subr.mxu0 %v191
    %637 = vmatpush1.msra.mxu0 %v190
    %638 = vmatprep.subr.mxu0 %v187
    %639 = vmatpush1.msra.mxu0 %v186
    %640 = vmatprep.subr.mxu0 %v183
    %641 = vmatpush1.msra.mxu0 %v182
    %642 = vmatprep.subr.mxu0 %v179
    %643 = vmatpush1.msra.mxu0 %v178
    %644 = vmatprep.subr.mxu0 %v175
    %645 = vmatpush1.msra.mxu0 %v174
    %646 = vmatprep.subr.mxu0 %v171
    %647 = vmatpush1.msra.mxu0 %v170
    %648 = vmatprep.subr.mxu0 %v167
    %649 = vmatpush1.msra.mxu0 %v166
    %650 = vmatprep.subr.mxu0 %v163
    %651 = vmatpush1.msra.mxu0 %v162
    %652 = vmatprep.subr.mxu0 %v159
    %653 = vmatpush1.msra.mxu0 %v158
    %654 = vmatprep.subr.mxu0 %v155
    %655 = vmatpush1.msra.mxu0 %v154
    %656 = vmatprep.subr.mxu0 %v151
    %657 = vmatpush1.msra.mxu0 %v150
    %658 = vmatprep.subr.mxu0 %v275
    %659 = vmatpush2.msra.mxu0 %v274
    %660 = vmatprep.subr.mxu0 %v271
    %661 = vmatpush2.msra.mxu0 %v270
    %662 = vmatprep.subr.mxu0 %v267
    %663 = vmatpush2.msra.mxu0 %v266
    %664 = vmatprep.subr.mxu0 %v263
    %665 = vmatpush2.msra.mxu0 %v262
    %666 = vmatprep.subr.mxu0 %v259
    %667 = vmatpush2.msra.mxu0 %v258
    %668 = vmatprep.subr.mxu0 %v255
    %669 = vmatpush2.msra.mxu0 %v254
    %670 = vmatprep.subr.mxu0 %v251
    %671 = vmatpush2.msra.mxu0 %v250
    %672 = vmatprep.subr.mxu0 %v247
    %673 = vmatpush2.msra.mxu0 %v246
    %674 = vmatprep.subr.mxu0 %v243
    %675 = vmatpush2.msra.mxu0 %v242
    %676 = vmatprep.subr.mxu0 %v239
    %677 = vmatpush2.msra.mxu0 %v238
    %678 = vmatprep.subr.mxu0 %v235
    %679 = vmatpush2.msra.mxu0 %v234
    %680 = vmatprep.subr.mxu0 %v231
    %681 = vmatpush2.msra.mxu0 %v230
    %682 = vmatprep.subr.mxu0 %v227
    %683 = vmatpush2.msra.mxu0 %v226
    %684 = vmatprep.subr.mxu0 %v223
    %685 = vmatpush2.msra.mxu0 %v222
    %686 = vmatprep.subr.mxu0 %v219
    %687 = vmatpush2.msra.mxu0 %v218
    %688 = vmatprep.subr.mxu0 %v215
    %689 = vmatpush2.msra.mxu0 %v214
    %690 = vmatprep.mubr.f32.mxu0 0.0
    %691 = vmatmul.mubr.f32.gmra.mxu0 %v604
    %v692 = vpop.f32.mrf.mxu0
    %v693 = vadd.f32 %v609, %v692
    %v694 = vpop.f32.mrf.mxu0
    %v695 = vadd.f32 %v613, %v694
    %696 = vdwg.mxu0
    %697 = vmatprep.subr.mxu0 %v213
    %698 = vmatpush1.msra.mxu0 %v212
    %699 = vmatprep.subr.mxu0 %v209
    %700 = vmatpush1.msra.mxu0 %v208
    %701 = vmatprep.subr.mxu0 %v205
    %702 = vmatpush1.msra.mxu0 %v204
    %703 = vmatprep.subr.mxu0 %v201
    %704 = vmatpush1.msra.mxu0 %v200
    %705 = vmatprep.subr.mxu0 %v197
    %706 = vmatpush1.msra.mxu0 %v196
    %707 = vmatprep.subr.mxu0 %v193
    %708 = vmatpush1.msra.mxu0 %v192
    %709 = vmatprep.subr.mxu0 %v189
    %710 = vmatpush1.msra.mxu0 %v188
    %711 = vmatprep.subr.mxu0 %v185
    %712 = vmatpush1.msra.mxu0 %v184
    %713 = vmatprep.subr.mxu0 %v181
    %714 = vmatpush1.msra.mxu0 %v180
    %715 = vmatprep.subr.mxu0 %v177
    %716 = vmatpush1.msra.mxu0 %v176
    %717 = vmatprep.subr.mxu0 %v173
    %718 = vmatpush1.msra.mxu0 %v172
    %719 = vmatprep.subr.mxu0 %v169
    %720 = vmatpush1.msra.mxu0 %v168
    %721 = vmatprep.subr.mxu0 %v165
    %722 = vmatpush1.msra.mxu0 %v164
    %723 = vmatprep.subr.mxu0 %v161
    %724 = vmatpush1.msra.mxu0 %v160
    %725 = vmatprep.subr.mxu0 %v157
    %726 = vmatpush1.msra.mxu0 %v156
    %727 = vmatprep.subr.mxu0 %v153
    %728 = vmatpush1.msra.mxu0 %v152
    %729 = vmatprep.subr.mxu0 %v277
    %730 = vmatpush2.msra.mxu0 %v276
    %731 = vmatprep.subr.mxu0 %v273
    %732 = vmatpush2.msra.mxu0 %v272
    %733 = vmatprep.subr.mxu0 %v269
    %734 = vmatpush2.msra.mxu0 %v268
    %735 = vmatprep.subr.mxu0 %v265
    %736 = vmatpush2.msra.mxu0 %v264
    %737 = vmatprep.subr.mxu0 %v261
    %738 = vmatpush2.msra.mxu0 %v260
    %739 = vmatprep.subr.mxu0 %v257
    %740 = vmatpush2.msra.mxu0 %v256
    %741 = vmatprep.subr.mxu0 %v253
    %742 = vmatpush2.msra.mxu0 %v252
    %743 = vmatprep.subr.mxu0 %v249
    %744 = vmatpush2.msra.mxu0 %v248
    %745 = vmatprep.subr.mxu0 %v245
    %746 = vmatpush2.msra.mxu0 %v244
    %747 = vmatprep.subr.mxu0 %v241
    %748 = vmatpush2.msra.mxu0 %v240
    %749 = vmatprep.subr.mxu0 %v237
    %750 = vmatpush2.msra.mxu0 %v236
    %751 = vmatprep.subr.mxu0 %v233
    %752 = vmatpush2.msra.mxu0 %v232
    %753 = vmatprep.subr.mxu0 %v229
    %754 = vmatpush2.msra.mxu0 %v228
    %755 = vmatprep.subr.mxu0 %v225
    %756 = vmatpush2.msra.mxu0 %v224
    %757 = vmatprep.subr.mxu0 %v221
    %758 = vmatpush2.msra.mxu0 %v220
    %759 = vmatprep.subr.mxu0 %v217
    %760 = vmatpush2.msra.mxu0 %v216
    %761 = vmatprep.mubr.f32.mxu0 0.0
    %762 = vmatmul.mubr.f32.gmra.mxu0 %v604
    %v763 = vpop.f32.mrf.mxu0
    %v764 = vadd.f32 %v617, %v763
    %v765 = vpop.f32.mrf.mxu0
    %v766 = vadd.f32 %v621, %v765
    %767 = vdwg.mxu0
    %v768 = vxor.u32 %v693, 2147483648
    %v769 = vmul.f32 %v768, 1.442695
    %v770 = vpow.pop %v769
    %v771 = vadd.f32 %v770, 1.0
    %v772 = vrcp.pop %v771
    %v773 = vmul.f32 1.0, %v772
    %v774 = vxor.u32 %v695, 2147483648
    %v775 = vmul.f32 %v774, 1.442695
    %v776 = vpow.pop %v775
    %v777 = vadd.f32 %v776, 1.0
    %v778 = vrcp.pop %v777
    %v779 = vmul.f32 1.0, %v778
    %v780 = vtanh.pop %v764
    %v781 = vxor.u32 %v766, 2147483648
    %v782 = vmul.f32 %v781, 1.442695
    %v783 = vpow.pop %v782
    %v784 = vadd.f32 %v783, 1.0
    %v785 = vrcp.pop %v784
    %v786 = vmul.f32 1.0, %v785
    %v787 = vmul.f32 %v779, 0.0
    %v788 = vmul.f32 %v773, %v780
    %v789 = vadd.f32 %v787, %v788
    %v790 = vtanh.pop %v789
    %v791 = vmul.f32 %v786, %v790
    %792 = vst [vmem:[#allocation2] sm:$0x3] %v791
    %s793 = scalar_lea.vmem [#allocation4], 8
    %v794 = vld [vmem:[%s793] sm:$0xff]
    %795 = vmatprep.subr.mxu0 %v147
    %796 = vmatpush1.msra.mxu0 %v146
    %797 = vmatprep.subr.mxu0 %v143
    %798 = vmatpush1.msra.mxu0 %v142
    %799 = vmatprep.subr.mxu0 %v139
    %800 = vmatpush1.msra.mxu0 %v138
    %801 = vmatprep.subr.mxu0 %v135
    %802 = vmatpush1.msra.mxu0 %v134
    %803 = vmatprep.subr.mxu0 %v131
    %804 = vmatpush1.msra.mxu0 %v130
    %805 = vmatprep.subr.mxu0 %v127
    %806 = vmatpush1.msra.mxu0 %v126
    %807 = vmatprep.subr.mxu0 %v123
    %808 = vmatpush1.msra.mxu0 %v122
    %809 = vmatprep.subr.mxu0 %v119
    %810 = vmatpush1.msra.mxu0 %v118
    %811 = vmatprep.subr.mxu0 %v115
    %812 = vmatpush1.msra.mxu0 %v114
    %813 = vmatprep.subr.mxu0 %v111
    %814 = vmatpush1.msra.mxu0 %v110
    %815 = vmatprep.subr.mxu0 %v107
    %816 = vmatpush1.msra.mxu0 %v106
    %817 = vmatprep.subr.mxu0 %v103
    %818 = vmatpush1.msra.mxu0 %v102
    %819 = vmatprep.subr.mxu0 %v99
    %820 = vmatpush1.msra.mxu0 %v98
    %821 = vmatprep.subr.mxu0 %v95
    %822 = vmatpush1.msra.mxu0 %v94
    %823 = vmatprep.subr.mxu0 %v91
    %824 = vmatpush1.msra.mxu0 %v90
    %825 = vmatprep.subr.mxu0 %v87
    %826 = vmatpush1.msra.mxu0 %v86
    %827 = vmatprep.subr.mxu0 0.0
    %828 = vmatpush2.msra.mxu0 0.0
    %829 = vmatprep.subr.mxu0 0.0
    %830 = vmatpush2.msra.mxu0 0.0
    %831 = vmatprep.subr.mxu0 0.0
    %832 = vmatpush2.msra.mxu0 0.0
    %833 = vmatprep.subr.mxu0 0.0
    %834 = vmatpush2.msra.mxu0 0.0
    %835 = vmatprep.subr.mxu0 0.0
    %836 = vmatpush2.msra.mxu0 0.0
    %837 = vmatprep.subr.mxu0 0.0
    %838 = vmatpush2.msra.mxu0 0.0
    %839 = vmatprep.subr.mxu0 0.0
    %840 = vmatpush2.msra.mxu0 0.0
    %841 = vmatprep.subr.mxu0 0.0
    %842 = vmatpush2.msra.mxu0 0.0
    %843 = vmatprep.subr.mxu0 0.0
    %844 = vmatpush2.msra.mxu0 0.0
    %845 = vmatprep.subr.mxu0 0.0
    %846 = vmatpush2.msra.mxu0 0.0
    %847 = vmatprep.subr.mxu0 0.0
    %848 = vmatpush2.msra.mxu0 0.0
    %849 = vmatprep.subr.mxu0 0.0
    %850 = vmatpush2.msra.mxu0 0.0
    %851 = vmatprep.subr.mxu0 0.0
    %852 = vmatpush2.msra.mxu0 0.0
    %853 = vmatprep.subr.mxu0 0.0
    %854 = vmatpush2.msra.mxu0 0.0
    %855 = vmatprep.subr.mxu0 0.0
    %856 = vmatpush2.msra.mxu0 0.0
    %857 = vmatprep.subr.mxu0 0.0
    %858 = vmatpush2.msra.mxu0 0.0
    %859 = vmatprep.mubr.f32.mxu0 0.0
    %860 = vmatmul.mubr.f32.gmra.mxu0 %v604
    %v861 = vpop.f32.mrf.mxu0
    %v862 = vadd.f32 0.0, %v861
    %v863 = vpop.f32.mrf.mxu0
    %v864 = vadd.f32 0.0, %v863
    %865 = vdwg.mxu0
    %866 = vmatprep.subr.mxu0 %v149
    %867 = vmatpush1.msra.mxu0 %v148
    %868 = vmatprep.subr.mxu0 %v145
    %869 = vmatpush1.msra.mxu0 %v144
    %870 = vmatprep.subr.mxu0 %v141
    %871 = vmatpush1.msra.mxu0 %v140
    %872 = vmatprep.subr.mxu0 %v137
    %873 = vmatpush1.msra.mxu0 %v136
    %874 = vmatprep.subr.mxu0 %v133
    %875 = vmatpush1.msra.mxu0 %v132
    %876 = vmatprep.subr.mxu0 %v129
    %877 = vmatpush1.msra.mxu0 %v128
    %878 = vmatprep.subr.mxu0 %v125
    %879 = vmatpush1.msra.mxu0 %v124
    %880 = vmatprep.subr.mxu0 %v121
    %881 = vmatpush1.msra.mxu0 %v120
    %882 = vmatprep.subr.mxu0 %v117
    %883 = vmatpush1.msra.mxu0 %v116
    %884 = vmatprep.subr.mxu0 %v113
    %885 = vmatpush1.msra.mxu0 %v112
    %886 = vmatprep.subr.mxu0 %v109
    %887 = vmatpush1.msra.mxu0 %v108
    %888 = vmatprep.subr.mxu0 %v105
    %889 = vmatpush1.msra.mxu0 %v104
    %890 = vmatprep.subr.mxu0 %v101
    %891 = vmatpush1.msra.mxu0 %v100
    %892 = vmatprep.subr.mxu0 %v97
    %893 = vmatpush1.msra.mxu0 %v96
    %894 = vmatprep.subr.mxu0 %v93
    %895 = vmatpush1.msra.mxu0 %v92
    %896 = vmatprep.subr.mxu0 %v89
    %897 = vmatpush1.msra.mxu0 %v88
    %898 = vmatprep.subr.mxu0 0.0
    %899 = vmatpush2.msra.mxu0 0.0
    %900 = vmatprep.subr.mxu0 0.0
    %901 = vmatpush2.msra.mxu0 0.0
    %902 = vmatprep.subr.mxu0 0.0
    %903 = vmatpush2.msra.mxu0 0.0
    %904 = vmatprep.subr.mxu0 0.0
    %905 = vmatpush2.msra.mxu0 0.0
    %906 = vmatprep.subr.mxu0 0.0
    %907 = vmatpush2.msra.mxu0 0.0
    %908 = vmatprep.subr.mxu0 0.0
    %909 = vmatpush2.msra.mxu0 0.0
    %910 = vmatprep.subr.mxu0 0.0
    %911 = vmatpush2.msra.mxu0 0.0
    %912 = vmatprep.subr.mxu0 0.0
    %913 = vmatpush2.msra.mxu0 0.0
    %914 = vmatprep.subr.mxu0 0.0
    %915 = vmatpush2.msra.mxu0 0.0
    %916 = vmatprep.subr.mxu0 0.0
    %917 = vmatpush2.msra.mxu0 0.0
    %918 = vmatprep.subr.mxu0 0.0
    %919 = vmatpush2.msra.mxu0 0.0
    %920 = vmatprep.subr.mxu0 0.0
    %921 = vmatpush2.msra.mxu0 0.0
    %922 = vmatprep.subr.mxu0 0.0
    %923 = vmatpush2.msra.mxu0 0.0
    %924 = vmatprep.subr.mxu0 0.0
    %925 = vmatpush2.msra.mxu0 0.0
    %926 = vmatprep.subr.mxu0 0.0
    %927 = vmatpush2.msra.mxu0 0.0
    %928 = vmatprep.subr.mxu0 0.0
    %929 = vmatpush2.msra.mxu0 0.0
    %930 = vmatprep.mubr.f32.mxu0 0.0
    %931 = vmatmul.mubr.f32.gmra.mxu0 %v604
    %v932 = vpop.f32.mrf.mxu0
    %v933 = vadd.f32 0.0, %v932
    %v934 = vpop.f32.mrf.mxu0
    %v935 = vadd.f32 0.0, %v934
    %936 = vdwg.mxu0
    %v941 = vcombine.low %v862, %v864
    %v942 = vcombine.low %v933, %v935
    %v944 = vunpack.c.l.s4 1983009808
    %v945 = vunpack.c.0.s8 %v944
    %v946 = vlaneseq
    %v947 = vshrl.u32 %v946, 7
    %v948 = vsub.s32 %v945, %v947
    %v949 = vrot.slane %v941, %v948
    %v951 = vunpack.c.l.s4 1983009808
    %v952 = vunpack.c.0.s8 %v951
    %v953 = vlaneseq
    %v954 = vshrl.u32 %v953, 7
    %v955 = vsub.s32 %v952, %v954
    %v956 = vrot.slane %v942, %v955
    %v957 = vcombine.low %v949, %v956
    %v959 = vadd.f32 %v794, %v957
    %v960 = vxor.u32 %v959, 2147483648
    %v961 = vmul.f32 %v960, 1.442695
    %v962 = vpow.pop %v961
    %v963 = vadd.f32 %v962, 1.0
    %v964 = vrcp.pop %v963
    %v965 = vmul.f32 1.0, %v964
    %v967 = vrot.slane %v959, 2
    %v969 = vxor.u32 %v967, 2147483648
    %v970 = vmul.f32 %v969, 1.442695
    %v971 = vpow.pop %v970
    %v972 = vadd.f32 %v971, 1.0
    %v973 = vrcp.pop %v972
    %v974 = vmul.f32 1.0, %v973
    %v975 = vrot.slane %v959, 4
    %v977 = vtanh.pop %v975
    %v978 = vrot.slane %v959, 6
    %v980 = vxor.u32 %v978, 2147483648
    %v981 = vmul.f32 %v980, 1.442695
    %v982 = vpow.pop %v981
    %v983 = vadd.f32 %v982, 1.0
    %v984 = vrcp.pop %v983
    %v985 = vmul.f32 1.0, %v984
    %v986 = vmul.f32 %v974, %v602
    %v987 = vmul.f32 %v965, %v977
    %v988 = vadd.f32 %v986, %v987
    %v989 = vtanh.pop %v988
    %v990 = vmul.f32 %v985, %v989
    %991 = vmatprep.subr.mxu0 %v211
    %992 = vmatpush1.msra.mxu0 %v210
    %993 = vmatprep.subr.mxu0 %v207
    %994 = vmatpush1.msra.mxu0 %v206
    %995 = vmatprep.subr.mxu0 %v203
    %996 = vmatpush1.msra.mxu0 %v202
    %997 = vmatprep.subr.mxu0 %v199
    %998 = vmatpush1.msra.mxu0 %v198
    %999 = vmatprep.subr.mxu0 %v195
    %1000 = vmatpush1.msra.mxu0 %v194
    %1001 = vmatprep.subr.mxu0 %v191
    %1002 = vmatpush1.msra.mxu0 %v190
    %1003 = vmatprep.subr.mxu0 %v187
    %1004 = vmatpush1.msra.mxu0 %v186
    %1005 = vmatprep.subr.mxu0 %v183
    %1006 = vmatpush1.msra.mxu0 %v182
    %1007 = vmatprep.subr.mxu0 %v179
    %1008 = vmatpush1.msra.mxu0 %v178
    %1009 = vmatprep.subr.mxu0 %v175
    %1010 = vmatpush1.msra.mxu0 %v174
    %1011 = vmatprep.subr.mxu0 %v171
    %1012 = vmatpush1.msra.mxu0 %v170
    %1013 = vmatprep.subr.mxu0 %v167
    %1014 = vmatpush1.msra.mxu0 %v166
    %1015 = vmatprep.subr.mxu0 %v163
    %1016 = vmatpush1.msra.mxu0 %v162
    %1017 = vmatprep.subr.mxu0 %v159
    %1018 = vmatpush1.msra.mxu0 %v158
    %1019 = vmatprep.subr.mxu0 %v155
    %1020 = vmatpush1.msra.mxu0 %v154
    %1021 = vmatprep.subr.mxu0 %v151
    %1022 = vmatpush1.msra.mxu0 %v150
    %1023 = vmatprep.subr.mxu0 %v275
    %1024 = vmatpush2.msra.mxu0 %v274
    %1025 = vmatprep.subr.mxu0 %v271
    %1026 = vmatpush2.msra.mxu0 %v270
    %1027 = vmatprep.subr.mxu0 %v267
    %1028 = vmatpush2.msra.mxu0 %v266
    %1029 = vmatprep.subr.mxu0 %v263
    %1030 = vmatpush2.msra.mxu0 %v262
    %1031 = vmatprep.subr.mxu0 %v259
    %1032 = vmatpush2.msra.mxu0 %v258
    %1033 = vmatprep.subr.mxu0 %v255
    %1034 = vmatpush2.msra.mxu0 %v254
    %1035 = vmatprep.subr.mxu0 %v251
    %1036 = vmatpush2.msra.mxu0 %v250
    %1037 = vmatprep.subr.mxu0 %v247
    %1038 = vmatpush2.msra.mxu0 %v246
    %1039 = vmatprep.subr.mxu0 %v243
    %1040 = vmatpush2.msra.mxu0 %v242
    %1041 = vmatprep.subr.mxu0 %v239
    %1042 = vmatpush2.msra.mxu0 %v238
    %1043 = vmatprep.subr.mxu0 %v235
    %1044 = vmatpush2.msra.mxu0 %v234
    %1045 = vmatprep.subr.mxu0 %v231
    %1046 = vmatpush2.msra.mxu0 %v230
    %1047 = vmatprep.subr.mxu0 %v227
    %1048 = vmatpush2.msra.mxu0 %v226
    %1049 = vmatprep.subr.mxu0 %v223
    %1050 = vmatpush2.msra.mxu0 %v222
    %1051 = vmatprep.subr.mxu0 %v219
    %1052 = vmatpush2.msra.mxu0 %v218
    %1053 = vmatprep.subr.mxu0 %v215
    %1054 = vmatpush2.msra.mxu0 %v214
    %1055 = vmatprep.mubr.f32.mxu0 %v791
    %1056 = vmatmul.mubr.f32.gmra.mxu0 %v990
    %v1057 = vpop.f32.mrf.mxu0
    %v1058 = vadd.f32 %v609, %v1057
    %v1059 = vpop.f32.mrf.mxu0
    %v1060 = vadd.f32 %v613, %v1059
    %1061 = vdwg.mxu0
    %1062 = vmatprep.subr.mxu0 %v213
    %1063 = vmatpush1.msra.mxu0 %v212
    %1064 = vmatprep.subr.mxu0 %v209
    %1065 = vmatpush1.msra.mxu0 %v208
    %1066 = vmatprep.subr.mxu0 %v205
    %1067 = vmatpush1.msra.mxu0 %v204
    %1068 = vmatprep.subr.mxu0 %v201
    %1069 = vmatpush1.msra.mxu0 %v200
    %1070 = vmatprep.subr.mxu0 %v197
    %1071 = vmatpush1.msra.mxu0 %v196
    %1072 = vmatprep.subr.mxu0 %v193
    %1073 = vmatpush1.msra.mxu0 %v192
    %1074 = vmatprep.subr.mxu0 %v189
    %1075 = vmatpush1.msra.mxu0 %v188
    %1076 = vmatprep.subr.mxu0 %v185
    %1077 = vmatpush1.msra.mxu0 %v184
    %1078 = vmatprep.subr.mxu0 %v181
    %1079 = vmatpush1.msra.mxu0 %v180
    %1080 = vmatprep.subr.mxu0 %v177
    %1081 = vmatpush1.msra.mxu0 %v176
    %1082 = vmatprep.subr.mxu0 %v173
    %1083 = vmatpush1.msra.mxu0 %v172
    %1084 = vmatprep.subr.mxu0 %v169
    %1085 = vmatpush1.msra.mxu0 %v168
    %1086 = vmatprep.subr.mxu0 %v165
    %1087 = vmatpush1.msra.mxu0 %v164
    %1088 = vmatprep.subr.mxu0 %v161
    %1089 = vmatpush1.msra.mxu0 %v160
    %1090 = vmatprep.subr.mxu0 %v157
    %1091 = vmatpush1.msra.mxu0 %v156
    %1092 = vmatprep.subr.mxu0 %v153
    %1093 = vmatpush1.msra.mxu0 %v152
    %1094 = vmatprep.subr.mxu0 %v277
    %1095 = vmatpush2.msra.mxu0 %v276
    %1096 = vmatprep.subr.mxu0 %v273
    %1097 = vmatpush2.msra.mxu0 %v272
    %1098 = vmatprep.subr.mxu0 %v269
    %1099 = vmatpush2.msra.mxu0 %v268
    %1100 = vmatprep.subr.mxu0 %v265
    %1101 = vmatpush2.msra.mxu0 %v264
    %1102 = vmatprep.subr.mxu0 %v261
    %1103 = vmatpush2.msra.mxu0 %v260
    %1104 = vmatprep.subr.mxu0 %v257
    %1105 = vmatpush2.msra.mxu0 %v256
    %1106 = vmatprep.subr.mxu0 %v253
    %1107 = vmatpush2.msra.mxu0 %v252
    %1108 = vmatprep.subr.mxu0 %v249
    %1109 = vmatpush2.msra.mxu0 %v248
    %1110 = vmatprep.subr.mxu0 %v245
    %1111 = vmatpush2.msra.mxu0 %v244
    %1112 = vmatprep.subr.mxu0 %v241
    %1113 = vmatpush2.msra.mxu0 %v240
    %1114 = vmatprep.subr.mxu0 %v237
    %1115 = vmatpush2.msra.mxu0 %v236
    %1116 = vmatprep.subr.mxu0 %v233
    %1117 = vmatpush2.msra.mxu0 %v232
    %1118 = vmatprep.subr.mxu0 %v229
    %1119 = vmatpush2.msra.mxu0 %v228
    %1120 = vmatprep.subr.mxu0 %v225
    %1121 = vmatpush2.msra.mxu0 %v224
    %1122 = vmatprep.subr.mxu0 %v221
    %1123 = vmatpush2.msra.mxu0 %v220
    %1124 = vmatprep.subr.mxu0 %v217
    %1125 = vmatpush2.msra.mxu0 %v216
    %1126 = vmatprep.mubr.f32.mxu0 %v791
    %1127 = vmatmul.mubr.f32.gmra.mxu0 %v990
    %v1128 = vpop.f32.mrf.mxu0
    %v1129 = vadd.f32 %v617, %v1128
    %v1130 = vpop.f32.mrf.mxu0
    %v1131 = vadd.f32 %v621, %v1130
    %1132 = vdwg.mxu0
    %v1133 = vxor.u32 %v1058, 2147483648
    %v1134 = vmul.f32 %v1133, 1.442695
    %v1135 = vpow.pop %v1134
    %v1136 = vadd.f32 %v1135, 1.0
    %v1137 = vrcp.pop %v1136
    %v1138 = vmul.f32 1.0, %v1137
    %v1139 = vxor.u32 %v1060, 2147483648
    %v1140 = vmul.f32 %v1139, 1.442695
    %v1141 = vpow.pop %v1140
    %v1142 = vadd.f32 %v1141, 1.0
    %v1143 = vrcp.pop %v1142
    %v1144 = vmul.f32 1.0, %v1143
    %v1145 = vtanh.pop %v1129
    %v1146 = vxor.u32 %v1131, 2147483648
    %v1147 = vmul.f32 %v1146, 1.442695
    %v1148 = vpow.pop %v1147
    %v1149 = vadd.f32 %v1148, 1.0
    %v1150 = vrcp.pop %v1149
    %v1151 = vmul.f32 1.0, %v1150
    %v1152 = vmul.f32 %v1144, %v789
    %v1153 = vmul.f32 %v1138, %v1145
    %v1154 = vadd.f32 %v1152, %v1153
    %v1155 = vtanh.pop %v1154
    %v1156 = vmul.f32 %v1151, %v1155
    %s1157 = scalar_lea.vmem [#allocation2], 2
    %1158 = vst [vmem:[%s1157] sm:$0x3] %v1156
    %s1159 = scalar_lea.vmem [#allocation4], 16
    %v1160 = vld [vmem:[%s1159] sm:$0xff]
    %1161 = vmatprep.subr.mxu0 %v147
    %1162 = vmatpush1.msra.mxu0 %v146
    %1163 = vmatprep.subr.mxu0 %v143
    %1164 = vmatpush1.msra.mxu0 %v142
    %1165 = vmatprep.subr.mxu0 %v139
    %1166 = vmatpush1.msra.mxu0 %v138
    %1167 = vmatprep.subr.mxu0 %v135
    %1168 = vmatpush1.msra.mxu0 %v134
    %1169 = vmatprep.subr.mxu0 %v131
    %1170 = vmatpush1.msra.mxu0 %v130
    %1171 = vmatprep.subr.mxu0 %v127
    %1172 = vmatpush1.msra.mxu0 %v126
    %1173 = vmatprep.subr.mxu0 %v123
    %1174 = vmatpush1.msra.mxu0 %v122
    %1175 = vmatprep.subr.mxu0 %v119
    %1176 = vmatpush1.msra.mxu0 %v118
    %1177 = vmatprep.subr.mxu0 %v115
    %1178 = vmatpush1.msra.mxu0 %v114
    %1179 = vmatprep.subr.mxu0 %v111
    %1180 = vmatpush1.msra.mxu0 %v110
    %1181 = vmatprep.subr.mxu0 %v107
    %1182 = vmatpush1.msra.mxu0 %v106
    %1183 = vmatprep.subr.mxu0 %v103
    %1184 = vmatpush1.msra.mxu0 %v102
    %1185 = vmatprep.subr.mxu0 %v99
    %1186 = vmatpush1.msra.mxu0 %v98
    %1187 = vmatprep.subr.mxu0 %v95
    %1188 = vmatpush1.msra.mxu0 %v94
    %1189 = vmatprep.subr.mxu0 %v91
    %1190 = vmatpush1.msra.mxu0 %v90
    %1191 = vmatprep.subr.mxu0 %v87
    %1192 = vmatpush1.msra.mxu0 %v86
    %1193 = vmatprep.subr.mxu0 0.0
    %1194 = vmatpush2.msra.mxu0 0.0
    %1195 = vmatprep.subr.mxu0 0.0
    %1196 = vmatpush2.msra.mxu0 0.0
    %1197 = vmatprep.subr.mxu0 0.0
    %1198 = vmatpush2.msra.mxu0 0.0
    %1199 = vmatprep.subr.mxu0 0.0
    %1200 = vmatpush2.msra.mxu0 0.0
    %1201 = vmatprep.subr.mxu0 0.0
    %1202 = vmatpush2.msra.mxu0 0.0
    %1203 = vmatprep.subr.mxu0 0.0
    %1204 = vmatpush2.msra.mxu0 0.0
    %1205 = vmatprep.subr.mxu0 0.0
    %1206 = vmatpush2.msra.mxu0 0.0
    %1207 = vmatprep.subr.mxu0 0.0
    %1208 = vmatpush2.msra.mxu0 0.0
    %1209 = vmatprep.subr.mxu0 0.0
    %1210 = vmatpush2.msra.mxu0 0.0
    %1211 = vmatprep.subr.mxu0 0.0
    %1212 = vmatpush2.msra.mxu0 0.0
    %1213 = vmatprep.subr.mxu0 0.0
    %1214 = vmatpush2.msra.mxu0 0.0
    %1215 = vmatprep.subr.mxu0 0.0
    %1216 = vmatpush2.msra.mxu0 0.0
    %1217 = vmatprep.subr.mxu0 0.0
    %1218 = vmatpush2.msra.mxu0 0.0
    %1219 = vmatprep.subr.mxu0 0.0
    %1220 = vmatpush2.msra.mxu0 0.0
    %1221 = vmatprep.subr.mxu0 0.0
    %1222 = vmatpush2.msra.mxu0 0.0
    %1223 = vmatprep.subr.mxu0 0.0
    %1224 = vmatpush2.msra.mxu0 0.0
    %1225 = vmatprep.mubr.f32.mxu0 0.0
    %1226 = vmatmul.mubr.f32.gmra.mxu0 %v990
    %v1227 = vpop.f32.mrf.mxu0
    %v1228 = vadd.f32 0.0, %v1227
    %v1229 = vpop.f32.mrf.mxu0
    %v1230 = vadd.f32 0.0, %v1229
    %1231 = vdwg.mxu0
    %1232 = vmatprep.subr.mxu0 %v149
    %1233 = vmatpush1.msra.mxu0 %v148
    %1234 = vmatprep.subr.mxu0 %v145
    %1235 = vmatpush1.msra.mxu0 %v144
    %1236 = vmatprep.subr.mxu0 %v141
    %1237 = vmatpush1.msra.mxu0 %v140
    %1238 = vmatprep.subr.mxu0 %v137
    %1239 = vmatpush1.msra.mxu0 %v136
    %1240 = vmatprep.subr.mxu0 %v133
    %1241 = vmatpush1.msra.mxu0 %v132
    %1242 = vmatprep.subr.mxu0 %v129
    %1243 = vmatpush1.msra.mxu0 %v128
    %1244 = vmatprep.subr.mxu0 %v125
    %1245 = vmatpush1.msra.mxu0 %v124
    %1246 = vmatprep.subr.mxu0 %v121
    %1247 = vmatpush1.msra.mxu0 %v120
    %1248 = vmatprep.subr.mxu0 %v117
    %1249 = vmatpush1.msra.mxu0 %v116
    %1250 = vmatprep.subr.mxu0 %v113
    %1251 = vmatpush1.msra.mxu0 %v112
    %1252 = vmatprep.subr.mxu0 %v109
    %1253 = vmatpush1.msra.mxu0 %v108
    %1254 = vmatprep.subr.mxu0 %v105
    %1255 = vmatpush1.msra.mxu0 %v104
    %1256 = vmatprep.subr.mxu0 %v101
    %1257 = vmatpush1.msra.mxu0 %v100
    %1258 = vmatprep.subr.mxu0 %v97
    %1259 = vmatpush1.msra.mxu0 %v96
    %1260 = vmatprep.subr.mxu0 %v93
    %1261 = vmatpush1.msra.mxu0 %v92
    %1262 = vmatprep.subr.mxu0 %v89
    %1263 = vmatpush1.msra.mxu0 %v88
    %1264 = vmatprep.subr.mxu0 0.0
    %1265 = vmatpush2.msra.mxu0 0.0
    %1266 = vmatprep.subr.mxu0 0.0
    %1267 = vmatpush2.msra.mxu0 0.0
    %1268 = vmatprep.subr.mxu0 0.0
    %1269 = vmatpush2.msra.mxu0 0.0
    %1270 = vmatprep.subr.mxu0 0.0
    %1271 = vmatpush2.msra.mxu0 0.0
    %1272 = vmatprep.subr.mxu0 0.0
    %1273 = vmatpush2.msra.mxu0 0.0
    %1274 = vmatprep.subr.mxu0 0.0
    %1275 = vmatpush2.msra.mxu0 0.0
    %1276 = vmatprep.subr.mxu0 0.0
    %1277 = vmatpush2.msra.mxu0 0.0
    %1278 = vmatprep.subr.mxu0 0.0
    %1279 = vmatpush2.msra.mxu0 0.0
    %1280 = vmatprep.subr.mxu0 0.0
    %1281 = vmatpush2.msra.mxu0 0.0
    %1282 = vmatprep.subr.mxu0 0.0
    %1283 = vmatpush2.msra.mxu0 0.0
    %1284 = vmatprep.subr.mxu0 0.0
    %1285 = vmatpush2.msra.mxu0 0.0
    %1286 = vmatprep.subr.mxu0 0.0
    %1287 = vmatpush2.msra.mxu0 0.0
    %1288 = vmatprep.subr.mxu0 0.0
    %1289 = vmatpush2.msra.mxu0 0.0
    %1290 = vmatprep.subr.mxu0 0.0
    %1291 = vmatpush2.msra.mxu0 0.0
    %1292 = vmatprep.subr.mxu0 0.0
    %1293 = vmatpush2.msra.mxu0 0.0
    %1294 = vmatprep.subr.mxu0 0.0
    %1295 = vmatpush2.msra.mxu0 0.0
    %1296 = vmatprep.mubr.f32.mxu0 0.0
    %1297 = vmatmul.mubr.f32.gmra.mxu0 %v990
    %v1298 = vpop.f32.mrf.mxu0
    %v1299 = vadd.f32 0.0, %v1298
    %v1300 = vpop.f32.mrf.mxu0
    %v1301 = vadd.f32 0.0, %v1300
    %1302 = vdwg.mxu0
    %v1307 = vcombine.low %v1228, %v1230
    %v1308 = vcombine.low %v1299, %v1301
    %v1310 = vunpack.c.l.s4 1983009808
    %v1311 = vunpack.c.0.s8 %v1310
    %v1312 = vlaneseq
    %v1313 = vshrl.u32 %v1312, 7
    %v1314 = vsub.s32 %v1311, %v1313
    %v1315 = vrot.slane %v1307, %v1314
    %v1317 = vunpack.c.l.s4 1983009808
    %v1318 = vunpack.c.0.s8 %v1317
    %v1319 = vlaneseq
    %v1320 = vshrl.u32 %v1319, 7
    %v1321 = vsub.s32 %v1318, %v1320
    %v1322 = vrot.slane %v1308, %v1321
    %v1323 = vcombine.low %v1315, %v1322
    %v1325 = vadd.f32 %v1160, %v1323
    %v1326 = vxor.u32 %v1325, 2147483648
    %v1327 = vmul.f32 %v1326, 1.442695
    %v1328 = vpow.pop %v1327
    %v1329 = vadd.f32 %v1328, 1.0
    %v1330 = vrcp.pop %v1329
    %v1331 = vmul.f32 1.0, %v1330
    %v1333 = vrot.slane %v1325, 2
    %v1335 = vxor.u32 %v1333, 2147483648
    %v1336 = vmul.f32 %v1335, 1.442695
    %v1337 = vpow.pop %v1336
    %v1338 = vadd.f32 %v1337, 1.0
    %v1339 = vrcp.pop %v1338
    %v1340 = vmul.f32 1.0, %v1339
    %v1341 = vrot.slane %v1325, 4
    %v1343 = vtanh.pop %v1341
    %v1344 = vrot.slane %v1325, 6
    %v1346 = vxor.u32 %v1344, 2147483648
    %v1347 = vmul.f32 %v1346, 1.442695
    %v1348 = vpow.pop %v1347
    %v1349 = vadd.f32 %v1348, 1.0
    %v1350 = vrcp.pop %v1349
    %v1351 = vmul.f32 1.0, %v1350
    %v1352 = vmul.f32 %v1340, %v988
    %v1353 = vmul.f32 %v1331, %v1343
    %v1354 = vadd.f32 %v1352, %v1353
    %v1355 = vtanh.pop %v1354
    %v1356 = vmul.f32 %v1351, %v1355
    %1357 = vmatprep.subr.mxu0 %v211
    %1358 = vmatpush1.msra.mxu0 %v210
    %1359 = vmatprep.subr.mxu0 %v207
    %1360 = vmatpush1.msra.mxu0 %v206
    %1361 = vmatprep.subr.mxu0 %v203
    %1362 = vmatpush1.msra.mxu0 %v202
    %1363 = vmatprep.subr.mxu0 %v199
    %1364 = vmatpush1.msra.mxu0 %v198
    %1365 = vmatprep.subr.mxu0 %v195
    %1366 = vmatpush1.msra.mxu0 %v194
    %1367 = vmatprep.subr.mxu0 %v191
    %1368 = vmatpush1.msra.mxu0 %v190
    %1369 = vmatprep.subr.mxu0 %v187
    %1370 = vmatpush1.msra.mxu0 %v186
    %1371 = vmatprep.subr.mxu0 %v183
    %1372 = vmatpush1.msra.mxu0 %v182
    %1373 = vmatprep.subr.mxu0 %v179
    %1374 = vmatpush1.msra.mxu0 %v178
    %1375 = vmatprep.subr.mxu0 %v175
    %1376 = vmatpush1.msra.mxu0 %v174
    %1377 = vmatprep.subr.mxu0 %v171
    %1378 = vmatpush1.msra.mxu0 %v170
    %1379 = vmatprep.subr.mxu0 %v167
    %1380 = vmatpush1.msra.mxu0 %v166
    %1381 = vmatprep.subr.mxu0 %v163
    %1382 = vmatpush1.msra.mxu0 %v162
    %1383 = vmatprep.subr.mxu0 %v159
    %1384 = vmatpush1.msra.mxu0 %v158
    %1385 = vmatprep.subr.mxu0 %v155
    %1386 = vmatpush1.msra.mxu0 %v154
    %1387 = vmatprep.subr.mxu0 %v151
    %1388 = vmatpush1.msra.mxu0 %v150
    %1389 = vmatprep.subr.mxu0 %v275
    %1390 = vmatpush2.msra.mxu0 %v274
    %1391 = vmatprep.subr.mxu0 %v271
    %1392 = vmatpush2.msra.mxu0 %v270
    %1393 = vmatprep.subr.mxu0 %v267
    %1394 = vmatpush2.msra.mxu0 %v266
    %1395 = vmatprep.subr.mxu0 %v263
    %1396 = vmatpush2.msra.mxu0 %v262
    %1397 = vmatprep.subr.mxu0 %v259
    %1398 = vmatpush2.msra.mxu0 %v258
    %1399 = vmatprep.subr.mxu0 %v255
    %1400 = vmatpush2.msra.mxu0 %v254
    %1401 = vmatprep.subr.mxu0 %v251
    %1402 = vmatpush2.msra.mxu0 %v250
    %1403 = vmatprep.subr.mxu0 %v247
    %1404 = vmatpush2.msra.mxu0 %v246
    %1405 = vmatprep.subr.mxu0 %v243
    %1406 = vmatpush2.msra.mxu0 %v242
    %1407 = vmatprep.subr.mxu0 %v239
    %1408 = vmatpush2.msra.mxu0 %v238
    %1409 = vmatprep.subr.mxu0 %v235
    %1410 = vmatpush2.msra.mxu0 %v234
    %1411 = vmatprep.subr.mxu0 %v231
    %1412 = vmatpush2.msra.mxu0 %v230
    %1413 = vmatprep.subr.mxu0 %v227
    %1414 = vmatpush2.msra.mxu0 %v226
    %1415 = vmatprep.subr.mxu0 %v223
    %1416 = vmatpush2.msra.mxu0 %v222
    %1417 = vmatprep.subr.mxu0 %v219
    %1418 = vmatpush2.msra.mxu0 %v218
    %1419 = vmatprep.subr.mxu0 %v215
    %1420 = vmatpush2.msra.mxu0 %v214
    %1421 = vmatprep.mubr.f32.mxu0 %v1156
    %1422 = vmatmul.mubr.f32.gmra.mxu0 %v1356
    %v1423 = vpop.f32.mrf.mxu0
    %v1424 = vadd.f32 %v609, %v1423
    %v1425 = vpop.f32.mrf.mxu0
    %v1426 = vadd.f32 %v613, %v1425
    %1427 = vdwg.mxu0
    %1428 = vmatprep.subr.mxu0 %v213
    %1429 = vmatpush1.msra.mxu0 %v212
    %1430 = vmatprep.subr.mxu0 %v209
    %1431 = vmatpush1.msra.mxu0 %v208
    %1432 = vmatprep.subr.mxu0 %v205
    %1433 = vmatpush1.msra.mxu0 %v204
    %1434 = vmatprep.subr.mxu0 %v201
    %1435 = vmatpush1.msra.mxu0 %v200
    %1436 = vmatprep.subr.mxu0 %v197
    %1437 = vmatpush1.msra.mxu0 %v196
    %1438 = vmatprep.subr.mxu0 %v193
    %1439 = vmatpush1.msra.mxu0 %v192
    %1440 = vmatprep.subr.mxu0 %v189
    %1441 = vmatpush1.msra.mxu0 %v188
    %1442 = vmatprep.subr.mxu0 %v185
    %1443 = vmatpush1.msra.mxu0 %v184
    %1444 = vmatprep.subr.mxu0 %v181
    %1445 = vmatpush1.msra.mxu0 %v180
    %1446 = vmatprep.subr.mxu0 %v177
    %1447 = vmatpush1.msra.mxu0 %v176
    %1448 = vmatprep.subr.mxu0 %v173
    %1449 = vmatpush1.msra.mxu0 %v172
    %1450 = vmatprep.subr.mxu0 %v169
    %1451 = vmatpush1.msra.mxu0 %v168
    %1452 = vmatprep.subr.mxu0 %v165
    %1453 = vmatpush1.msra.mxu0 %v164
    %1454 = vmatprep.subr.mxu0 %v161
    %1455 = vmatpush1.msra.mxu0 %v160
    %1456 = vmatprep.subr.mxu0 %v157
    %1457 = vmatpush1.msra.mxu0 %v156
    %1458 = vmatprep.subr.mxu0 %v153
    %1459 = vmatpush1.msra.mxu0 %v152
    %1460 = vmatprep.subr.mxu0 %v277
    %1461 = vmatpush2.msra.mxu0 %v276
    %1462 = vmatprep.subr.mxu0 %v273
    %1463 = vmatpush2.msra.mxu0 %v272
    %1464 = vmatprep.subr.mxu0 %v269
    %1465 = vmatpush2.msra.mxu0 %v268
    %1466 = vmatprep.subr.mxu0 %v265
    %1467 = vmatpush2.msra.mxu0 %v264
    %1468 = vmatprep.subr.mxu0 %v261
    %1469 = vmatpush2.msra.mxu0 %v260
    %1470 = vmatprep.subr.mxu0 %v257
    %1471 = vmatpush2.msra.mxu0 %v256
    %1472 = vmatprep.subr.mxu0 %v253
    %1473 = vmatpush2.msra.mxu0 %v252
    %1474 = vmatprep.subr.mxu0 %v249
    %1475 = vmatpush2.msra.mxu0 %v248
    %1476 = vmatprep.subr.mxu0 %v245
    %1477 = vmatpush2.msra.mxu0 %v244
    %1478 = vmatprep.subr.mxu0 %v241
    %1479 = vmatpush2.msra.mxu0 %v240
    %1480 = vmatprep.subr.mxu0 %v237
    %1481 = vmatpush2.msra.mxu0 %v236
    %1482 = vmatprep.subr.mxu0 %v233
    %1483 = vmatpush2.msra.mxu0 %v232
    %1484 = vmatprep.subr.mxu0 %v229
    %1485 = vmatpush2.msra.mxu0 %v228
    %1486 = vmatprep.subr.mxu0 %v225
    %1487 = vmatpush2.msra.mxu0 %v224
    %1488 = vmatprep.subr.mxu0 %v221
    %1489 = vmatpush2.msra.mxu0 %v220
    %1490 = vmatprep.subr.mxu0 %v217
    %1491 = vmatpush2.msra.mxu0 %v216
    %1492 = vmatprep.mubr.f32.mxu0 %v1156
    %1493 = vmatmul.mubr.f32.gmra.mxu0 %v1356
    %v1494 = vpop.f32.mrf.mxu0
    %v1495 = vadd.f32 %v617, %v1494
    %v1496 = vpop.f32.mrf.mxu0
    %v1497 = vadd.f32 %v621, %v1496
    %1498 = vdwg.mxu0
    %v1499 = vxor.u32 %v1424, 2147483648
    %v1500 = vmul.f32 %v1499, 1.442695
    %v1501 = vpow.pop %v1500
    %v1502 = vadd.f32 %v1501, 1.0
    %v1503 = vrcp.pop %v1502
    %v1504 = vmul.f32 1.0, %v1503
    %v1505 = vxor.u32 %v1426, 2147483648
    %v1506 = vmul.f32 %v1505, 1.442695
    %v1507 = vpow.pop %v1506
    %v1508 = vadd.f32 %v1507, 1.0
    %v1509 = vrcp.pop %v1508
    %v1510 = vmul.f32 1.0, %v1509
    %v1511 = vtanh.pop %v1495
    %v1512 = vxor.u32 %v1497, 2147483648
    %v1513 = vmul.f32 %v1512, 1.442695
    %v1514 = vpow.pop %v1513
    %v1515 = vadd.f32 %v1514, 1.0
    %v1516 = vrcp.pop %v1515
    %v1517 = vmul.f32 1.0, %v1516
    %v1518 = vmul.f32 %v1510, %v1154
    %v1519 = vmul.f32 %v1504, %v1511
    %v1520 = vadd.f32 %v1518, %v1519
    %v1521 = vtanh.pop %v1520
    %v1522 = vmul.f32 %v1517, %v1521
    %s1523 = scalar_lea.vmem [#allocation2], 4
    %1524 = vst [vmem:[%s1523] sm:$0x3] %v1522
    %s1525 = scalar_lea.vmem [#allocation4], 24
    %v1526 = vld [vmem:[%s1525] sm:$0xff]
    %1527 = vmatprep.subr.mxu0 %v147
    %1528 = vmatpush1.msra.mxu0 %v146
    %1529 = vmatprep.subr.mxu0 %v143
    %1530 = vmatpush1.msra.mxu0 %v142
    %1531 = vmatprep.subr.mxu0 %v139
    %1532 = vmatpush1.msra.mxu0 %v138
    %1533 = vmatprep.subr.mxu0 %v135
    %1534 = vmatpush1.msra.mxu0 %v134
    %1535 = vmatprep.subr.mxu0 %v131
    %1536 = vmatpush1.msra.mxu0 %v130
    %1537 = vmatprep.subr.mxu0 %v127
    %1538 = vmatpush1.msra.mxu0 %v126
    %1539 = vmatprep.subr.mxu0 %v123
    %1540 = vmatpush1.msra.mxu0 %v122
    %1541 = vmatprep.subr.mxu0 %v119
    %1542 = vmatpush1.msra.mxu0 %v118
    %1543 = vmatprep.subr.mxu0 %v115
    %1544 = vmatpush1.msra.mxu0 %v114
    %1545 = vmatprep.subr.mxu0 %v111
    %1546 = vmatpush1.msra.mxu0 %v110
    %1547 = vmatprep.subr.mxu0 %v107
    %1548 = vmatpush1.msra.mxu0 %v106
    %1549 = vmatprep.subr.mxu0 %v103
    %1550 = vmatpush1.msra.mxu0 %v102
    %1551 = vmatprep.subr.mxu0 %v99
    %1552 = vmatpush1.msra.mxu0 %v98
    %1553 = vmatprep.subr.mxu0 %v95
    %1554 = vmatpush1.msra.mxu0 %v94
    %1555 = vmatprep.subr.mxu0 %v91
    %1556 = vmatpush1.msra.mxu0 %v90
    %1557 = vmatprep.subr.mxu0 %v87
    %1558 = vmatpush1.msra.mxu0 %v86
    %1559 = vmatprep.subr.mxu0 0.0
    %1560 = vmatpush2.msra.mxu0 0.0
    %1561 = vmatprep.subr.mxu0 0.0
    %1562 = vmatpush2.msra.mxu0 0.0
    %1563 = vmatprep.subr.mxu0 0.0
    %1564 = vmatpush2.msra.mxu0 0.0
    %1565 = vmatprep.subr.mxu0 0.0
    %1566 = vmatpush2.msra.mxu0 0.0
    %1567 = vmatprep.subr.mxu0 0.0
    %1568 = vmatpush2.msra.mxu0 0.0
    %1569 = vmatprep.subr.mxu0 0.0
    %1570 = vmatpush2.msra.mxu0 0.0
    %1571 = vmatprep.subr.mxu0 0.0
    %1572 = vmatpush2.msra.mxu0 0.0
    %1573 = vmatprep.subr.mxu0 0.0
    %1574 = vmatpush2.msra.mxu0 0.0
    %1575 = vmatprep.subr.mxu0 0.0
    %1576 = vmatpush2.msra.mxu0 0.0
    %1577 = vmatprep.subr.mxu0 0.0
    %1578 = vmatpush2.msra.mxu0 0.0
    %1579 = vmatprep.subr.mxu0 0.0
    %1580 = vmatpush2.msra.mxu0 0.0
    %1581 = vmatprep.subr.mxu0 0.0
    %1582 = vmatpush2.msra.mxu0 0.0
    %1583 = vmatprep.subr.mxu0 0.0
    %1584 = vmatpush2.msra.mxu0 0.0
    %1585 = vmatprep.subr.mxu0 0.0
    %1586 = vmatpush2.msra.mxu0 0.0
    %1587 = vmatprep.subr.mxu0 0.0
    %1588 = vmatpush2.msra.mxu0 0.0
    %1589 = vmatprep.subr.mxu0 0.0
    %1590 = vmatpush2.msra.mxu0 0.0
    %1591 = vmatprep.mubr.f32.mxu0 0.0
    %1592 = vmatmul.mubr.f32.gmra.mxu0 %v1356
    %v1593 = vpop.f32.mrf.mxu0
    %v1594 = vadd.f32 0.0, %v1593
    %v1595 = vpop.f32.mrf.mxu0
    %v1596 = vadd.f32 0.0, %v1595
    %1597 = vdwg.mxu0
    %1598 = vmatprep.subr.mxu0 %v149
    %1599 = vmatpush1.msra.mxu0 %v148
    %1600 = vmatprep.subr.mxu0 %v145
    %1601 = vmatpush1.msra.mxu0 %v144
    %1602 = vmatprep.subr.mxu0 %v141
    %1603 = vmatpush1.msra.mxu0 %v140
    %1604 = vmatprep.subr.mxu0 %v137
    %1605 = vmatpush1.msra.mxu0 %v136
    %1606 = vmatprep.subr.mxu0 %v133
    %1607 = vmatpush1.msra.mxu0 %v132
    %1608 = vmatprep.subr.mxu0 %v129
    %1609 = vmatpush1.msra.mxu0 %v128
    %1610 = vmatprep.subr.mxu0 %v125
    %1611 = vmatpush1.msra.mxu0 %v124
    %1612 = vmatprep.subr.mxu0 %v121
    %1613 = vmatpush1.msra.mxu0 %v120
    %1614 = vmatprep.subr.mxu0 %v117
    %1615 = vmatpush1.msra.mxu0 %v116
    %1616 = vmatprep.subr.mxu0 %v113
    %1617 = vmatpush1.msra.mxu0 %v112
    %1618 = vmatprep.subr.mxu0 %v109
    %1619 = vmatpush1.msra.mxu0 %v108
    %1620 = vmatprep.subr.mxu0 %v105
    %1621 = vmatpush1.msra.mxu0 %v104
    %1622 = vmatprep.subr.mxu0 %v101
    %1623 = vmatpush1.msra.mxu0 %v100
    %1624 = vmatprep.subr.mxu0 %v97
    %1625 = vmatpush1.msra.mxu0 %v96
    %1626 = vmatprep.subr.mxu0 %v93
    %1627 = vmatpush1.msra.mxu0 %v92
    %1628 = vmatprep.subr.mxu0 %v89
    %1629 = vmatpush1.msra.mxu0 %v88
    %1630 = vmatprep.subr.mxu0 0.0
    %1631 = vmatpush2.msra.mxu0 0.0
    %1632 = vmatprep.subr.mxu0 0.0
    %1633 = vmatpush2.msra.mxu0 0.0
    %1634 = vmatprep.subr.mxu0 0.0
    %1635 = vmatpush2.msra.mxu0 0.0
    %1636 = vmatprep.subr.mxu0 0.0
    %1637 = vmatpush2.msra.mxu0 0.0
    %1638 = vmatprep.subr.mxu0 0.0
    %1639 = vmatpush2.msra.mxu0 0.0
    %1640 = vmatprep.subr.mxu0 0.0
    %1641 = vmatpush2.msra.mxu0 0.0
    %1642 = vmatprep.subr.mxu0 0.0
    %1643 = vmatpush2.msra.mxu0 0.0
    %1644 = vmatprep.subr.mxu0 0.0
    %1645 = vmatpush2.msra.mxu0 0.0
    %1646 = vmatprep.subr.mxu0 0.0
    %1647 = vmatpush2.msra.mxu0 0.0
    %1648 = vmatprep.subr.mxu0 0.0
    %1649 = vmatpush2.msra.mxu0 0.0
    %1650 = vmatprep.subr.mxu0 0.0
    %1651 = vmatpush2.msra.mxu0 0.0
    %1652 = vmatprep.subr.mxu0 0.0
    %1653 = vmatpush2.msra.mxu0 0.0
    %1654 = vmatprep.subr.mxu0 0.0
    %1655 = vmatpush2.msra.mxu0 0.0
    %1656 = vmatprep.subr.mxu0 0.0
    %1657 = vmatpush2.msra.mxu0 0.0
    %1658 = vmatprep.subr.mxu0 0.0
    %1659 = vmatpush2.msra.mxu0 0.0
    %1660 = vmatprep.subr.mxu0 0.0
    %1661 = vmatpush2.msra.mxu0 0.0
    %1662 = vmatprep.mubr.f32.mxu0 0.0
    %1663 = vmatmul.mubr.f32.gmra.mxu0 %v1356
    %v1664 = vpop.f32.mrf.mxu0
    %v1665 = vadd.f32 0.0, %v1664
    %v1666 = vpop.f32.mrf.mxu0
    %v1667 = vadd.f32 0.0, %v1666
    %1668 = vdwg.mxu0
    %v1673 = vcombine.low %v1594, %v1596
    %v1674 = vcombine.low %v1665, %v1667
    %v1676 = vunpack.c.l.s4 1983009808
    %v1677 = vunpack.c.0.s8 %v1676
    %v1678 = vlaneseq
    %v1679 = vshrl.u32 %v1678, 7
    %v1680 = vsub.s32 %v1677, %v1679
    %v1681 = vrot.slane %v1673, %v1680
    %v1683 = vunpack.c.l.s4 1983009808
    %v1684 = vunpack.c.0.s8 %v1683
    %v1685 = vlaneseq
    %v1686 = vshrl.u32 %v1685, 7
    %v1687 = vsub.s32 %v1684, %v1686
    %v1688 = vrot.slane %v1674, %v1687
    %v1689 = vcombine.low %v1681, %v1688
    %v1691 = vadd.f32 %v1526, %v1689
    %v1692 = vxor.u32 %v1691, 2147483648
    %v1693 = vmul.f32 %v1692, 1.442695
    %v1694 = vpow.pop %v1693
    %v1695 = vadd.f32 %v1694, 1.0
    %v1696 = vrcp.pop %v1695
    %v1697 = vmul.f32 1.0, %v1696
    %v1699 = vrot.slane %v1691, 2
    %v1701 = vxor.u32 %v1699, 2147483648
    %v1702 = vmul.f32 %v1701, 1.442695
    %v1703 = vpow.pop %v1702
    %v1704 = vadd.f32 %v1703, 1.0
    %v1705 = vrcp.pop %v1704
    %v1706 = vmul.f32 1.0, %v1705
    %v1707 = vrot.slane %v1691, 4
    %v1709 = vtanh.pop %v1707
    %v1710 = vrot.slane %v1691, 6
    %v1712 = vxor.u32 %v1710, 2147483648
    %v1713 = vmul.f32 %v1712, 1.442695
    %v1714 = vpow.pop %v1713
    %v1715 = vadd.f32 %v1714, 1.0
    %v1716 = vrcp.pop %v1715
    %v1717 = vmul.f32 1.0, %v1716
    %v1718 = vmul.f32 %v1706, %v1354
    %v1719 = vmul.f32 %v1697, %v1709
    %v1720 = vadd.f32 %v1718, %v1719
    %v1721 = vtanh.pop %v1720
    %v1722 = vmul.f32 %v1717, %v1721
    %1723 = vmatprep.subr.mxu0 %v211
    %1724 = vmatpush1.msra.mxu0 %v210
    %1725 = vmatprep.subr.mxu0 %v207
    %1726 = vmatpush1.msra.mxu0 %v206
    %1727 = vmatprep.subr.mxu0 %v203
    %1728 = vmatpush1.msra.mxu0 %v202
    %1729 = vmatprep.subr.mxu0 %v199
    %1730 = vmatpush1.msra.mxu0 %v198
    %1731 = vmatprep.subr.mxu0 %v195
    %1732 = vmatpush1.msra.mxu0 %v194
    %1733 = vmatprep.subr.mxu0 %v191
    %1734 = vmatpush1.msra.mxu0 %v190
    %1735 = vmatprep.subr.mxu0 %v187
    %1736 = vmatpush1.msra.mxu0 %v186
    %1737 = vmatprep.subr.mxu0 %v183
    %1738 = vmatpush1.msra.mxu0 %v182
    %1739 = vmatprep.subr.mxu0 %v179
    %1740 = vmatpush1.msra.mxu0 %v178
    %1741 = vmatprep.subr.mxu0 %v175
    %1742 = vmatpush1.msra.mxu0 %v174
    %1743 = vmatprep.subr.mxu0 %v171
    %1744 = vmatpush1.msra.mxu0 %v170
    %1745 = vmatprep.subr.mxu0 %v167
    %1746 = vmatpush1.msra.mxu0 %v166
    %1747 = vmatprep.subr.mxu0 %v163
    %1748 = vmatpush1.msra.mxu0 %v162
    %1749 = vmatprep.subr.mxu0 %v159
    %1750 = vmatpush1.msra.mxu0 %v158
    %1751 = vmatprep.subr.mxu0 %v155
    %1752 = vmatpush1.msra.mxu0 %v154
    %1753 = vmatprep.subr.mxu0 %v151
    %1754 = vmatpush1.msra.mxu0 %v150
    %1755 = vmatprep.subr.mxu0 %v275
    %1756 = vmatpush2.msra.mxu0 %v274
    %1757 = vmatprep.subr.mxu0 %v271
    %1758 = vmatpush2.msra.mxu0 %v270
    %1759 = vmatprep.subr.mxu0 %v267
    %1760 = vmatpush2.msra.mxu0 %v266
    %1761 = vmatprep.subr.mxu0 %v263
    %1762 = vmatpush2.msra.mxu0 %v262
    %1763 = vmatprep.subr.mxu0 %v259
    %1764 = vmatpush2.msra.mxu0 %v258
    %1765 = vmatprep.subr.mxu0 %v255
    %1766 = vmatpush2.msra.mxu0 %v254
    %1767 = vmatprep.subr.mxu0 %v251
    %1768 = vmatpush2.msra.mxu0 %v250
    %1769 = vmatprep.subr.mxu0 %v247
    %1770 = vmatpush2.msra.mxu0 %v246
    %1771 = vmatprep.subr.mxu0 %v243
    %1772 = vmatpush2.msra.mxu0 %v242
    %1773 = vmatprep.subr.mxu0 %v239
    %1774 = vmatpush2.msra.mxu0 %v238
    %1775 = vmatprep.subr.mxu0 %v235
    %1776 = vmatpush2.msra.mxu0 %v234
    %1777 = vmatprep.subr.mxu0 %v231
    %1778 = vmatpush2.msra.mxu0 %v230
    %1779 = vmatprep.subr.mxu0 %v227
    %1780 = vmatpush2.msra.mxu0 %v226
    %1781 = vmatprep.subr.mxu0 %v223
    %1782 = vmatpush2.msra.mxu0 %v222
    %1783 = vmatprep.subr.mxu0 %v219
    %1784 = vmatpush2.msra.mxu0 %v218
    %1785 = vmatprep.subr.mxu0 %v215
    %1786 = vmatpush2.msra.mxu0 %v214
    %1787 = vmatprep.mubr.f32.mxu0 %v1522
    %1788 = vmatmul.mubr.f32.gmra.mxu0 %v1722
    %v1789 = vpop.f32.mrf.mxu0
    %v1790 = vadd.f32 %v609, %v1789
    %v1791 = vpop.f32.mrf.mxu0
    %v1792 = vadd.f32 %v613, %v1791
    %1793 = vdwg.mxu0
    %1794 = vmatprep.subr.mxu0 %v213
    %1795 = vmatpush1.msra.mxu0 %v212
    %1796 = vmatprep.subr.mxu0 %v209
    %1797 = vmatpush1.msra.mxu0 %v208
    %1798 = vmatprep.subr.mxu0 %v205
    %1799 = vmatpush1.msra.mxu0 %v204
    %1800 = vmatprep.subr.mxu0 %v201
    %1801 = vmatpush1.msra.mxu0 %v200
    %1802 = vmatprep.subr.mxu0 %v197
    %1803 = vmatpush1.msra.mxu0 %v196
    %1804 = vmatprep.subr.mxu0 %v193
    %1805 = vmatpush1.msra.mxu0 %v192
    %1806 = vmatprep.subr.mxu0 %v189
    %1807 = vmatpush1.msra.mxu0 %v188
    %1808 = vmatprep.subr.mxu0 %v185
    %1809 = vmatpush1.msra.mxu0 %v184
    %1810 = vmatprep.subr.mxu0 %v181
    %1811 = vmatpush1.msra.mxu0 %v180
    %1812 = vmatprep.subr.mxu0 %v177
    %1813 = vmatpush1.msra.mxu0 %v176
    %1814 = vmatprep.subr.mxu0 %v173
    %1815 = vmatpush1.msra.mxu0 %v172
    %1816 = vmatprep.subr.mxu0 %v169
    %1817 = vmatpush1.msra.mxu0 %v168
    %1818 = vmatprep.subr.mxu0 %v165
    %1819 = vmatpush1.msra.mxu0 %v164
    %1820 = vmatprep.subr.mxu0 %v161
    %1821 = vmatpush1.msra.mxu0 %v160
    %1822 = vmatprep.subr.mxu0 %v157
    %1823 = vmatpush1.msra.mxu0 %v156
    %1824 = vmatprep.subr.mxu0 %v153
    %1825 = vmatpush1.msra.mxu0 %v152
    %1826 = vmatprep.subr.mxu0 %v277
    %1827 = vmatpush2.msra.mxu0 %v276
    %1828 = vmatprep.subr.mxu0 %v273
    %1829 = vmatpush2.msra.mxu0 %v272
    %1830 = vmatprep.subr.mxu0 %v269
    %1831 = vmatpush2.msra.mxu0 %v268
    %1832 = vmatprep.subr.mxu0 %v265
    %1833 = vmatpush2.msra.mxu0 %v264
    %1834 = vmatprep.subr.mxu0 %v261
    %1835 = vmatpush2.msra.mxu0 %v260
    %1836 = vmatprep.subr.mxu0 %v257
    %1837 = vmatpush2.msra.mxu0 %v256
    %1838 = vmatprep.subr.mxu0 %v253
    %1839 = vmatpush2.msra.mxu0 %v252
    %1840 = vmatprep.subr.mxu0 %v249
    %1841 = vmatpush2.msra.mxu0 %v248
    %1842 = vmatprep.subr.mxu0 %v245
    %1843 = vmatpush2.msra.mxu0 %v244
    %1844 = vmatprep.subr.mxu0 %v241
    %1845 = vmatpush2.msra.mxu0 %v240
    %1846 = vmatprep.subr.mxu0 %v237
    %1847 = vmatpush2.msra.mxu0 %v236
    %1848 = vmatprep.subr.mxu0 %v233
    %1849 = vmatpush2.msra.mxu0 %v232
    %1850 = vmatprep.subr.mxu0 %v229
    %1851 = vmatpush2.msra.mxu0 %v228
    %1852 = vmatprep.subr.mxu0 %v225
    %1853 = vmatpush2.msra.mxu0 %v224
    %1854 = vmatprep.subr.mxu0 %v221
    %1855 = vmatpush2.msra.mxu0 %v220
    %1856 = vmatprep.subr.mxu0 %v217
    %1857 = vmatpush2.msra.mxu0 %v216
    %1858 = vmatprep.mubr.f32.mxu0 %v1522
    %1859 = vmatmul.mubr.f32.gmra.mxu0 %v1722
    %v1860 = vpop.f32.mrf.mxu0
    %v1861 = vadd.f32 %v617, %v1860
    %v1862 = vpop.f32.mrf.mxu0
    %v1863 = vadd.f32 %v621, %v1862
    %1864 = vdwg.mxu0
    %v1865 = vxor.u32 %v1790, 2147483648
    %v1866 = vmul.f32 %v1865, 1.442695
    %v1867 = vpow.pop %v1866
    %v1868 = vadd.f32 %v1867, 1.0
    %v1869 = vrcp.pop %v1868
    %v1870 = vmul.f32 1.0, %v1869
    %v1871 = vxor.u32 %v1792, 2147483648
    %v1872 = vmul.f32 %v1871, 1.442695
    %v1873 = vpow.pop %v1872
    %v1874 = vadd.f32 %v1873, 1.0
    %v1875 = vrcp.pop %v1874
    %v1876 = vmul.f32 1.0, %v1875
    %v1877 = vtanh.pop %v1861
    %v1878 = vxor.u32 %v1863, 2147483648
    %v1879 = vmul.f32 %v1878, 1.442695
    %v1880 = vpow.pop %v1879
    %v1881 = vadd.f32 %v1880, 1.0
    %v1882 = vrcp.pop %v1881
    %v1883 = vmul.f32 1.0, %v1882
    %v1884 = vmul.f32 %v1876, %v1520
    %v1885 = vmul.f32 %v1870, %v1877
    %v1886 = vadd.f32 %v1884, %v1885
    %v1887 = vtanh.pop %v1886
    %v1888 = vmul.f32 %v1883, %v1887
    %s1889 = scalar_lea.vmem [#allocation2], 6
    %1890 = vst [vmem:[%s1889] sm:$0x3] %v1888
    %s1891 = scalar_lea.vmem [#allocation4], 32
    %v1892 = vld [vmem:[%s1891] sm:$0xff]
    %1893 = vmatprep.subr.mxu0 %v147
    %1894 = vmatpush1.msra.mxu0 %v146
    %1895 = vmatprep.subr.mxu0 %v143
    %1896 = vmatpush1.msra.mxu0 %v142
    %1897 = vmatprep.subr.mxu0 %v139
    %1898 = vmatpush1.msra.mxu0 %v138
    %1899 = vmatprep.subr.mxu0 %v135
    %1900 = vmatpush1.msra.mxu0 %v134
    %1901 = vmatprep.subr.mxu0 %v131
    %1902 = vmatpush1.msra.mxu0 %v130
    %1903 = vmatprep.subr.mxu0 %v127
    %1904 = vmatpush1.msra.mxu0 %v126
    %1905 = vmatprep.subr.mxu0 %v123
    %1906 = vmatpush1.msra.mxu0 %v122
    %1907 = vmatprep.subr.mxu0 %v119
    %1908 = vmatpush1.msra.mxu0 %v118
    %1909 = vmatprep.subr.mxu0 %v115
    %1910 = vmatpush1.msra.mxu0 %v114
    %1911 = vmatprep.subr.mxu0 %v111
    %1912 = vmatpush1.msra.mxu0 %v110
    %1913 = vmatprep.subr.mxu0 %v107
    %1914 = vmatpush1.msra.mxu0 %v106
    %1915 = vmatprep.subr.mxu0 %v103
    %1916 = vmatpush1.msra.mxu0 %v102
    %1917 = vmatprep.subr.mxu0 %v99
    %1918 = vmatpush1.msra.mxu0 %v98
    %1919 = vmatprep.subr.mxu0 %v95
    %1920 = vmatpush1.msra.mxu0 %v94
    %1921 = vmatprep.subr.mxu0 %v91
    %1922 = vmatpush1.msra.mxu0 %v90
    %1923 = vmatprep.subr.mxu0 %v87
    %1924 = vmatpush1.msra.mxu0 %v86
    %1925 = vmatprep.subr.mxu0 0.0
    %1926 = vmatpush2.msra.mxu0 0.0
    %1927 = vmatprep.subr.mxu0 0.0
    %1928 = vmatpush2.msra.mxu0 0.0
    %1929 = vmatprep.subr.mxu0 0.0
    %1930 = vmatpush2.msra.mxu0 0.0
    %1931 = vmatprep.subr.mxu0 0.0
    %1932 = vmatpush2.msra.mxu0 0.0
    %1933 = vmatprep.subr.mxu0 0.0
    %1934 = vmatpush2.msra.mxu0 0.0
    %1935 = vmatprep.subr.mxu0 0.0
    %1936 = vmatpush2.msra.mxu0 0.0
    %1937 = vmatprep.subr.mxu0 0.0
    %1938 = vmatpush2.msra.mxu0 0.0
    %1939 = vmatprep.subr.mxu0 0.0
    %1940 = vmatpush2.msra.mxu0 0.0
    %1941 = vmatprep.subr.mxu0 0.0
    %1942 = vmatpush2.msra.mxu0 0.0
    %1943 = vmatprep.subr.mxu0 0.0
    %1944 = vmatpush2.msra.mxu0 0.0
    %1945 = vmatprep.subr.mxu0 0.0
    %1946 = vmatpush2.msra.mxu0 0.0
    %1947 = vmatprep.subr.mxu0 0.0
    %1948 = vmatpush2.msra.mxu0 0.0
    %1949 = vmatprep.subr.mxu0 0.0
    %1950 = vmatpush2.msra.mxu0 0.0
    %1951 = vmatprep.subr.mxu0 0.0
    %1952 = vmatpush2.msra.mxu0 0.0
    %1953 = vmatprep.subr.mxu0 0.0
    %1954 = vmatpush2.msra.mxu0 0.0
    %1955 = vmatprep.subr.mxu0 0.0
    %1956 = vmatpush2.msra.mxu0 0.0
    %1957 = vmatprep.mubr.f32.mxu0 0.0
    %1958 = vmatmul.mubr.f32.gmra.mxu0 %v1722
    %v1959 = vpop.f32.mrf.mxu0
    %v1960 = vadd.f32 0.0, %v1959
    %v1961 = vpop.f32.mrf.mxu0
    %v1962 = vadd.f32 0.0, %v1961
    %1963 = vdwg.mxu0
    %1964 = vmatprep.subr.mxu0 %v149
    %1965 = vmatpush1.msra.mxu0 %v148
    %1966 = vmatprep.subr.mxu0 %v145
    %1967 = vmatpush1.msra.mxu0 %v144
    %1968 = vmatprep.subr.mxu0 %v141
    %1969 = vmatpush1.msra.mxu0 %v140
    %1970 = vmatprep.subr.mxu0 %v137
    %1971 = vmatpush1.msra.mxu0 %v136
    %1972 = vmatprep.subr.mxu0 %v133
    %1973 = vmatpush1.msra.mxu0 %v132
    %1974 = vmatprep.subr.mxu0 %v129
    %1975 = vmatpush1.msra.mxu0 %v128
    %1976 = vmatprep.subr.mxu0 %v125
    %1977 = vmatpush1.msra.mxu0 %v124
    %1978 = vmatprep.subr.mxu0 %v121
    %1979 = vmatpush1.msra.mxu0 %v120
    %1980 = vmatprep.subr.mxu0 %v117
    %1981 = vmatpush1.msra.mxu0 %v116
    %1982 = vmatprep.subr.mxu0 %v113
    %1983 = vmatpush1.msra.mxu0 %v112
    %1984 = vmatprep.subr.mxu0 %v109
    %1985 = vmatpush1.msra.mxu0 %v108
    %1986 = vmatprep.subr.mxu0 %v105
    %1987 = vmatpush1.msra.mxu0 %v104
    %1988 = vmatprep.subr.mxu0 %v101
    %1989 = vmatpush1.msra.mxu0 %v100
    %1990 = vmatprep.subr.mxu0 %v97
    %1991 = vmatpush1.msra.mxu0 %v96
    %1992 = vmatprep.subr.mxu0 %v93
    %1993 = vmatpush1.msra.mxu0 %v92
    %1994 = vmatprep.subr.mxu0 %v89
    %1995 = vmatpush1.msra.mxu0 %v88
    %1996 = vmatprep.subr.mxu0 0.0
    %1997 = vmatpush2.msra.mxu0 0.0
    %1998 = vmatprep.subr.mxu0 0.0
    %1999 = vmatpush2.msra.mxu0 0.0
    %2000 = vmatprep.subr.mxu0 0.0
    %2001 = vmatpush2.msra.mxu0 0.0
    %2002 = vmatprep.subr.mxu0 0.0
    %2003 = vmatpush2.msra.mxu0 0.0
    %2004 = vmatprep.subr.mxu0 0.0
    %2005 = vmatpush2.msra.mxu0 0.0
    %2006 = vmatprep.subr.mxu0 0.0
    %2007 = vmatpush2.msra.mxu0 0.0
    %2008 = vmatprep.subr.mxu0 0.0
    %2009 = vmatpush2.msra.mxu0 0.0
    %2010 = vmatprep.subr.mxu0 0.0
    %2011 = vmatpush2.msra.mxu0 0.0
    %2012 = vmatprep.subr.mxu0 0.0
    %2013 = vmatpush2.msra.mxu0 0.0
    %2014 = vmatprep.subr.mxu0 0.0
    %2015 = vmatpush2.msra.mxu0 0.0
    %2016 = vmatprep.subr.mxu0 0.0
    %2017 = vmatpush2.msra.mxu0 0.0
    %2018 = vmatprep.subr.mxu0 0.0
    %2019 = vmatpush2.msra.mxu0 0.0
    %2020 = vmatprep.subr.mxu0 0.0
    %2021 = vmatpush2.msra.mxu0 0.0
    %2022 = vmatprep.subr.mxu0 0.0
    %2023 = vmatpush2.msra.mxu0 0.0
    %2024 = vmatprep.subr.mxu0 0.0
    %2025 = vmatpush2.msra.mxu0 0.0
    %2026 = vmatprep.subr.mxu0 0.0
    %2027 = vmatpush2.msra.mxu0 0.0
    %2028 = vmatprep.mubr.f32.mxu0 0.0
    %2029 = vmatmul.mubr.f32.gmra.mxu0 %v1722
    %v2030 = vpop.f32.mrf.mxu0
    %v2031 = vadd.f32 0.0, %v2030
    %v2032 = vpop.f32.mrf.mxu0
    %v2033 = vadd.f32 0.0, %v2032
    %2034 = vdwg.mxu0
    %v2039 = vcombine.low %v1960, %v1962
    %v2040 = vcombine.low %v2031, %v2033
    %v2042 = vunpack.c.l.s4 1983009808
    %v2043 = vunpack.c.0.s8 %v2042
    %v2044 = vlaneseq
    %v2045 = vshrl.u32 %v2044, 7
    %v2046 = vsub.s32 %v2043, %v2045
    %v2047 = vrot.slane %v2039, %v2046
    %v2049 = vunpack.c.l.s4 1983009808
    %v2050 = vunpack.c.0.s8 %v2049
    %v2051 = vlaneseq
    %v2052 = vshrl.u32 %v2051, 7
    %v2053 = vsub.s32 %v2050, %v2052
    %v2054 = vrot.slane %v2040, %v2053
    %v2055 = vcombine.low %v2047, %v2054
    %v2057 = vadd.f32 %v1892, %v2055
    %v2058 = vxor.u32 %v2057, 2147483648
    %v2059 = vmul.f32 %v2058, 1.442695
    %v2060 = vpow.pop %v2059
    %v2061 = vadd.f32 %v2060, 1.0
    %v2062 = vrcp.pop %v2061
    %v2063 = vmul.f32 1.0, %v2062
    %v2065 = vrot.slane %v2057, 2
    %v2067 = vxor.u32 %v2065, 2147483648
    %v2068 = vmul.f32 %v2067, 1.442695
    %v2069 = vpow.pop %v2068
    %v2070 = vadd.f32 %v2069, 1.0
    %v2071 = vrcp.pop %v2070
    %v2072 = vmul.f32 1.0, %v2071
    %v2073 = vrot.slane %v2057, 4
    %v2075 = vtanh.pop %v2073
    %v2076 = vrot.slane %v2057, 6
    %v2078 = vxor.u32 %v2076, 2147483648
    %v2079 = vmul.f32 %v2078, 1.442695
    %v2080 = vpow.pop %v2079
    %v2081 = vadd.f32 %v2080, 1.0
    %v2082 = vrcp.pop %v2081
    %v2083 = vmul.f32 1.0, %v2082
    %v2084 = vmul.f32 %v2072, %v1720
    %v2085 = vmul.f32 %v2063, %v2075
    %v2086 = vadd.f32 %v2084, %v2085
    %v2087 = vtanh.pop %v2086
    %v2088 = vmul.f32 %v2083, %v2087
    %2089 = vmatprep.subr.mxu0 %v211
    %2090 = vmatpush1.msra.mxu0 %v210
    %2091 = vmatprep.subr.mxu0 %v207
    %2092 = vmatpush1.msra.mxu0 %v206
    %2093 = vmatprep.subr.mxu0 %v203
    %2094 = vmatpush1.msra.mxu0 %v202
    %2095 = vmatprep.subr.mxu0 %v199
    %2096 = vmatpush1.msra.mxu0 %v198
    %2097 = vmatprep.subr.mxu0 %v195
    %2098 = vmatpush1.msra.mxu0 %v194
    %2099 = vmatprep.subr.mxu0 %v191
    %2100 = vmatpush1.msra.mxu0 %v190
    %2101 = vmatprep.subr.mxu0 %v187
    %2102 = vmatpush1.msra.mxu0 %v186
    %2103 = vmatprep.subr.mxu0 %v183
    %2104 = vmatpush1.msra.mxu0 %v182
    %2105 = vmatprep.subr.mxu0 %v179
    %2106 = vmatpush1.msra.mxu0 %v178
    %2107 = vmatprep.subr.mxu0 %v175
    %2108 = vmatpush1.msra.mxu0 %v174
    %2109 = vmatprep.subr.mxu0 %v171
    %2110 = vmatpush1.msra.mxu0 %v170
    %2111 = vmatprep.subr.mxu0 %v167
    %2112 = vmatpush1.msra.mxu0 %v166
    %2113 = vmatprep.subr.mxu0 %v163
    %2114 = vmatpush1.msra.mxu0 %v162
    %2115 = vmatprep.subr.mxu0 %v159
    %2116 = vmatpush1.msra.mxu0 %v158
    %2117 = vmatprep.subr.mxu0 %v155
    %2118 = vmatpush1.msra.mxu0 %v154
    %2119 = vmatprep.subr.mxu0 %v151
    %2120 = vmatpush1.msra.mxu0 %v150
    %2121 = vmatprep.subr.mxu0 %v275
    %2122 = vmatpush2.msra.mxu0 %v274
    %2123 = vmatprep.subr.mxu0 %v271
    %2124 = vmatpush2.msra.mxu0 %v270
    %2125 = vmatprep.subr.mxu0 %v267
    %2126 = vmatpush2.msra.mxu0 %v266
    %2127 = vmatprep.subr.mxu0 %v263
    %2128 = vmatpush2.msra.mxu0 %v262
    %2129 = vmatprep.subr.mxu0 %v259
    %2130 = vmatpush2.msra.mxu0 %v258
    %2131 = vmatprep.subr.mxu0 %v255
    %2132 = vmatpush2.msra.mxu0 %v254
    %2133 = vmatprep.subr.mxu0 %v251
    %2134 = vmatpush2.msra.mxu0 %v250
    %2135 = vmatprep.subr.mxu0 %v247
    %2136 = vmatpush2.msra.mxu0 %v246
    %2137 = vmatprep.subr.mxu0 %v243
    %2138 = vmatpush2.msra.mxu0 %v242
    %2139 = vmatprep.subr.mxu0 %v239
    %2140 = vmatpush2.msra.mxu0 %v238
    %2141 = vmatprep.subr.mxu0 %v235
    %2142 = vmatpush2.msra.mxu0 %v234
    %2143 = vmatprep.subr.mxu0 %v231
    %2144 = vmatpush2.msra.mxu0 %v230
    %2145 = vmatprep.subr.mxu0 %v227
    %2146 = vmatpush2.msra.mxu0 %v226
    %2147 = vmatprep.subr.mxu0 %v223
    %2148 = vmatpush2.msra.mxu0 %v222
    %2149 = vmatprep.subr.mxu0 %v219
    %2150 = vmatpush2.msra.mxu0 %v218
    %2151 = vmatprep.subr.mxu0 %v215
    %2152 = vmatpush2.msra.mxu0 %v214
    %2153 = vmatprep.mubr.f32.mxu0 %v1888
    %2154 = vmatmul.mubr.f32.gmra.mxu0 %v2088
    %v2155 = vpop.f32.mrf.mxu0
    %v2156 = vadd.f32 %v609, %v2155
    %v2157 = vpop.f32.mrf.mxu0
    %v2158 = vadd.f32 %v613, %v2157
    %2159 = vdwg.mxu0
    %2160 = vmatprep.subr.mxu0 %v213
    %2161 = vmatpush1.msra.mxu0 %v212
    %2162 = vmatprep.subr.mxu0 %v209
    %2163 = vmatpush1.msra.mxu0 %v208
    %2164 = vmatprep.subr.mxu0 %v205
    %2165 = vmatpush1.msra.mxu0 %v204
    %2166 = vmatprep.subr.mxu0 %v201
    %2167 = vmatpush1.msra.mxu0 %v200
    %2168 = vmatprep.subr.mxu0 %v197
    %2169 = vmatpush1.msra.mxu0 %v196
    %2170 = vmatprep.subr.mxu0 %v193
    %2171 = vmatpush1.msra.mxu0 %v192
    %2172 = vmatprep.subr.mxu0 %v189
    %2173 = vmatpush1.msra.mxu0 %v188
    %2174 = vmatprep.subr.mxu0 %v185
    %2175 = vmatpush1.msra.mxu0 %v184
    %2176 = vmatprep.subr.mxu0 %v181
    %2177 = vmatpush1.msra.mxu0 %v180
    %2178 = vmatprep.subr.mxu0 %v177
    %2179 = vmatpush1.msra.mxu0 %v176
    %2180 = vmatprep.subr.mxu0 %v173
    %2181 = vmatpush1.msra.mxu0 %v172
    %2182 = vmatprep.subr.mxu0 %v169
    %2183 = vmatpush1.msra.mxu0 %v168
    %2184 = vmatprep.subr.mxu0 %v165
    %2185 = vmatpush1.msra.mxu0 %v164
    %2186 = vmatprep.subr.mxu0 %v161
    %2187 = vmatpush1.msra.mxu0 %v160
    %2188 = vmatprep.subr.mxu0 %v157
    %2189 = vmatpush1.msra.mxu0 %v156
    %2190 = vmatprep.subr.mxu0 %v153
    %2191 = vmatpush1.msra.mxu0 %v152
    %2192 = vmatprep.subr.mxu0 %v277
    %2193 = vmatpush2.msra.mxu0 %v276
    %2194 = vmatprep.subr.mxu0 %v273
    %2195 = vmatpush2.msra.mxu0 %v272
    %2196 = vmatprep.subr.mxu0 %v269
    %2197 = vmatpush2.msra.mxu0 %v268
    %2198 = vmatprep.subr.mxu0 %v265
    %2199 = vmatpush2.msra.mxu0 %v264
    %2200 = vmatprep.subr.mxu0 %v261
    %2201 = vmatpush2.msra.mxu0 %v260
    %2202 = vmatprep.subr.mxu0 %v257
    %2203 = vmatpush2.msra.mxu0 %v256
    %2204 = vmatprep.subr.mxu0 %v253
    %2205 = vmatpush2.msra.mxu0 %v252
    %2206 = vmatprep.subr.mxu0 %v249
    %2207 = vmatpush2.msra.mxu0 %v248
    %2208 = vmatprep.subr.mxu0 %v245
    %2209 = vmatpush2.msra.mxu0 %v244
    %2210 = vmatprep.subr.mxu0 %v241
    %2211 = vmatpush2.msra.mxu0 %v240
    %2212 = vmatprep.subr.mxu0 %v237
    %2213 = vmatpush2.msra.mxu0 %v236
    %2214 = vmatprep.subr.mxu0 %v233
    %2215 = vmatpush2.msra.mxu0 %v232
    %2216 = vmatprep.subr.mxu0 %v229
    %2217 = vmatpush2.msra.mxu0 %v228
    %2218 = vmatprep.subr.mxu0 %v225
    %2219 = vmatpush2.msra.mxu0 %v224
    %2220 = vmatprep.subr.mxu0 %v221
    %2221 = vmatpush2.msra.mxu0 %v220
    %2222 = vmatprep.subr.mxu0 %v217
    %2223 = vmatpush2.msra.mxu0 %v216
    %2224 = vmatprep.mubr.f32.mxu0 %v1888
    %2225 = vmatmul.mubr.f32.gmra.mxu0 %v2088
    %v2226 = vpop.f32.mrf.mxu0
    %v2227 = vadd.f32 %v617, %v2226
    %v2228 = vpop.f32.mrf.mxu0
    %v2229 = vadd.f32 %v621, %v2228
    %2230 = vdwg.mxu0
    %v2231 = vxor.u32 %v2156, 2147483648
    %v2232 = vmul.f32 %v2231, 1.442695
    %v2233 = vpow.pop %v2232
    %v2234 = vadd.f32 %v2233, 1.0
    %v2235 = vrcp.pop %v2234
    %v2236 = vmul.f32 1.0, %v2235
    %v2237 = vxor.u32 %v2158, 2147483648
    %v2238 = vmul.f32 %v2237, 1.442695
    %v2239 = vpow.pop %v2238
    %v2240 = vadd.f32 %v2239, 1.0
    %v2241 = vrcp.pop %v2240
    %v2242 = vmul.f32 1.0, %v2241
    %v2243 = vtanh.pop %v2227
    %v2244 = vxor.u32 %v2229, 2147483648
    %v2245 = vmul.f32 %v2244, 1.442695
    %v2246 = vpow.pop %v2245
    %v2247 = vadd.f32 %v2246, 1.0
    %v2248 = vrcp.pop %v2247
    %v2249 = vmul.f32 1.0, %v2248
    %v2250 = vmul.f32 %v2242, %v1886
    %v2251 = vmul.f32 %v2236, %v2243
    %v2252 = vadd.f32 %v2250, %v2251
    %v2253 = vtanh.pop %v2252
    %v2254 = vmul.f32 %v2249, %v2253
    %s2255 = scalar_lea.vmem [#allocation2], 8
    %2256 = vst [vmem:[%s2255] sm:$0x3] %v2254
    %s2257 = scalar_lea.vmem [#allocation4], 40
    %v2258 = vld [vmem:[%s2257] sm:$0xff]
    %2259 = vmatprep.subr.mxu0 %v147
    %2260 = vmatpush1.msra.mxu0 %v146
    %2261 = vmatprep.subr.mxu0 %v143
    %2262 = vmatpush1.msra.mxu0 %v142
    %2263 = vmatprep.subr.mxu0 %v139
    %2264 = vmatpush1.msra.mxu0 %v138
    %2265 = vmatprep.subr.mxu0 %v135
    %2266 = vmatpush1.msra.mxu0 %v134
    %2267 = vmatprep.subr.mxu0 %v131
    %2268 = vmatpush1.msra.mxu0 %v130
    %2269 = vmatprep.subr.mxu0 %v127
    %2270 = vmatpush1.msra.mxu0 %v126
    %2271 = vmatprep.subr.mxu0 %v123
    %2272 = vmatpush1.msra.mxu0 %v122
    %2273 = vmatprep.subr.mxu0 %v119
    %2274 = vmatpush1.msra.mxu0 %v118
    %2275 = vmatprep.subr.mxu0 %v115
    %2276 = vmatpush1.msra.mxu0 %v114
    %2277 = vmatprep.subr.mxu0 %v111
    %2278 = vmatpush1.msra.mxu0 %v110
    %2279 = vmatprep.subr.mxu0 %v107
    %2280 = vmatpush1.msra.mxu0 %v106
    %2281 = vmatprep.subr.mxu0 %v103
    %2282 = vmatpush1.msra.mxu0 %v102
    %2283 = vmatprep.subr.mxu0 %v99
    %2284 = vmatpush1.msra.mxu0 %v98
    %2285 = vmatprep.subr.mxu0 %v95
    %2286 = vmatpush1.msra.mxu0 %v94
    %2287 = vmatprep.subr.mxu0 %v91
    %2288 = vmatpush1.msra.mxu0 %v90
    %2289 = vmatprep.subr.mxu0 %v87
    %2290 = vmatpush1.msra.mxu0 %v86
    %2291 = vmatprep.subr.mxu0 0.0
    %2292 = vmatpush2.msra.mxu0 0.0
    %2293 = vmatprep.subr.mxu0 0.0
    %2294 = vmatpush2.msra.mxu0 0.0
    %2295 = vmatprep.subr.mxu0 0.0
    %2296 = vmatpush2.msra.mxu0 0.0
    %2297 = vmatprep.subr.mxu0 0.0
    %2298 = vmatpush2.msra.mxu0 0.0
    %2299 = vmatprep.subr.mxu0 0.0
    %2300 = vmatpush2.msra.mxu0 0.0
    %2301 = vmatprep.subr.mxu0 0.0
    %2302 = vmatpush2.msra.mxu0 0.0
    %2303 = vmatprep.subr.mxu0 0.0
    %2304 = vmatpush2.msra.mxu0 0.0
    %2305 = vmatprep.subr.mxu0 0.0
    %2306 = vmatpush2.msra.mxu0 0.0
    %2307 = vmatprep.subr.mxu0 0.0
    %2308 = vmatpush2.msra.mxu0 0.0
    %2309 = vmatprep.subr.mxu0 0.0
    %2310 = vmatpush2.msra.mxu0 0.0
    %2311 = vmatprep.subr.mxu0 0.0
    %2312 = vmatpush2.msra.mxu0 0.0
    %2313 = vmatprep.subr.mxu0 0.0
    %2314 = vmatpush2.msra.mxu0 0.0
    %2315 = vmatprep.subr.mxu0 0.0
    %2316 = vmatpush2.msra.mxu0 0.0
    %2317 = vmatprep.subr.mxu0 0.0
    %2318 = vmatpush2.msra.mxu0 0.0
    %2319 = vmatprep.subr.mxu0 0.0
    %2320 = vmatpush2.msra.mxu0 0.0
    %2321 = vmatprep.subr.mxu0 0.0
    %2322 = vmatpush2.msra.mxu0 0.0
    %2323 = vmatprep.mubr.f32.mxu0 0.0
    %2324 = vmatmul.mubr.f32.gmra.mxu0 %v2088
    %v2325 = vpop.f32.mrf.mxu0
    %v2326 = vadd.f32 0.0, %v2325
    %v2327 = vpop.f32.mrf.mxu0
    %v2328 = vadd.f32 0.0, %v2327
    %2329 = vdwg.mxu0
    %2330 = vmatprep.subr.mxu0 %v149
    %2331 = vmatpush1.msra.mxu0 %v148
    %2332 = vmatprep.subr.mxu0 %v145
    %2333 = vmatpush1.msra.mxu0 %v144
    %2334 = vmatprep.subr.mxu0 %v141
    %2335 = vmatpush1.msra.mxu0 %v140
    %2336 = vmatprep.subr.mxu0 %v137
    %2337 = vmatpush1.msra.mxu0 %v136
    %2338 = vmatprep.subr.mxu0 %v133
    %2339 = vmatpush1.msra.mxu0 %v132
    %2340 = vmatprep.subr.mxu0 %v129
    %2341 = vmatpush1.msra.mxu0 %v128
    %2342 = vmatprep.subr.mxu0 %v125
    %2343 = vmatpush1.msra.mxu0 %v124
    %2344 = vmatprep.subr.mxu0 %v121
    %2345 = vmatpush1.msra.mxu0 %v120
    %2346 = vmatprep.subr.mxu0 %v117
    %2347 = vmatpush1.msra.mxu0 %v116
    %2348 = vmatprep.subr.mxu0 %v113
    %2349 = vmatpush1.msra.mxu0 %v112
    %2350 = vmatprep.subr.mxu0 %v109
    %2351 = vmatpush1.msra.mxu0 %v108
    %2352 = vmatprep.subr.mxu0 %v105
    %2353 = vmatpush1.msra.mxu0 %v104
    %2354 = vmatprep.subr.mxu0 %v101
    %2355 = vmatpush1.msra.mxu0 %v100
    %2356 = vmatprep.subr.mxu0 %v97
    %2357 = vmatpush1.msra.mxu0 %v96
    %2358 = vmatprep.subr.mxu0 %v93
    %2359 = vmatpush1.msra.mxu0 %v92
    %2360 = vmatprep.subr.mxu0 %v89
    %2361 = vmatpush1.msra.mxu0 %v88
    %2362 = vmatprep.subr.mxu0 0.0
    %2363 = vmatpush2.msra.mxu0 0.0
    %2364 = vmatprep.subr.mxu0 0.0
    %2365 = vmatpush2.msra.mxu0 0.0
    %2366 = vmatprep.subr.mxu0 0.0
    %2367 = vmatpush2.msra.mxu0 0.0
    %2368 = vmatprep.subr.mxu0 0.0
    %2369 = vmatpush2.msra.mxu0 0.0
    %2370 = vmatprep.subr.mxu0 0.0
    %2371 = vmatpush2.msra.mxu0 0.0
    %2372 = vmatprep.subr.mxu0 0.0
    %2373 = vmatpush2.msra.mxu0 0.0
    %2374 = vmatprep.subr.mxu0 0.0
    %2375 = vmatpush2.msra.mxu0 0.0
    %2376 = vmatprep.subr.mxu0 0.0
    %2377 = vmatpush2.msra.mxu0 0.0
    %2378 = vmatprep.subr.mxu0 0.0
    %2379 = vmatpush2.msra.mxu0 0.0
    %2380 = vmatprep.subr.mxu0 0.0
    %2381 = vmatpush2.msra.mxu0 0.0
    %2382 = vmatprep.subr.mxu0 0.0
    %2383 = vmatpush2.msra.mxu0 0.0
    %2384 = vmatprep.subr.mxu0 0.0
    %2385 = vmatpush2.msra.mxu0 0.0
    %2386 = vmatprep.subr.mxu0 0.0
    %2387 = vmatpush2.msra.mxu0 0.0
    %2388 = vmatprep.subr.mxu0 0.0
    %2389 = vmatpush2.msra.mxu0 0.0
    %2390 = vmatprep.subr.mxu0 0.0
    %2391 = vmatpush2.msra.mxu0 0.0
    %2392 = vmatprep.subr.mxu0 0.0
    %2393 = vmatpush2.msra.mxu0 0.0
    %2394 = vmatprep.mubr.f32.mxu0 0.0
    %2395 = vmatmul.mubr.f32.gmra.mxu0 %v2088
    %v2396 = vpop.f32.mrf.mxu0
    %v2397 = vadd.f32 0.0, %v2396
    %v2398 = vpop.f32.mrf.mxu0
    %v2399 = vadd.f32 0.0, %v2398
    %2400 = vdwg.mxu0
    %v2405 = vcombine.low %v2326, %v2328
    %v2406 = vcombine.low %v2397, %v2399
    %v2408 = vunpack.c.l.s4 1983009808
    %v2409 = vunpack.c.0.s8 %v2408
    %v2410 = vlaneseq
    %v2411 = vshrl.u32 %v2410, 7
    %v2412 = vsub.s32 %v2409, %v2411
    %v2413 = vrot.slane %v2405, %v2412
    %v2415 = vunpack.c.l.s4 1983009808
    %v2416 = vunpack.c.0.s8 %v2415
    %v2417 = vlaneseq
    %v2418 = vshrl.u32 %v2417, 7
    %v2419 = vsub.s32 %v2416, %v2418
    %v2420 = vrot.slane %v2406, %v2419
    %v2421 = vcombine.low %v2413, %v2420
    %v2423 = vadd.f32 %v2258, %v2421
    %v2424 = vxor.u32 %v2423, 2147483648
    %v2425 = vmul.f32 %v2424, 1.442695
    %v2426 = vpow.pop %v2425
    %v2427 = vadd.f32 %v2426, 1.0
    %v2428 = vrcp.pop %v2427
    %v2429 = vmul.f32 1.0, %v2428
    %v2431 = vrot.slane %v2423, 2
    %v2433 = vxor.u32 %v2431, 2147483648
    %v2434 = vmul.f32 %v2433, 1.442695
    %v2435 = vpow.pop %v2434
    %v2436 = vadd.f32 %v2435, 1.0
    %v2437 = vrcp.pop %v2436
    %v2438 = vmul.f32 1.0, %v2437
    %v2439 = vrot.slane %v2423, 4
    %v2441 = vtanh.pop %v2439
    %v2442 = vrot.slane %v2423, 6
    %v2444 = vxor.u32 %v2442, 2147483648
    %v2445 = vmul.f32 %v2444, 1.442695
    %v2446 = vpow.pop %v2445
    %v2447 = vadd.f32 %v2446, 1.0
    %v2448 = vrcp.pop %v2447
    %v2449 = vmul.f32 1.0, %v2448
    %v2450 = vmul.f32 %v2438, %v2086
    %v2451 = vmul.f32 %v2429, %v2441
    %v2452 = vadd.f32 %v2450, %v2451
    %v2453 = vtanh.pop %v2452
    %v2454 = vmul.f32 %v2449, %v2453
    %2455 = vmatprep.subr.mxu0 %v211
    %2456 = vmatpush1.msra.mxu0 %v210
    %2457 = vmatprep.subr.mxu0 %v207
    %2458 = vmatpush1.msra.mxu0 %v206
    %2459 = vmatprep.subr.mxu0 %v203
    %2460 = vmatpush1.msra.mxu0 %v202
    %2461 = vmatprep.subr.mxu0 %v199
    %2462 = vmatpush1.msra.mxu0 %v198
    %2463 = vmatprep.subr.mxu0 %v195
    %2464 = vmatpush1.msra.mxu0 %v194
    %2465 = vmatprep.subr.mxu0 %v191
    %2466 = vmatpush1.msra.mxu0 %v190
    %2467 = vmatprep.subr.mxu0 %v187
    %2468 = vmatpush1.msra.mxu0 %v186
    %2469 = vmatprep.subr.mxu0 %v183
    %2470 = vmatpush1.msra.mxu0 %v182
    %2471 = vmatprep.subr.mxu0 %v179
    %2472 = vmatpush1.msra.mxu0 %v178
    %2473 = vmatprep.subr.mxu0 %v175
    %2474 = vmatpush1.msra.mxu0 %v174
    %2475 = vmatprep.subr.mxu0 %v171
    %2476 = vmatpush1.msra.mxu0 %v170
    %2477 = vmatprep.subr.mxu0 %v167
    %2478 = vmatpush1.msra.mxu0 %v166
    %2479 = vmatprep.subr.mxu0 %v163
    %2480 = vmatpush1.msra.mxu0 %v162
    %2481 = vmatprep.subr.mxu0 %v159
    %2482 = vmatpush1.msra.mxu0 %v158
    %2483 = vmatprep.subr.mxu0 %v155
    %2484 = vmatpush1.msra.mxu0 %v154
    %2485 = vmatprep.subr.mxu0 %v151
    %2486 = vmatpush1.msra.mxu0 %v150
    %2487 = vmatprep.subr.mxu0 %v275
    %2488 = vmatpush2.msra.mxu0 %v274
    %2489 = vmatprep.subr.mxu0 %v271
    %2490 = vmatpush2.msra.mxu0 %v270
    %2491 = vmatprep.subr.mxu0 %v267
    %2492 = vmatpush2.msra.mxu0 %v266
    %2493 = vmatprep.subr.mxu0 %v263
    %2494 = vmatpush2.msra.mxu0 %v262
    %2495 = vmatprep.subr.mxu0 %v259
    %2496 = vmatpush2.msra.mxu0 %v258
    %2497 = vmatprep.subr.mxu0 %v255
    %2498 = vmatpush2.msra.mxu0 %v254
    %2499 = vmatprep.subr.mxu0 %v251
    %2500 = vmatpush2.msra.mxu0 %v250
    %2501 = vmatprep.subr.mxu0 %v247
    %2502 = vmatpush2.msra.mxu0 %v246
    %2503 = vmatprep.subr.mxu0 %v243
    %2504 = vmatpush2.msra.mxu0 %v242
    %2505 = vmatprep.subr.mxu0 %v239
    %2506 = vmatpush2.msra.mxu0 %v238
    %2507 = vmatprep.subr.mxu0 %v235
    %2508 = vmatpush2.msra.mxu0 %v234
    %2509 = vmatprep.subr.mxu0 %v231
    %2510 = vmatpush2.msra.mxu0 %v230
    %2511 = vmatprep.subr.mxu0 %v227
    %2512 = vmatpush2.msra.mxu0 %v226
    %2513 = vmatprep.subr.mxu0 %v223
    %2514 = vmatpush2.msra.mxu0 %v222
    %2515 = vmatprep.subr.mxu0 %v219
    %2516 = vmatpush2.msra.mxu0 %v218
    %2517 = vmatprep.subr.mxu0 %v215
    %2518 = vmatpush2.msra.mxu0 %v214
    %2519 = vmatprep.mubr.f32.mxu0 %v2254
    %2520 = vmatmul.mubr.f32.gmra.mxu0 %v2454
    %v2521 = vpop.f32.mrf.mxu0
    %v2522 = vadd.f32 %v609, %v2521
    %v2523 = vpop.f32.mrf.mxu0
    %v2524 = vadd.f32 %v613, %v2523
    %2525 = vdwg.mxu0
    %2526 = vmatprep.subr.mxu0 %v213
    %2527 = vmatpush1.msra.mxu0 %v212
    %2528 = vmatprep.subr.mxu0 %v209
    %2529 = vmatpush1.msra.mxu0 %v208
    %2530 = vmatprep.subr.mxu0 %v205
    %2531 = vmatpush1.msra.mxu0 %v204
    %2532 = vmatprep.subr.mxu0 %v201
    %2533 = vmatpush1.msra.mxu0 %v200
    %2534 = vmatprep.subr.mxu0 %v197
    %2535 = vmatpush1.msra.mxu0 %v196
    %2536 = vmatprep.subr.mxu0 %v193
    %2537 = vmatpush1.msra.mxu0 %v192
    %2538 = vmatprep.subr.mxu0 %v189
    %2539 = vmatpush1.msra.mxu0 %v188
    %2540 = vmatprep.subr.mxu0 %v185
    %2541 = vmatpush1.msra.mxu0 %v184
    %2542 = vmatprep.subr.mxu0 %v181
    %2543 = vmatpush1.msra.mxu0 %v180
    %2544 = vmatprep.subr.mxu0 %v177
    %2545 = vmatpush1.msra.mxu0 %v176
    %2546 = vmatprep.subr.mxu0 %v173
    %2547 = vmatpush1.msra.mxu0 %v172
    %2548 = vmatprep.subr.mxu0 %v169
    %2549 = vmatpush1.msra.mxu0 %v168
    %2550 = vmatprep.subr.mxu0 %v165
    %2551 = vmatpush1.msra.mxu0 %v164
    %2552 = vmatprep.subr.mxu0 %v161
    %2553 = vmatpush1.msra.mxu0 %v160
    %2554 = vmatprep.subr.mxu0 %v157
    %2555 = vmatpush1.msra.mxu0 %v156
    %2556 = vmatprep.subr.mxu0 %v153
    %2557 = vmatpush1.msra.mxu0 %v152
    %2558 = vmatprep.subr.mxu0 %v277
    %2559 = vmatpush2.msra.mxu0 %v276
    %2560 = vmatprep.subr.mxu0 %v273
    %2561 = vmatpush2.msra.mxu0 %v272
    %2562 = vmatprep.subr.mxu0 %v269
    %2563 = vmatpush2.msra.mxu0 %v268
    %2564 = vmatprep.subr.mxu0 %v265
    %2565 = vmatpush2.msra.mxu0 %v264
    %2566 = vmatprep.subr.mxu0 %v261
    %2567 = vmatpush2.msra.mxu0 %v260
    %2568 = vmatprep.subr.mxu0 %v257
    %2569 = vmatpush2.msra.mxu0 %v256
    %2570 = vmatprep.subr.mxu0 %v253
    %2571 = vmatpush2.msra.mxu0 %v252
    %2572 = vmatprep.subr.mxu0 %v249
    %2573 = vmatpush2.msra.mxu0 %v248
    %2574 = vmatprep.subr.mxu0 %v245
    %2575 = vmatpush2.msra.mxu0 %v244
    %2576 = vmatprep.subr.mxu0 %v241
    %2577 = vmatpush2.msra.mxu0 %v240
    %2578 = vmatprep.subr.mxu0 %v237
    %2579 = vmatpush2.msra.mxu0 %v236
    %2580 = vmatprep.subr.mxu0 %v233
    %2581 = vmatpush2.msra.mxu0 %v232
    %2582 = vmatprep.subr.mxu0 %v229
    %2583 = vmatpush2.msra.mxu0 %v228
    %2584 = vmatprep.subr.mxu0 %v225
    %2585 = vmatpush2.msra.mxu0 %v224
    %2586 = vmatprep.subr.mxu0 %v221
    %2587 = vmatpush2.msra.mxu0 %v220
    %2588 = vmatprep.subr.mxu0 %v217
    %2589 = vmatpush2.msra.mxu0 %v216
    %2590 = vmatprep.mubr.f32.mxu0 %v2254
    %2591 = vmatmul.mubr.f32.gmra.mxu0 %v2454
    %v2592 = vpop.f32.mrf.mxu0
    %v2593 = vadd.f32 %v617, %v2592
    %v2594 = vpop.f32.mrf.mxu0
    %v2595 = vadd.f32 %v621, %v2594
    %2596 = vdwg.mxu0
    %v2597 = vxor.u32 %v2522, 2147483648
    %v2598 = vmul.f32 %v2597, 1.442695
    %v2599 = vpow.pop %v2598
    %v2600 = vadd.f32 %v2599, 1.0
    %v2601 = vrcp.pop %v2600
    %v2602 = vmul.f32 1.0, %v2601
    %v2603 = vxor.u32 %v2524, 2147483648
    %v2604 = vmul.f32 %v2603, 1.442695
    %v2605 = vpow.pop %v2604
    %v2606 = vadd.f32 %v2605, 1.0
    %v2607 = vrcp.pop %v2606
    %v2608 = vmul.f32 1.0, %v2607
    %v2609 = vtanh.pop %v2593
    %v2610 = vxor.u32 %v2595, 2147483648
    %v2611 = vmul.f32 %v2610, 1.442695
    %v2612 = vpow.pop %v2611
    %v2613 = vadd.f32 %v2612, 1.0
    %v2614 = vrcp.pop %v2613
    %v2615 = vmul.f32 1.0, %v2614
    %v2616 = vmul.f32 %v2608, %v2252
    %v2617 = vmul.f32 %v2602, %v2609
    %v2618 = vadd.f32 %v2616, %v2617
    %v2619 = vtanh.pop %v2618
    %v2620 = vmul.f32 %v2615, %v2619
    %s2621 = scalar_lea.vmem [#allocation2], 10
    %2622 = vst [vmem:[%s2621] sm:$0x3] %v2620
    %s2623 = scalar_lea.vmem [#allocation4], 48
    %v2624 = vld [vmem:[%s2623] sm:$0xff]
    %2625 = vmatprep.subr.mxu0 %v147
    %2626 = vmatpush1.msra.mxu0 %v146
    %2627 = vmatprep.subr.mxu0 %v143
    %2628 = vmatpush1.msra.mxu0 %v142
    %2629 = vmatprep.subr.mxu0 %v139
    %2630 = vmatpush1.msra.mxu0 %v138
    %2631 = vmatprep.subr.mxu0 %v135
    %2632 = vmatpush1.msra.mxu0 %v134
    %2633 = vmatprep.subr.mxu0 %v131
    %2634 = vmatpush1.msra.mxu0 %v130
    %2635 = vmatprep.subr.mxu0 %v127
    %2636 = vmatpush1.msra.mxu0 %v126
    %2637 = vmatprep.subr.mxu0 %v123
    %2638 = vmatpush1.msra.mxu0 %v122
    %2639 = vmatprep.subr.mxu0 %v119
    %2640 = vmatpush1.msra.mxu0 %v118
    %2641 = vmatprep.subr.mxu0 %v115
    %2642 = vmatpush1.msra.mxu0 %v114
    %2643 = vmatprep.subr.mxu0 %v111
    %2644 = vmatpush1.msra.mxu0 %v110
    %2645 = vmatprep.subr.mxu0 %v107
    %2646 = vmatpush1.msra.mxu0 %v106
    %2647 = vmatprep.subr.mxu0 %v103
    %2648 = vmatpush1.msra.mxu0 %v102
    %2649 = vmatprep.subr.mxu0 %v99
    %2650 = vmatpush1.msra.mxu0 %v98
    %2651 = vmatprep.subr.mxu0 %v95
    %2652 = vmatpush1.msra.mxu0 %v94
    %2653 = vmatprep.subr.mxu0 %v91
    %2654 = vmatpush1.msra.mxu0 %v90
    %2655 = vmatprep.subr.mxu0 %v87
    %2656 = vmatpush1.msra.mxu0 %v86
    %2657 = vmatprep.subr.mxu0 0.0
    %2658 = vmatpush2.msra.mxu0 0.0
    %2659 = vmatprep.subr.mxu0 0.0
    %2660 = vmatpush2.msra.mxu0 0.0
    %2661 = vmatprep.subr.mxu0 0.0
    %2662 = vmatpush2.msra.mxu0 0.0
    %2663 = vmatprep.subr.mxu0 0.0
    %2664 = vmatpush2.msra.mxu0 0.0
    %2665 = vmatprep.subr.mxu0 0.0
    %2666 = vmatpush2.msra.mxu0 0.0
    %2667 = vmatprep.subr.mxu0 0.0
    %2668 = vmatpush2.msra.mxu0 0.0
    %2669 = vmatprep.subr.mxu0 0.0
    %2670 = vmatpush2.msra.mxu0 0.0
    %2671 = vmatprep.subr.mxu0 0.0
    %2672 = vmatpush2.msra.mxu0 0.0
    %2673 = vmatprep.subr.mxu0 0.0
    %2674 = vmatpush2.msra.mxu0 0.0
    %2675 = vmatprep.subr.mxu0 0.0
    %2676 = vmatpush2.msra.mxu0 0.0
    %2677 = vmatprep.subr.mxu0 0.0
    %2678 = vmatpush2.msra.mxu0 0.0
    %2679 = vmatprep.subr.mxu0 0.0
    %2680 = vmatpush2.msra.mxu0 0.0
    %2681 = vmatprep.subr.mxu0 0.0
    %2682 = vmatpush2.msra.mxu0 0.0
    %2683 = vmatprep.subr.mxu0 0.0
    %2684 = vmatpush2.msra.mxu0 0.0
    %2685 = vmatprep.subr.mxu0 0.0
    %2686 = vmatpush2.msra.mxu0 0.0
    %2687 = vmatprep.subr.mxu0 0.0
    %2688 = vmatpush2.msra.mxu0 0.0
    %2689 = vmatprep.mubr.f32.mxu0 0.0
    %2690 = vmatmul.mubr.f32.gmra.mxu0 %v2454
    %v2691 = vpop.f32.mrf.mxu0
    %v2692 = vadd.f32 0.0, %v2691
    %v2693 = vpop.f32.mrf.mxu0
    %v2694 = vadd.f32 0.0, %v2693
    %2695 = vdwg.mxu0
    %2696 = vmatprep.subr.mxu0 %v149
    %2697 = vmatpush1.msra.mxu0 %v148
    %2698 = vmatprep.subr.mxu0 %v145
    %2699 = vmatpush1.msra.mxu0 %v144
    %2700 = vmatprep.subr.mxu0 %v141
    %2701 = vmatpush1.msra.mxu0 %v140
    %2702 = vmatprep.subr.mxu0 %v137
    %2703 = vmatpush1.msra.mxu0 %v136
    %2704 = vmatprep.subr.mxu0 %v133
    %2705 = vmatpush1.msra.mxu0 %v132
    %2706 = vmatprep.subr.mxu0 %v129
    %2707 = vmatpush1.msra.mxu0 %v128
    %2708 = vmatprep.subr.mxu0 %v125
    %2709 = vmatpush1.msra.mxu0 %v124
    %2710 = vmatprep.subr.mxu0 %v121
    %2711 = vmatpush1.msra.mxu0 %v120
    %2712 = vmatprep.subr.mxu0 %v117
    %2713 = vmatpush1.msra.mxu0 %v116
    %2714 = vmatprep.subr.mxu0 %v113
    %2715 = vmatpush1.msra.mxu0 %v112
    %2716 = vmatprep.subr.mxu0 %v109
    %2717 = vmatpush1.msra.mxu0 %v108
    %2718 = vmatprep.subr.mxu0 %v105
    %2719 = vmatpush1.msra.mxu0 %v104
    %2720 = vmatprep.subr.mxu0 %v101
    %2721 = vmatpush1.msra.mxu0 %v100
    %2722 = vmatprep.subr.mxu0 %v97
    %2723 = vmatpush1.msra.mxu0 %v96
    %2724 = vmatprep.subr.mxu0 %v93
    %2725 = vmatpush1.msra.mxu0 %v92
    %2726 = vmatprep.subr.mxu0 %v89
    %2727 = vmatpush1.msra.mxu0 %v88
    %2728 = vmatprep.subr.mxu0 0.0
    %2729 = vmatpush2.msra.mxu0 0.0
    %2730 = vmatprep.subr.mxu0 0.0
    %2731 = vmatpush2.msra.mxu0 0.0
    %2732 = vmatprep.subr.mxu0 0.0
    %2733 = vmatpush2.msra.mxu0 0.0
    %2734 = vmatprep.subr.mxu0 0.0
    %2735 = vmatpush2.msra.mxu0 0.0
    %2736 = vmatprep.subr.mxu0 0.0
    %2737 = vmatpush2.msra.mxu0 0.0
    %2738 = vmatprep.subr.mxu0 0.0
    %2739 = vmatpush2.msra.mxu0 0.0
    %2740 = vmatprep.subr.mxu0 0.0
    %2741 = vmatpush2.msra.mxu0 0.0
    %2742 = vmatprep.subr.mxu0 0.0
    %2743 = vmatpush2.msra.mxu0 0.0
    %2744 = vmatprep.subr.mxu0 0.0
    %2745 = vmatpush2.msra.mxu0 0.0
    %2746 = vmatprep.subr.mxu0 0.0
    %2747 = vmatpush2.msra.mxu0 0.0
    %2748 = vmatprep.subr.mxu0 0.0
    %2749 = vmatpush2.msra.mxu0 0.0
    %2750 = vmatprep.subr.mxu0 0.0
    %2751 = vmatpush2.msra.mxu0 0.0
    %2752 = vmatprep.subr.mxu0 0.0
    %2753 = vmatpush2.msra.mxu0 0.0
    %2754 = vmatprep.subr.mxu0 0.0
    %2755 = vmatpush2.msra.mxu0 0.0
    %2756 = vmatprep.subr.mxu0 0.0
    %2757 = vmatpush2.msra.mxu0 0.0
    %2758 = vmatprep.subr.mxu0 0.0
    %2759 = vmatpush2.msra.mxu0 0.0
    %2760 = vmatprep.mubr.f32.mxu0 0.0
    %2761 = vmatmul.mubr.f32.gmra.mxu0 %v2454
    %v2762 = vpop.f32.mrf.mxu0
    %v2763 = vadd.f32 0.0, %v2762
    %v2764 = vpop.f32.mrf.mxu0
    %v2765 = vadd.f32 0.0, %v2764
    %2766 = vdwg.mxu0
    %v2771 = vcombine.low %v2692, %v2694
    %v2772 = vcombine.low %v2763, %v2765
    %v2774 = vunpack.c.l.s4 1983009808
    %v2775 = vunpack.c.0.s8 %v2774
    %v2776 = vlaneseq
    %v2777 = vshrl.u32 %v2776, 7
    %v2778 = vsub.s32 %v2775, %v2777
    %v2779 = vrot.slane %v2771, %v2778
    %v2781 = vunpack.c.l.s4 1983009808
    %v2782 = vunpack.c.0.s8 %v2781
    %v2783 = vlaneseq
    %v2784 = vshrl.u32 %v2783, 7
    %v2785 = vsub.s32 %v2782, %v2784
    %v2786 = vrot.slane %v2772, %v2785
    %v2787 = vcombine.low %v2779, %v2786
    %v2789 = vadd.f32 %v2624, %v2787
    %v2790 = vxor.u32 %v2789, 2147483648
    %v2791 = vmul.f32 %v2790, 1.442695
    %v2792 = vpow.pop %v2791
    %v2793 = vadd.f32 %v2792, 1.0
    %v2794 = vrcp.pop %v2793
    %v2795 = vmul.f32 1.0, %v2794
    %v2797 = vrot.slane %v2789, 2
    %v2799 = vxor.u32 %v2797, 2147483648
    %v2800 = vmul.f32 %v2799, 1.442695
    %v2801 = vpow.pop %v2800
    %v2802 = vadd.f32 %v2801, 1.0
    %v2803 = vrcp.pop %v2802
    %v2804 = vmul.f32 1.0, %v2803
    %v2805 = vrot.slane %v2789, 4
    %v2807 = vtanh.pop %v2805
    %v2808 = vrot.slane %v2789, 6
    %v2810 = vxor.u32 %v2808, 2147483648
    %v2811 = vmul.f32 %v2810, 1.442695
    %v2812 = vpow.pop %v2811
    %v2813 = vadd.f32 %v2812, 1.0
    %v2814 = vrcp.pop %v2813
    %v2815 = vmul.f32 1.0, %v2814
    %v2816 = vmul.f32 %v2804, %v2452
    %v2817 = vmul.f32 %v2795, %v2807
    %v2818 = vadd.f32 %v2816, %v2817
    %v2819 = vtanh.pop %v2818
    %v2820 = vmul.f32 %v2815, %v2819
    %2821 = vmatprep.subr.mxu0 %v211
    %2822 = vmatpush1.msra.mxu0 %v210
    %2823 = vmatprep.subr.mxu0 %v207
    %2824 = vmatpush1.msra.mxu0 %v206
    %2825 = vmatprep.subr.mxu0 %v203
    %2826 = vmatpush1.msra.mxu0 %v202
    %2827 = vmatprep.subr.mxu0 %v199
    %2828 = vmatpush1.msra.mxu0 %v198
    %2829 = vmatprep.subr.mxu0 %v195
    %2830 = vmatpush1.msra.mxu0 %v194
    %2831 = vmatprep.subr.mxu0 %v191
    %2832 = vmatpush1.msra.mxu0 %v190
    %2833 = vmatprep.subr.mxu0 %v187
    %2834 = vmatpush1.msra.mxu0 %v186
    %2835 = vmatprep.subr.mxu0 %v183
    %2836 = vmatpush1.msra.mxu0 %v182
    %2837 = vmatprep.subr.mxu0 %v179
    %2838 = vmatpush1.msra.mxu0 %v178
    %2839 = vmatprep.subr.mxu0 %v175
    %2840 = vmatpush1.msra.mxu0 %v174
    %2841 = vmatprep.subr.mxu0 %v171
    %2842 = vmatpush1.msra.mxu0 %v170
    %2843 = vmatprep.subr.mxu0 %v167
    %2844 = vmatpush1.msra.mxu0 %v166
    %2845 = vmatprep.subr.mxu0 %v163
    %2846 = vmatpush1.msra.mxu0 %v162
    %2847 = vmatprep.subr.mxu0 %v159
    %2848 = vmatpush1.msra.mxu0 %v158
    %2849 = vmatprep.subr.mxu0 %v155
    %2850 = vmatpush1.msra.mxu0 %v154
    %2851 = vmatprep.subr.mxu0 %v151
    %2852 = vmatpush1.msra.mxu0 %v150
    %2853 = vmatprep.subr.mxu0 %v275
    %2854 = vmatpush2.msra.mxu0 %v274
    %2855 = vmatprep.subr.mxu0 %v271
    %2856 = vmatpush2.msra.mxu0 %v270
    %2857 = vmatprep.subr.mxu0 %v267
    %2858 = vmatpush2.msra.mxu0 %v266
    %2859 = vmatprep.subr.mxu0 %v263
    %2860 = vmatpush2.msra.mxu0 %v262
    %2861 = vmatprep.subr.mxu0 %v259
    %2862 = vmatpush2.msra.mxu0 %v258
    %2863 = vmatprep.subr.mxu0 %v255
    %2864 = vmatpush2.msra.mxu0 %v254
    %2865 = vmatprep.subr.mxu0 %v251
    %2866 = vmatpush2.msra.mxu0 %v250
    %2867 = vmatprep.subr.mxu0 %v247
    %2868 = vmatpush2.msra.mxu0 %v246
    %2869 = vmatprep.subr.mxu0 %v243
    %2870 = vmatpush2.msra.mxu0 %v242
    %2871 = vmatprep.subr.mxu0 %v239
    %2872 = vmatpush2.msra.mxu0 %v238
    %2873 = vmatprep.subr.mxu0 %v235
    %2874 = vmatpush2.msra.mxu0 %v234
    %2875 = vmatprep.subr.mxu0 %v231
    %2876 = vmatpush2.msra.mxu0 %v230
    %2877 = vmatprep.subr.mxu0 %v227
    %2878 = vmatpush2.msra.mxu0 %v226
    %2879 = vmatprep.subr.mxu0 %v223
    %2880 = vmatpush2.msra.mxu0 %v222
    %2881 = vmatprep.subr.mxu0 %v219
    %2882 = vmatpush2.msra.mxu0 %v218
    %2883 = vmatprep.subr.mxu0 %v215
    %2884 = vmatpush2.msra.mxu0 %v214
    %2885 = vmatprep.mubr.f32.mxu0 %v2620
    %2886 = vmatmul.mubr.f32.gmra.mxu0 %v2820
    %v2887 = vpop.f32.mrf.mxu0
    %v2888 = vadd.f32 %v609, %v2887
    %v2889 = vpop.f32.mrf.mxu0
    %v2890 = vadd.f32 %v613, %v2889
    %2891 = vdwg.mxu0
    %2892 = vmatprep.subr.mxu0 %v213
    %2893 = vmatpush1.msra.mxu0 %v212
    %2894 = vmatprep.subr.mxu0 %v209
    %2895 = vmatpush1.msra.mxu0 %v208
    %2896 = vmatprep.subr.mxu0 %v205
    %2897 = vmatpush1.msra.mxu0 %v204
    %2898 = vmatprep.subr.mxu0 %v201
    %2899 = vmatpush1.msra.mxu0 %v200
    %2900 = vmatprep.subr.mxu0 %v197
    %2901 = vmatpush1.msra.mxu0 %v196
    %2902 = vmatprep.subr.mxu0 %v193
    %2903 = vmatpush1.msra.mxu0 %v192
    %2904 = vmatprep.subr.mxu0 %v189
    %2905 = vmatpush1.msra.mxu0 %v188
    %2906 = vmatprep.subr.mxu0 %v185
    %2907 = vmatpush1.msra.mxu0 %v184
    %2908 = vmatprep.subr.mxu0 %v181
    %2909 = vmatpush1.msra.mxu0 %v180
    %2910 = vmatprep.subr.mxu0 %v177
    %2911 = vmatpush1.msra.mxu0 %v176
    %2912 = vmatprep.subr.mxu0 %v173
    %2913 = vmatpush1.msra.mxu0 %v172
    %2914 = vmatprep.subr.mxu0 %v169
    %2915 = vmatpush1.msra.mxu0 %v168
    %2916 = vmatprep.subr.mxu0 %v165
    %2917 = vmatpush1.msra.mxu0 %v164
    %2918 = vmatprep.subr.mxu0 %v161
    %2919 = vmatpush1.msra.mxu0 %v160
    %2920 = vmatprep.subr.mxu0 %v157
    %2921 = vmatpush1.msra.mxu0 %v156
    %2922 = vmatprep.subr.mxu0 %v153
    %2923 = vmatpush1.msra.mxu0 %v152
    %2924 = vmatprep.subr.mxu0 %v277
    %2925 = vmatpush2.msra.mxu0 %v276
    %2926 = vmatprep.subr.mxu0 %v273
    %2927 = vmatpush2.msra.mxu0 %v272
    %2928 = vmatprep.subr.mxu0 %v269
    %2929 = vmatpush2.msra.mxu0 %v268
    %2930 = vmatprep.subr.mxu0 %v265
    %2931 = vmatpush2.msra.mxu0 %v264
    %2932 = vmatprep.subr.mxu0 %v261
    %2933 = vmatpush2.msra.mxu0 %v260
    %2934 = vmatprep.subr.mxu0 %v257
    %2935 = vmatpush2.msra.mxu0 %v256
    %2936 = vmatprep.subr.mxu0 %v253
    %2937 = vmatpush2.msra.mxu0 %v252
    %2938 = vmatprep.subr.mxu0 %v249
    %2939 = vmatpush2.msra.mxu0 %v248
    %2940 = vmatprep.subr.mxu0 %v245
    %2941 = vmatpush2.msra.mxu0 %v244
    %2942 = vmatprep.subr.mxu0 %v241
    %2943 = vmatpush2.msra.mxu0 %v240
    %2944 = vmatprep.subr.mxu0 %v237
    %2945 = vmatpush2.msra.mxu0 %v236
    %2946 = vmatprep.subr.mxu0 %v233
    %2947 = vmatpush2.msra.mxu0 %v232
    %2948 = vmatprep.subr.mxu0 %v229
    %2949 = vmatpush2.msra.mxu0 %v228
    %2950 = vmatprep.subr.mxu0 %v225
    %2951 = vmatpush2.msra.mxu0 %v224
    %2952 = vmatprep.subr.mxu0 %v221
    %2953 = vmatpush2.msra.mxu0 %v220
    %2954 = vmatprep.subr.mxu0 %v217
    %2955 = vmatpush2.msra.mxu0 %v216
    %2956 = vmatprep.mubr.f32.mxu0 %v2620
    %2957 = vmatmul.mubr.f32.gmra.mxu0 %v2820
    %v2958 = vpop.f32.mrf.mxu0
    %v2959 = vadd.f32 %v617, %v2958
    %v2960 = vpop.f32.mrf.mxu0
    %v2961 = vadd.f32 %v621, %v2960
    %2962 = vdwg.mxu0
    %v2963 = vxor.u32 %v2888, 2147483648
    %v2964 = vmul.f32 %v2963, 1.442695
    %v2965 = vpow.pop %v2964
    %v2966 = vadd.f32 %v2965, 1.0
    %v2967 = vrcp.pop %v2966
    %v2968 = vmul.f32 1.0, %v2967
    %v2969 = vxor.u32 %v2890, 2147483648
    %v2970 = vmul.f32 %v2969, 1.442695
    %v2971 = vpow.pop %v2970
    %v2972 = vadd.f32 %v2971, 1.0
    %v2973 = vrcp.pop %v2972
    %v2974 = vmul.f32 1.0, %v2973
    %v2975 = vtanh.pop %v2959
    %v2976 = vxor.u32 %v2961, 2147483648
    %v2977 = vmul.f32 %v2976, 1.442695
    %v2978 = vpow.pop %v2977
    %v2979 = vadd.f32 %v2978, 1.0
    %v2980 = vrcp.pop %v2979
    %v2981 = vmul.f32 1.0, %v2980
    %v2982 = vmul.f32 %v2974, %v2618
    %v2983 = vmul.f32 %v2968, %v2975
    %v2984 = vadd.f32 %v2982, %v2983
    %v2985 = vtanh.pop %v2984
    %v2986 = vmul.f32 %v2981, %v2985
    %s2987 = scalar_lea.vmem [#allocation2], 12
    %2988 = vst [vmem:[%s2987] sm:$0x3] %v2986
    %s2989 = scalar_lea.vmem [#allocation4], 56
    %v2990 = vld [vmem:[%s2989] sm:$0xff]
    %2991 = vmatprep.subr.mxu0 %v147
    %2992 = vmatpush1.msra.mxu0 %v146
    %2993 = vmatprep.subr.mxu0 %v143
    %2994 = vmatpush1.msra.mxu0 %v142
    %2995 = vmatprep.subr.mxu0 %v139
    %2996 = vmatpush1.msra.mxu0 %v138
    %2997 = vmatprep.subr.mxu0 %v135
    %2998 = vmatpush1.msra.mxu0 %v134
    %2999 = vmatprep.subr.mxu0 %v131
    %3000 = vmatpush1.msra.mxu0 %v130
    %3001 = vmatprep.subr.mxu0 %v127
    %3002 = vmatpush1.msra.mxu0 %v126
    %3003 = vmatprep.subr.mxu0 %v123
    %3004 = vmatpush1.msra.mxu0 %v122
    %3005 = vmatprep.subr.mxu0 %v119
    %3006 = vmatpush1.msra.mxu0 %v118
    %3007 = vmatprep.subr.mxu0 %v115
    %3008 = vmatpush1.msra.mxu0 %v114
    %3009 = vmatprep.subr.mxu0 %v111
    %3010 = vmatpush1.msra.mxu0 %v110
    %3011 = vmatprep.subr.mxu0 %v107
    %3012 = vmatpush1.msra.mxu0 %v106
    %3013 = vmatprep.subr.mxu0 %v103
    %3014 = vmatpush1.msra.mxu0 %v102
    %3015 = vmatprep.subr.mxu0 %v99
    %3016 = vmatpush1.msra.mxu0 %v98
    %3017 = vmatprep.subr.mxu0 %v95
    %3018 = vmatpush1.msra.mxu0 %v94
    %3019 = vmatprep.subr.mxu0 %v91
    %3020 = vmatpush1.msra.mxu0 %v90
    %3021 = vmatprep.subr.mxu0 %v87
    %3022 = vmatpush1.msra.mxu0 %v86
    %3023 = vmatprep.subr.mxu0 0.0
    %3024 = vmatpush2.msra.mxu0 0.0
    %3025 = vmatprep.subr.mxu0 0.0
    %3026 = vmatpush2.msra.mxu0 0.0
    %3027 = vmatprep.subr.mxu0 0.0
    %3028 = vmatpush2.msra.mxu0 0.0
    %3029 = vmatprep.subr.mxu0 0.0
    %3030 = vmatpush2.msra.mxu0 0.0
    %3031 = vmatprep.subr.mxu0 0.0
    %3032 = vmatpush2.msra.mxu0 0.0
    %3033 = vmatprep.subr.mxu0 0.0
    %3034 = vmatpush2.msra.mxu0 0.0
    %3035 = vmatprep.subr.mxu0 0.0
    %3036 = vmatpush2.msra.mxu0 0.0
    %3037 = vmatprep.subr.mxu0 0.0
    %3038 = vmatpush2.msra.mxu0 0.0
    %3039 = vmatprep.subr.mxu0 0.0
    %3040 = vmatpush2.msra.mxu0 0.0
    %3041 = vmatprep.subr.mxu0 0.0
    %3042 = vmatpush2.msra.mxu0 0.0
    %3043 = vmatprep.subr.mxu0 0.0
    %3044 = vmatpush2.msra.mxu0 0.0
    %3045 = vmatprep.subr.mxu0 0.0
    %3046 = vmatpush2.msra.mxu0 0.0
    %3047 = vmatprep.subr.mxu0 0.0
    %3048 = vmatpush2.msra.mxu0 0.0
    %3049 = vmatprep.subr.mxu0 0.0
    %3050 = vmatpush2.msra.mxu0 0.0
    %3051 = vmatprep.subr.mxu0 0.0
    %3052 = vmatpush2.msra.mxu0 0.0
    %3053 = vmatprep.subr.mxu0 0.0
    %3054 = vmatpush2.msra.mxu0 0.0
    %3055 = vmatprep.mubr.f32.mxu0 0.0
    %3056 = vmatmul.mubr.f32.gmra.mxu0 %v2820
    %v3057 = vpop.f32.mrf.mxu0
    %v3058 = vadd.f32 0.0, %v3057
    %v3059 = vpop.f32.mrf.mxu0
    %v3060 = vadd.f32 0.0, %v3059
    %3061 = vdwg.mxu0
    %3062 = vmatprep.subr.mxu0 %v149
    %3063 = vmatpush1.msra.mxu0 %v148
    %3064 = vmatprep.subr.mxu0 %v145
    %3065 = vmatpush1.msra.mxu0 %v144
    %3066 = vmatprep.subr.mxu0 %v141
    %3067 = vmatpush1.msra.mxu0 %v140
    %3068 = vmatprep.subr.mxu0 %v137
    %3069 = vmatpush1.msra.mxu0 %v136
    %3070 = vmatprep.subr.mxu0 %v133
    %3071 = vmatpush1.msra.mxu0 %v132
    %3072 = vmatprep.subr.mxu0 %v129
    %3073 = vmatpush1.msra.mxu0 %v128
    %3074 = vmatprep.subr.mxu0 %v125
    %3075 = vmatpush1.msra.mxu0 %v124
    %3076 = vmatprep.subr.mxu0 %v121
    %3077 = vmatpush1.msra.mxu0 %v120
    %3078 = vmatprep.subr.mxu0 %v117
    %3079 = vmatpush1.msra.mxu0 %v116
    %3080 = vmatprep.subr.mxu0 %v113
    %3081 = vmatpush1.msra.mxu0 %v112
    %3082 = vmatprep.subr.mxu0 %v109
    %3083 = vmatpush1.msra.mxu0 %v108
    %3084 = vmatprep.subr.mxu0 %v105
    %3085 = vmatpush1.msra.mxu0 %v104
    %3086 = vmatprep.subr.mxu0 %v101
    %3087 = vmatpush1.msra.mxu0 %v100
    %3088 = vmatprep.subr.mxu0 %v97
    %3089 = vmatpush1.msra.mxu0 %v96
    %3090 = vmatprep.subr.mxu0 %v93
    %3091 = vmatpush1.msra.mxu0 %v92
    %3092 = vmatprep.subr.mxu0 %v89
    %3093 = vmatpush1.msra.mxu0 %v88
    %3094 = vmatprep.subr.mxu0 0.0
    %3095 = vmatpush2.msra.mxu0 0.0
    %3096 = vmatprep.subr.mxu0 0.0
    %3097 = vmatpush2.msra.mxu0 0.0
    %3098 = vmatprep.subr.mxu0 0.0
    %3099 = vmatpush2.msra.mxu0 0.0
    %3100 = vmatprep.subr.mxu0 0.0
    %3101 = vmatpush2.msra.mxu0 0.0
    %3102 = vmatprep.subr.mxu0 0.0
    %3103 = vmatpush2.msra.mxu0 0.0
    %3104 = vmatprep.subr.mxu0 0.0
    %3105 = vmatpush2.msra.mxu0 0.0
    %3106 = vmatprep.subr.mxu0 0.0
    %3107 = vmatpush2.msra.mxu0 0.0
    %3108 = vmatprep.subr.mxu0 0.0
    %3109 = vmatpush2.msra.mxu0 0.0
    %3110 = vmatprep.subr.mxu0 0.0
    %3111 = vmatpush2.msra.mxu0 0.0
    %3112 = vmatprep.subr.mxu0 0.0
    %3113 = vmatpush2.msra.mxu0 0.0
    %3114 = vmatprep.subr.mxu0 0.0
    %3115 = vmatpush2.msra.mxu0 0.0
    %3116 = vmatprep.subr.mxu0 0.0
    %3117 = vmatpush2.msra.mxu0 0.0
    %3118 = vmatprep.subr.mxu0 0.0
    %3119 = vmatpush2.msra.mxu0 0.0
    %3120 = vmatprep.subr.mxu0 0.0
    %3121 = vmatpush2.msra.mxu0 0.0
    %3122 = vmatprep.subr.mxu0 0.0
    %3123 = vmatpush2.msra.mxu0 0.0
    %3124 = vmatprep.subr.mxu0 0.0
    %3125 = vmatpush2.msra.mxu0 0.0
    %3126 = vmatprep.mubr.f32.mxu0 0.0
    %3127 = vmatmul.mubr.f32.gmra.mxu0 %v2820
    %v3128 = vpop.f32.mrf.mxu0
    %v3129 = vadd.f32 0.0, %v3128
    %v3130 = vpop.f32.mrf.mxu0
    %v3131 = vadd.f32 0.0, %v3130
    %3132 = vdwg.mxu0
    %v3137 = vcombine.low %v3058, %v3060
    %v3138 = vcombine.low %v3129, %v3131
    %v3140 = vunpack.c.l.s4 1983009808
    %v3141 = vunpack.c.0.s8 %v3140
    %v3142 = vlaneseq
    %v3143 = vshrl.u32 %v3142, 7
    %v3144 = vsub.s32 %v3141, %v3143
    %v3145 = vrot.slane %v3137, %v3144
    %v3147 = vunpack.c.l.s4 1983009808
    %v3148 = vunpack.c.0.s8 %v3147
    %v3149 = vlaneseq
    %v3150 = vshrl.u32 %v3149, 7
    %v3151 = vsub.s32 %v3148, %v3150
    %v3152 = vrot.slane %v3138, %v3151
    %v3153 = vcombine.low %v3145, %v3152
    %v3155 = vadd.f32 %v2990, %v3153
    %v3156 = vxor.u32 %v3155, 2147483648
    %v3157 = vmul.f32 %v3156, 1.442695
    %v3158 = vpow.pop %v3157
    %v3159 = vadd.f32 %v3158, 1.0
    %v3160 = vrcp.pop %v3159
    %v3161 = vmul.f32 1.0, %v3160
    %v3163 = vrot.slane %v3155, 2
    %v3165 = vxor.u32 %v3163, 2147483648
    %v3166 = vmul.f32 %v3165, 1.442695
    %v3167 = vpow.pop %v3166
    %v3168 = vadd.f32 %v3167, 1.0
    %v3169 = vrcp.pop %v3168
    %v3170 = vmul.f32 1.0, %v3169
    %v3171 = vrot.slane %v3155, 4
    %v3173 = vtanh.pop %v3171
    %v3174 = vrot.slane %v3155, 6
    %v3176 = vxor.u32 %v3174, 2147483648
    %v3177 = vmul.f32 %v3176, 1.442695
    %v3178 = vpow.pop %v3177
    %v3179 = vadd.f32 %v3178, 1.0
    %v3180 = vrcp.pop %v3179
    %v3181 = vmul.f32 1.0, %v3180
    %v3182 = vmul.f32 %v3170, %v2818
    %v3183 = vmul.f32 %v3161, %v3173
    %v3184 = vadd.f32 %v3182, %v3183
    %v3185 = vtanh.pop %v3184
    %v3186 = vmul.f32 %v3181, %v3185
    %3187 = vmatprep.subr.mxu0 %v211
    %3188 = vmatpush1.msra.mxu0 %v210
    %3189 = vmatprep.subr.mxu0 %v207
    %3190 = vmatpush1.msra.mxu0 %v206
    %3191 = vmatprep.subr.mxu0 %v203
    %3192 = vmatpush1.msra.mxu0 %v202
    %3193 = vmatprep.subr.mxu0 %v199
    %3194 = vmatpush1.msra.mxu0 %v198
    %3195 = vmatprep.subr.mxu0 %v195
    %3196 = vmatpush1.msra.mxu0 %v194
    %3197 = vmatprep.subr.mxu0 %v191
    %3198 = vmatpush1.msra.mxu0 %v190
    %3199 = vmatprep.subr.mxu0 %v187
    %3200 = vmatpush1.msra.mxu0 %v186
    %3201 = vmatprep.subr.mxu0 %v183
    %3202 = vmatpush1.msra.mxu0 %v182
    %3203 = vmatprep.subr.mxu0 %v179
    %3204 = vmatpush1.msra.mxu0 %v178
    %3205 = vmatprep.subr.mxu0 %v175
    %3206 = vmatpush1.msra.mxu0 %v174
    %3207 = vmatprep.subr.mxu0 %v171
    %3208 = vmatpush1.msra.mxu0 %v170
    %3209 = vmatprep.subr.mxu0 %v167
    %3210 = vmatpush1.msra.mxu0 %v166
    %3211 = vmatprep.subr.mxu0 %v163
    %3212 = vmatpush1.msra.mxu0 %v162
    %3213 = vmatprep.subr.mxu0 %v159
    %3214 = vmatpush1.msra.mxu0 %v158
    %3215 = vmatprep.subr.mxu0 %v155
    %3216 = vmatpush1.msra.mxu0 %v154
    %3217 = vmatprep.subr.mxu0 %v151
    %3218 = vmatpush1.msra.mxu0 %v150
    %3219 = vmatprep.subr.mxu0 %v275
    %3220 = vmatpush2.msra.mxu0 %v274
    %3221 = vmatprep.subr.mxu0 %v271
    %3222 = vmatpush2.msra.mxu0 %v270
    %3223 = vmatprep.subr.mxu0 %v267
    %3224 = vmatpush2.msra.mxu0 %v266
    %3225 = vmatprep.subr.mxu0 %v263
    %3226 = vmatpush2.msra.mxu0 %v262
    %3227 = vmatprep.subr.mxu0 %v259
    %3228 = vmatpush2.msra.mxu0 %v258
    %3229 = vmatprep.subr.mxu0 %v255
    %3230 = vmatpush2.msra.mxu0 %v254
    %3231 = vmatprep.subr.mxu0 %v251
    %3232 = vmatpush2.msra.mxu0 %v250
    %3233 = vmatprep.subr.mxu0 %v247
    %3234 = vmatpush2.msra.mxu0 %v246
    %3235 = vmatprep.subr.mxu0 %v243
    %3236 = vmatpush2.msra.mxu0 %v242
    %3237 = vmatprep.subr.mxu0 %v239
    %3238 = vmatpush2.msra.mxu0 %v238
    %3239 = vmatprep.subr.mxu0 %v235
    %3240 = vmatpush2.msra.mxu0 %v234
    %3241 = vmatprep.subr.mxu0 %v231
    %3242 = vmatpush2.msra.mxu0 %v230
    %3243 = vmatprep.subr.mxu0 %v227
    %3244 = vmatpush2.msra.mxu0 %v226
    %3245 = vmatprep.subr.mxu0 %v223
    %3246 = vmatpush2.msra.mxu0 %v222
    %3247 = vmatprep.subr.mxu0 %v219
    %3248 = vmatpush2.msra.mxu0 %v218
    %3249 = vmatprep.subr.mxu0 %v215
    %3250 = vmatpush2.msra.mxu0 %v214
    %3251 = vmatprep.mubr.f32.mxu0 %v2986
    %3252 = vmatmul.mubr.f32.gmra.mxu0 %v3186
    %v3253 = vpop.f32.mrf.mxu0
    %v3254 = vadd.f32 %v609, %v3253
    %v3255 = vpop.f32.mrf.mxu0
    %v3256 = vadd.f32 %v613, %v3255
    %3257 = vdwg.mxu0
    %3258 = vmatprep.subr.mxu0 %v213
    %3259 = vmatpush1.msra.mxu0 %v212
    %3260 = vmatprep.subr.mxu0 %v209
    %3261 = vmatpush1.msra.mxu0 %v208
    %3262 = vmatprep.subr.mxu0 %v205
    %3263 = vmatpush1.msra.mxu0 %v204
    %3264 = vmatprep.subr.mxu0 %v201
    %3265 = vmatpush1.msra.mxu0 %v200
    %3266 = vmatprep.subr.mxu0 %v197
    %3267 = vmatpush1.msra.mxu0 %v196
    %3268 = vmatprep.subr.mxu0 %v193
    %3269 = vmatpush1.msra.mxu0 %v192
    %3270 = vmatprep.subr.mxu0 %v189
    %3271 = vmatpush1.msra.mxu0 %v188
    %3272 = vmatprep.subr.mxu0 %v185
    %3273 = vmatpush1.msra.mxu0 %v184
    %3274 = vmatprep.subr.mxu0 %v181
    %3275 = vmatpush1.msra.mxu0 %v180
    %3276 = vmatprep.subr.mxu0 %v177
    %3277 = vmatpush1.msra.mxu0 %v176
    %3278 = vmatprep.subr.mxu0 %v173
    %3279 = vmatpush1.msra.mxu0 %v172
    %3280 = vmatprep.subr.mxu0 %v169
    %3281 = vmatpush1.msra.mxu0 %v168
    %3282 = vmatprep.subr.mxu0 %v165
    %3283 = vmatpush1.msra.mxu0 %v164
    %3284 = vmatprep.subr.mxu0 %v161
    %3285 = vmatpush1.msra.mxu0 %v160
    %3286 = vmatprep.subr.mxu0 %v157
    %3287 = vmatpush1.msra.mxu0 %v156
    %3288 = vmatprep.subr.mxu0 %v153
    %3289 = vmatpush1.msra.mxu0 %v152
    %3290 = vmatprep.subr.mxu0 %v277
    %3291 = vmatpush2.msra.mxu0 %v276
    %3292 = vmatprep.subr.mxu0 %v273
    %3293 = vmatpush2.msra.mxu0 %v272
    %3294 = vmatprep.subr.mxu0 %v269
    %3295 = vmatpush2.msra.mxu0 %v268
    %3296 = vmatprep.subr.mxu0 %v265
    %3297 = vmatpush2.msra.mxu0 %v264
    %3298 = vmatprep.subr.mxu0 %v261
    %3299 = vmatpush2.msra.mxu0 %v260
    %3300 = vmatprep.subr.mxu0 %v257
    %3301 = vmatpush2.msra.mxu0 %v256
    %3302 = vmatprep.subr.mxu0 %v253
    %3303 = vmatpush2.msra.mxu0 %v252
    %3304 = vmatprep.subr.mxu0 %v249
    %3305 = vmatpush2.msra.mxu0 %v248
    %3306 = vmatprep.subr.mxu0 %v245
    %3307 = vmatpush2.msra.mxu0 %v244
    %3308 = vmatprep.subr.mxu0 %v241
    %3309 = vmatpush2.msra.mxu0 %v240
    %3310 = vmatprep.subr.mxu0 %v237
    %3311 = vmatpush2.msra.mxu0 %v236
    %3312 = vmatprep.subr.mxu0 %v233
    %3313 = vmatpush2.msra.mxu0 %v232
    %3314 = vmatprep.subr.mxu0 %v229
    %3315 = vmatpush2.msra.mxu0 %v228
    %3316 = vmatprep.subr.mxu0 %v225
    %3317 = vmatpush2.msra.mxu0 %v224
    %3318 = vmatprep.subr.mxu0 %v221
    %3319 = vmatpush2.msra.mxu0 %v220
    %3320 = vmatprep.subr.mxu0 %v217
    %3321 = vmatpush2.msra.mxu0 %v216
    %3322 = vmatprep.mubr.f32.mxu0 %v2986
    %3323 = vmatmul.mubr.f32.gmra.mxu0 %v3186
    %v3324 = vpop.f32.mrf.mxu0
    %v3325 = vadd.f32 %v617, %v3324
    %v3326 = vpop.f32.mrf.mxu0
    %v3327 = vadd.f32 %v621, %v3326
    %3328 = vdwg.mxu0
    %v3329 = vxor.u32 %v3254, 2147483648
    %v3330 = vmul.f32 %v3329, 1.442695
    %v3331 = vpow.pop %v3330
    %v3332 = vadd.f32 %v3331, 1.0
    %v3333 = vrcp.pop %v3332
    %v3334 = vmul.f32 1.0, %v3333
    %v3335 = vxor.u32 %v3256, 2147483648
    %v3336 = vmul.f32 %v3335, 1.442695
    %v3337 = vpow.pop %v3336
    %v3338 = vadd.f32 %v3337, 1.0
    %v3339 = vrcp.pop %v3338
    %v3340 = vmul.f32 1.0, %v3339
    %v3341 = vtanh.pop %v3325
    %v3342 = vxor.u32 %v3327, 2147483648
    %v3343 = vmul.f32 %v3342, 1.442695
    %v3344 = vpow.pop %v3343
    %v3345 = vadd.f32 %v3344, 1.0
    %v3346 = vrcp.pop %v3345
    %v3347 = vmul.f32 1.0, %v3346
    %v3348 = vmul.f32 %v3340, %v2984
    %v3349 = vmul.f32 %v3334, %v3341
    %v3350 = vadd.f32 %v3348, %v3349
    %v3351 = vtanh.pop %v3350
    %v3352 = vmul.f32 %v3347, %v3351
    %s3353 = scalar_lea.vmem [#allocation2], 14
    %3354 = vst [vmem:[%s3353] sm:$0x3] %v3352
    %v3356 = vlaneseq
    %v3357 = vshrl.u32 %v3356, 7
    %v3358 = vsub.s32 0, %v3357
    %v3359 = vrot.slane %v407, %v3358
    %v3360 = vlaneseq
    %v3361 = vshrl.u32 %v3360, 7
    %v3362 = vsub.s32 1, %v3361
    %v3363 = vrot.slane %v407, %v3362
    %v3364 = vlaneseq
    %v3365 = vshrl.u32 %v3364, 7
    %v3366 = vsub.s32 2, %v3365
    %v3367 = vrot.slane %v407, %v3366
    %v3368 = vlaneseq
    %v3369 = vshrl.u32 %v3368, 7
    %v3370 = vsub.s32 3, %v3369
    %v3371 = vrot.slane %v407, %v3370
    %3376 = vmatprep.subr.mxu0 %v340
    %3377 = vmatpush1.msra.mxu0 %v339
    %3378 = vmatprep.subr.mxu0 %v336
    %3379 = vmatpush1.msra.mxu0 %v335
    %3380 = vmatprep.subr.mxu0 %v332
    %3381 = vmatpush1.msra.mxu0 %v331
    %3382 = vmatprep.subr.mxu0 %v328
    %3383 = vmatpush1.msra.mxu0 %v327
    %3384 = vmatprep.subr.mxu0 %v324
    %3385 = vmatpush1.msra.mxu0 %v323
    %3386 = vmatprep.subr.mxu0 %v320
    %3387 = vmatpush1.msra.mxu0 %v319
    %3388 = vmatprep.subr.mxu0 %v316
    %3389 = vmatpush1.msra.mxu0 %v315
    %3390 = vmatprep.subr.mxu0 %v312
    %3391 = vmatpush1.msra.mxu0 %v311
    %3392 = vmatprep.subr.mxu0 %v308
    %3393 = vmatpush1.msra.mxu0 %v307
    %3394 = vmatprep.subr.mxu0 %v304
    %3395 = vmatpush1.msra.mxu0 %v303
    %3396 = vmatprep.subr.mxu0 %v300
    %3397 = vmatpush1.msra.mxu0 %v299
    %3398 = vmatprep.subr.mxu0 %v296
    %3399 = vmatpush1.msra.mxu0 %v295
    %3400 = vmatprep.subr.mxu0 %v292
    %3401 = vmatpush1.msra.mxu0 %v291
    %3402 = vmatprep.subr.mxu0 %v288
    %3403 = vmatpush1.msra.mxu0 %v287
    %3404 = vmatprep.subr.mxu0 %v284
    %3405 = vmatpush1.msra.mxu0 %v283
    %3406 = vmatprep.subr.mxu0 %v280
    %3407 = vmatpush1.msra.mxu0 %v279
    %3408 = vmatprep.subr.mxu0 %v404
    %3409 = vmatpush2.msra.mxu0 %v403
    %3410 = vmatprep.subr.mxu0 %v400
    %3411 = vmatpush2.msra.mxu0 %v399
    %3412 = vmatprep.subr.mxu0 %v396
    %3413 = vmatpush2.msra.mxu0 %v395
    %3414 = vmatprep.subr.mxu0 %v392
    %3415 = vmatpush2.msra.mxu0 %v391
    %3416 = vmatprep.subr.mxu0 %v388
    %3417 = vmatpush2.msra.mxu0 %v387
    %3418 = vmatprep.subr.mxu0 %v384
    %3419 = vmatpush2.msra.mxu0 %v383
    %3420 = vmatprep.subr.mxu0 %v380
    %3421 = vmatpush2.msra.mxu0 %v379
    %3422 = vmatprep.subr.mxu0 %v376
    %3423 = vmatpush2.msra.mxu0 %v375
    %3424 = vmatprep.subr.mxu0 %v372
    %3425 = vmatpush2.msra.mxu0 %v371
    %3426 = vmatprep.subr.mxu0 %v368
    %3427 = vmatpush2.msra.mxu0 %v367
    %3428 = vmatprep.subr.mxu0 %v364
    %3429 = vmatpush2.msra.mxu0 %v363
    %3430 = vmatprep.subr.mxu0 %v360
    %3431 = vmatpush2.msra.mxu0 %v359
    %3432 = vmatprep.subr.mxu0 %v356
    %3433 = vmatpush2.msra.mxu0 %v355
    %3434 = vmatprep.subr.mxu0 %v352
    %3435 = vmatpush2.msra.mxu0 %v351
    %3436 = vmatprep.subr.mxu0 %v348
    %3437 = vmatpush2.msra.mxu0 %v347
    %3438 = vmatprep.subr.mxu0 %v344
    %3439 = vmatpush2.msra.mxu0 %v343
    %3440 = vmatprep.mubr.f32.mxu0 %v3186
    %3441 = vmatmul.mubr.f32.gmra.mxu0 %v3352
    %v3442 = vpop.f32.mrf.mxu0
    %v3443 = vadd.f32 %v3359, %v3442
    %v3444 = vpop.f32.mrf.mxu0
    %v3445 = vadd.f32 %v3363, %v3444
    %3446 = vdwg.mxu0
    %3447 = vmatprep.subr.mxu0 %v342
    %3448 = vmatpush1.msra.mxu0 %v341
    %3449 = vmatprep.subr.mxu0 %v338
    %3450 = vmatpush1.msra.mxu0 %v337
    %3451 = vmatprep.subr.mxu0 %v334
    %3452 = vmatpush1.msra.mxu0 %v333
    %3453 = vmatprep.subr.mxu0 %v330
    %3454 = vmatpush1.msra.mxu0 %v329
    %3455 = vmatprep.subr.mxu0 %v326
    %3456 = vmatpush1.msra.mxu0 %v325
    %3457 = vmatprep.subr.mxu0 %v322
    %3458 = vmatpush1.msra.mxu0 %v321
    %3459 = vmatprep.subr.mxu0 %v318
    %3460 = vmatpush1.msra.mxu0 %v317
    %3461 = vmatprep.subr.mxu0 %v314
    %3462 = vmatpush1.msra.mxu0 %v313
    %3463 = vmatprep.subr.mxu0 %v310
    %3464 = vmatpush1.msra.mxu0 %v309
    %3465 = vmatprep.subr.mxu0 %v306
    %3466 = vmatpush1.msra.mxu0 %v305
    %3467 = vmatprep.subr.mxu0 %v302
    %3468 = vmatpush1.msra.mxu0 %v301
    %3469 = vmatprep.subr.mxu0 %v298
    %3470 = vmatpush1.msra.mxu0 %v297
    %3471 = vmatprep.subr.mxu0 %v294
    %3472 = vmatpush1.msra.mxu0 %v293
    %3473 = vmatprep.subr.mxu0 %v290
    %3474 = vmatpush1.msra.mxu0 %v289
    %3475 = vmatprep.subr.mxu0 %v286
    %3476 = vmatpush1.msra.mxu0 %v285
    %3477 = vmatprep.subr.mxu0 %v282
    %3478 = vmatpush1.msra.mxu0 %v281
    %3479 = vmatprep.subr.mxu0 %v406
    %3480 = vmatpush2.msra.mxu0 %v405
    %3481 = vmatprep.subr.mxu0 %v402
    %3482 = vmatpush2.msra.mxu0 %v401
    %3483 = vmatprep.subr.mxu0 %v398
    %3484 = vmatpush2.msra.mxu0 %v397
    %3485 = vmatprep.subr.mxu0 %v394
    %3486 = vmatpush2.msra.mxu0 %v393
    %3487 = vmatprep.subr.mxu0 %v390
    %3488 = vmatpush2.msra.mxu0 %v389
    %3489 = vmatprep.subr.mxu0 %v386
    %3490 = vmatpush2.msra.mxu0 %v385
    %3491 = vmatprep.subr.mxu0 %v382
    %3492 = vmatpush2.msra.mxu0 %v381
    %3493 = vmatprep.subr.mxu0 %v378
    %3494 = vmatpush2.msra.mxu0 %v377
    %3495 = vmatprep.subr.mxu0 %v374
    %3496 = vmatpush2.msra.mxu0 %v373
    %3497 = vmatprep.subr.mxu0 %v370
    %3498 = vmatpush2.msra.mxu0 %v369
    %3499 = vmatprep.subr.mxu0 %v366
    %3500 = vmatpush2.msra.mxu0 %v365
    %3501 = vmatprep.subr.mxu0 %v362
    %3502 = vmatpush2.msra.mxu0 %v361
    %3503 = vmatprep.subr.mxu0 %v358
    %3504 = vmatpush2.msra.mxu0 %v357
    %3505 = vmatprep.subr.mxu0 %v354
    %3506 = vmatpush2.msra.mxu0 %v353
    %3507 = vmatprep.subr.mxu0 %v350
    %3508 = vmatpush2.msra.mxu0 %v349
    %3509 = vmatprep.subr.mxu0 %v346
    %3510 = vmatpush2.msra.mxu0 %v345
    %3511 = vmatprep.mubr.f32.mxu0 %v3186
    %3512 = vmatmul.mubr.f32.gmra.mxu0 %v3352
    %v3513 = vpop.f32.mrf.mxu0
    %v3514 = vadd.f32 %v3367, %v3513
    %v3515 = vpop.f32.mrf.mxu0
    %v3516 = vadd.f32 %v3371, %v3515
    %3517 = vdwg.mxu0
    %v3518 = vxor.u32 %v3443, 2147483648
    %v3519 = vmul.f32 %v3518, 1.442695
    %v3520 = vpow.pop %v3519
    %v3521 = vadd.f32 %v3520, 1.0
    %v3522 = vrcp.pop %v3521
    %v3523 = vmul.f32 1.0, %v3522
    %v3524 = vxor.u32 %v3445, 2147483648
    %v3525 = vmul.f32 %v3524, 1.442695
    %v3526 = vpow.pop %v3525
    %v3527 = vadd.f32 %v3526, 1.0
    %v3528 = vrcp.pop %v3527
    %v3529 = vmul.f32 1.0, %v3528
    %v3530 = vtanh.pop %v3514
    %v3531 = vxor.u32 %v3516, 2147483648
    %v3532 = vmul.f32 %v3531, 1.442695
    %v3533 = vpow.pop %v3532
    %v3534 = vadd.f32 %v3533, 1.0
    %v3535 = vrcp.pop %v3534
    %v3536 = vmul.f32 1.0, %v3535
    %v3537 = vmul.f32 %v3529, %v3184
    %v3538 = vmul.f32 %v3523, %v3530
    %v3539 = vadd.f32 %v3537, %v3538
    %v3540 = vtanh.pop %v3539
    %v3541 = vmul.f32 %v3536, %v3540
    %3542 = vmatprep.subr.mxu0 %v211
    %3543 = vmatpush1.msra.mxu0 %v210
    %3544 = vmatprep.subr.mxu0 %v207
    %3545 = vmatpush1.msra.mxu0 %v206
    %3546 = vmatprep.subr.mxu0 %v203
    %3547 = vmatpush1.msra.mxu0 %v202
    %3548 = vmatprep.subr.mxu0 %v199
    %3549 = vmatpush1.msra.mxu0 %v198
    %3550 = vmatprep.subr.mxu0 %v195
    %3551 = vmatpush1.msra.mxu0 %v194
    %3552 = vmatprep.subr.mxu0 %v191
    %3553 = vmatpush1.msra.mxu0 %v190
    %3554 = vmatprep.subr.mxu0 %v187
    %3555 = vmatpush1.msra.mxu0 %v186
    %3556 = vmatprep.subr.mxu0 %v183
    %3557 = vmatpush1.msra.mxu0 %v182
    %3558 = vmatprep.subr.mxu0 %v179
    %3559 = vmatpush1.msra.mxu0 %v178
    %3560 = vmatprep.subr.mxu0 %v175
    %3561 = vmatpush1.msra.mxu0 %v174
    %3562 = vmatprep.subr.mxu0 %v171
    %3563 = vmatpush1.msra.mxu0 %v170
    %3564 = vmatprep.subr.mxu0 %v167
    %3565 = vmatpush1.msra.mxu0 %v166
    %3566 = vmatprep.subr.mxu0 %v163
    %3567 = vmatpush1.msra.mxu0 %v162
    %3568 = vmatprep.subr.mxu0 %v159
    %3569 = vmatpush1.msra.mxu0 %v158
    %3570 = vmatprep.subr.mxu0 %v155
    %3571 = vmatpush1.msra.mxu0 %v154
    %3572 = vmatprep.subr.mxu0 %v151
    %3573 = vmatpush1.msra.mxu0 %v150
    %3574 = vmatprep.subr.mxu0 %v275
    %3575 = vmatpush2.msra.mxu0 %v274
    %3576 = vmatprep.subr.mxu0 %v271
    %3577 = vmatpush2.msra.mxu0 %v270
    %3578 = vmatprep.subr.mxu0 %v267
    %3579 = vmatpush2.msra.mxu0 %v266
    %3580 = vmatprep.subr.mxu0 %v263
    %3581 = vmatpush2.msra.mxu0 %v262
    %3582 = vmatprep.subr.mxu0 %v259
    %3583 = vmatpush2.msra.mxu0 %v258
    %3584 = vmatprep.subr.mxu0 %v255
    %3585 = vmatpush2.msra.mxu0 %v254
    %3586 = vmatprep.subr.mxu0 %v251
    %3587 = vmatpush2.msra.mxu0 %v250
    %3588 = vmatprep.subr.mxu0 %v247
    %3589 = vmatpush2.msra.mxu0 %v246
    %3590 = vmatprep.subr.mxu0 %v243
    %3591 = vmatpush2.msra.mxu0 %v242
    %3592 = vmatprep.subr.mxu0 %v239
    %3593 = vmatpush2.msra.mxu0 %v238
    %3594 = vmatprep.subr.mxu0 %v235
    %3595 = vmatpush2.msra.mxu0 %v234
    %3596 = vmatprep.subr.mxu0 %v231
    %3597 = vmatpush2.msra.mxu0 %v230
    %3598 = vmatprep.subr.mxu0 %v227
    %3599 = vmatpush2.msra.mxu0 %v226
    %3600 = vmatprep.subr.mxu0 %v223
    %3601 = vmatpush2.msra.mxu0 %v222
    %3602 = vmatprep.subr.mxu0 %v219
    %3603 = vmatpush2.msra.mxu0 %v218
    %3604 = vmatprep.subr.mxu0 %v215
    %3605 = vmatpush2.msra.mxu0 %v214
    %3606 = vmatprep.mubr.f32.mxu0 %v3352
    %3607 = vmatmul.mubr.f32.gmra.mxu0 %v3541
    %v3608 = vpop.f32.mrf.mxu0
    %v3609 = vadd.f32 %v609, %v3608
    %v3610 = vpop.f32.mrf.mxu0
    %v3611 = vadd.f32 %v613, %v3610
    %3612 = vdwg.mxu0
    %3613 = vmatprep.subr.mxu0 %v213
    %3614 = vmatpush1.msra.mxu0 %v212
    %3615 = vmatprep.subr.mxu0 %v209
    %3616 = vmatpush1.msra.mxu0 %v208
    %3617 = vmatprep.subr.mxu0 %v205
    %3618 = vmatpush1.msra.mxu0 %v204
    %3619 = vmatprep.subr.mxu0 %v201
    %3620 = vmatpush1.msra.mxu0 %v200
    %3621 = vmatprep.subr.mxu0 %v197
    %3622 = vmatpush1.msra.mxu0 %v196
    %3623 = vmatprep.subr.mxu0 %v193
    %3624 = vmatpush1.msra.mxu0 %v192
    %3625 = vmatprep.subr.mxu0 %v189
    %3626 = vmatpush1.msra.mxu0 %v188
    %3627 = vmatprep.subr.mxu0 %v185
    %3628 = vmatpush1.msra.mxu0 %v184
    %3629 = vmatprep.subr.mxu0 %v181
    %3630 = vmatpush1.msra.mxu0 %v180
    %3631 = vmatprep.subr.mxu0 %v177
    %3632 = vmatpush1.msra.mxu0 %v176
    %3633 = vmatprep.subr.mxu0 %v173
    %3634 = vmatpush1.msra.mxu0 %v172
    %3635 = vmatprep.subr.mxu0 %v169
    %3636 = vmatpush1.msra.mxu0 %v168
    %3637 = vmatprep.subr.mxu0 %v165
    %3638 = vmatpush1.msra.mxu0 %v164
    %3639 = vmatprep.subr.mxu0 %v161
    %3640 = vmatpush1.msra.mxu0 %v160
    %3641 = vmatprep.subr.mxu0 %v157
    %3642 = vmatpush1.msra.mxu0 %v156
    %3643 = vmatprep.subr.mxu0 %v153
    %3644 = vmatpush1.msra.mxu0 %v152
    %3645 = vmatprep.subr.mxu0 %v277
    %3646 = vmatpush2.msra.mxu0 %v276
    %3647 = vmatprep.subr.mxu0 %v273
    %3648 = vmatpush2.msra.mxu0 %v272
    %3649 = vmatprep.subr.mxu0 %v269
    %3650 = vmatpush2.msra.mxu0 %v268
    %3651 = vmatprep.subr.mxu0 %v265
    %3652 = vmatpush2.msra.mxu0 %v264
    %3653 = vmatprep.subr.mxu0 %v261
    %3654 = vmatpush2.msra.mxu0 %v260
    %3655 = vmatprep.subr.mxu0 %v257
    %3656 = vmatpush2.msra.mxu0 %v256
    %3657 = vmatprep.subr.mxu0 %v253
    %3658 = vmatpush2.msra.mxu0 %v252
    %3659 = vmatprep.subr.mxu0 %v249
    %3660 = vmatpush2.msra.mxu0 %v248
    %3661 = vmatprep.subr.mxu0 %v245
    %3662 = vmatpush2.msra.mxu0 %v244
    %3663 = vmatprep.subr.mxu0 %v241
    %3664 = vmatpush2.msra.mxu0 %v240
    %3665 = vmatprep.subr.mxu0 %v237
    %3666 = vmatpush2.msra.mxu0 %v236
    %3667 = vmatprep.subr.mxu0 %v233
    %3668 = vmatpush2.msra.mxu0 %v232
    %3669 = vmatprep.subr.mxu0 %v229
    %3670 = vmatpush2.msra.mxu0 %v228
    %3671 = vmatprep.subr.mxu0 %v225
    %3672 = vmatpush2.msra.mxu0 %v224
    %3673 = vmatprep.subr.mxu0 %v221
    %3674 = vmatpush2.msra.mxu0 %v220
    %3675 = vmatprep.subr.mxu0 %v217
    %3676 = vmatpush2.msra.mxu0 %v216
    %3677 = vmatprep.mubr.f32.mxu0 %v3352
    %3678 = vmatmul.mubr.f32.gmra.mxu0 %v3541
    %v3679 = vpop.f32.mrf.mxu0
    %v3680 = vadd.f32 %v617, %v3679
    %v3681 = vpop.f32.mrf.mxu0
    %v3682 = vadd.f32 %v621, %v3681
    %3683 = vdwg.mxu0
    %v3684 = vxor.u32 %v3609, 2147483648
    %v3685 = vmul.f32 %v3684, 1.442695
    %v3686 = vpow.pop %v3685
    %v3687 = vadd.f32 %v3686, 1.0
    %v3688 = vrcp.pop %v3687
    %v3689 = vmul.f32 1.0, %v3688
    %v3690 = vxor.u32 %v3611, 2147483648
    %v3691 = vmul.f32 %v3690, 1.442695
    %v3692 = vpow.pop %v3691
    %v3693 = vadd.f32 %v3692, 1.0
    %v3694 = vrcp.pop %v3693
    %v3695 = vmul.f32 1.0, %v3694
    %v3696 = vtanh.pop %v3680
    %v3697 = vxor.u32 %v3682, 2147483648
    %v3698 = vmul.f32 %v3697, 1.442695
    %v3699 = vpow.pop %v3698
    %v3700 = vadd.f32 %v3699, 1.0
    %v3701 = vrcp.pop %v3700
    %v3702 = vmul.f32 1.0, %v3701
    %v3703 = vmul.f32 %v3695, %v3350
    %v3704 = vmul.f32 %v3689, %v3696
    %v3705 = vadd.f32 %v3703, %v3704
    %v3706 = vtanh.pop %v3705
    %v3707 = vmul.f32 %v3702, %v3706
    %s3708 = scalar_lea.vmem [#allocation2], 16
    %3709 = vst [vmem:[%s3708] sm:$0x3] %v3707
    %3710 = vmatprep.subr.mxu0 %v340
    %3711 = vmatpush1.msra.mxu0 %v339
    %3712 = vmatprep.subr.mxu0 %v336
    %3713 = vmatpush1.msra.mxu0 %v335
    %3714 = vmatprep.subr.mxu0 %v332
    %3715 = vmatpush1.msra.mxu0 %v331
    %3716 = vmatprep.subr.mxu0 %v328
    %3717 = vmatpush1.msra.mxu0 %v327
    %3718 = vmatprep.subr.mxu0 %v324
    %3719 = vmatpush1.msra.mxu0 %v323
    %3720 = vmatprep.subr.mxu0 %v320
    %3721 = vmatpush1.msra.mxu0 %v319
    %3722 = vmatprep.subr.mxu0 %v316
    %3723 = vmatpush1.msra.mxu0 %v315
    %3724 = vmatprep.subr.mxu0 %v312
    %3725 = vmatpush1.msra.mxu0 %v311
    %3726 = vmatprep.subr.mxu0 %v308
    %3727 = vmatpush1.msra.mxu0 %v307
    %3728 = vmatprep.subr.mxu0 %v304
    %3729 = vmatpush1.msra.mxu0 %v303
    %3730 = vmatprep.subr.mxu0 %v300
    %3731 = vmatpush1.msra.mxu0 %v299
    %3732 = vmatprep.subr.mxu0 %v296
    %3733 = vmatpush1.msra.mxu0 %v295
    %3734 = vmatprep.subr.mxu0 %v292
    %3735 = vmatpush1.msra.mxu0 %v291
    %3736 = vmatprep.subr.mxu0 %v288
    %3737 = vmatpush1.msra.mxu0 %v287
    %3738 = vmatprep.subr.mxu0 %v284
    %3739 = vmatpush1.msra.mxu0 %v283
    %3740 = vmatprep.subr.mxu0 %v280
    %3741 = vmatpush1.msra.mxu0 %v279
    %3742 = vmatprep.subr.mxu0 %v404
    %3743 = vmatpush2.msra.mxu0 %v403
    %3744 = vmatprep.subr.mxu0 %v400
    %3745 = vmatpush2.msra.mxu0 %v399
    %3746 = vmatprep.subr.mxu0 %v396
    %3747 = vmatpush2.msra.mxu0 %v395
    %3748 = vmatprep.subr.mxu0 %v392
    %3749 = vmatpush2.msra.mxu0 %v391
    %3750 = vmatprep.subr.mxu0 %v388
    %3751 = vmatpush2.msra.mxu0 %v387
    %3752 = vmatprep.subr.mxu0 %v384
    %3753 = vmatpush2.msra.mxu0 %v383
    %3754 = vmatprep.subr.mxu0 %v380
    %3755 = vmatpush2.msra.mxu0 %v379
    %3756 = vmatprep.subr.mxu0 %v376
    %3757 = vmatpush2.msra.mxu0 %v375
    %3758 = vmatprep.subr.mxu0 %v372
    %3759 = vmatpush2.msra.mxu0 %v371
    %3760 = vmatprep.subr.mxu0 %v368
    %3761 = vmatpush2.msra.mxu0 %v367
    %3762 = vmatprep.subr.mxu0 %v364
    %3763 = vmatpush2.msra.mxu0 %v363
    %3764 = vmatprep.subr.mxu0 %v360
    %3765 = vmatpush2.msra.mxu0 %v359
    %3766 = vmatprep.subr.mxu0 %v356
    %3767 = vmatpush2.msra.mxu0 %v355
    %3768 = vmatprep.subr.mxu0 %v352
    %3769 = vmatpush2.msra.mxu0 %v351
    %3770 = vmatprep.subr.mxu0 %v348
    %3771 = vmatpush2.msra.mxu0 %v347
    %3772 = vmatprep.subr.mxu0 %v344
    %3773 = vmatpush2.msra.mxu0 %v343
    %3774 = vmatprep.mubr.f32.mxu0 %v3541
    %3775 = vmatmul.mubr.f32.gmra.mxu0 %v3707
    %v3776 = vpop.f32.mrf.mxu0
    %v3777 = vadd.f32 %v3359, %v3776
    %v3778 = vpop.f32.mrf.mxu0
    %v3779 = vadd.f32 %v3363, %v3778
    %3780 = vdwg.mxu0
    %3781 = vmatprep.subr.mxu0 %v342
    %3782 = vmatpush1.msra.mxu0 %v341
    %3783 = vmatprep.subr.mxu0 %v338
    %3784 = vmatpush1.msra.mxu0 %v337
    %3785 = vmatprep.subr.mxu0 %v334
    %3786 = vmatpush1.msra.mxu0 %v333
    %3787 = vmatprep.subr.mxu0 %v330
    %3788 = vmatpush1.msra.mxu0 %v329
    %3789 = vmatprep.subr.mxu0 %v326
    %3790 = vmatpush1.msra.mxu0 %v325
    %3791 = vmatprep.subr.mxu0 %v322
    %3792 = vmatpush1.msra.mxu0 %v321
    %3793 = vmatprep.subr.mxu0 %v318
    %3794 = vmatpush1.msra.mxu0 %v317
    %3795 = vmatprep.subr.mxu0 %v314
    %3796 = vmatpush1.msra.mxu0 %v313
    %3797 = vmatprep.subr.mxu0 %v310
    %3798 = vmatpush1.msra.mxu0 %v309
    %3799 = vmatprep.subr.mxu0 %v306
    %3800 = vmatpush1.msra.mxu0 %v305
    %3801 = vmatprep.subr.mxu0 %v302
    %3802 = vmatpush1.msra.mxu0 %v301
    %3803 = vmatprep.subr.mxu0 %v298
    %3804 = vmatpush1.msra.mxu0 %v297
    %3805 = vmatprep.subr.mxu0 %v294
    %3806 = vmatpush1.msra.mxu0 %v293
    %3807 = vmatprep.subr.mxu0 %v290
    %3808 = vmatpush1.msra.mxu0 %v289
    %3809 = vmatprep.subr.mxu0 %v286
    %3810 = vmatpush1.msra.mxu0 %v285
    %3811 = vmatprep.subr.mxu0 %v282
    %3812 = vmatpush1.msra.mxu0 %v281
    %3813 = vmatprep.subr.mxu0 %v406
    %3814 = vmatpush2.msra.mxu0 %v405
    %3815 = vmatprep.subr.mxu0 %v402
    %3816 = vmatpush2.msra.mxu0 %v401
    %3817 = vmatprep.subr.mxu0 %v398
    %3818 = vmatpush2.msra.mxu0 %v397
    %3819 = vmatprep.subr.mxu0 %v394
    %3820 = vmatpush2.msra.mxu0 %v393
    %3821 = vmatprep.subr.mxu0 %v390
    %3822 = vmatpush2.msra.mxu0 %v389
    %3823 = vmatprep.subr.mxu0 %v386
    %3824 = vmatpush2.msra.mxu0 %v385
    %3825 = vmatprep.subr.mxu0 %v382
    %3826 = vmatpush2.msra.mxu0 %v381
    %3827 = vmatprep.subr.mxu0 %v378
    %3828 = vmatpush2.msra.mxu0 %v377
    %3829 = vmatprep.subr.mxu0 %v374
    %3830 = vmatpush2.msra.mxu0 %v373
    %3831 = vmatprep.subr.mxu0 %v370
    %3832 = vmatpush2.msra.mxu0 %v369
    %3833 = vmatprep.subr.mxu0 %v366
    %3834 = vmatpush2.msra.mxu0 %v365
    %3835 = vmatprep.subr.mxu0 %v362
    %3836 = vmatpush2.msra.mxu0 %v361
    %3837 = vmatprep.subr.mxu0 %v358
    %3838 = vmatpush2.msra.mxu0 %v357
    %3839 = vmatprep.subr.mxu0 %v354
    %3840 = vmatpush2.msra.mxu0 %v353
    %3841 = vmatprep.subr.mxu0 %v350
    %3842 = vmatpush2.msra.mxu0 %v349
    %3843 = vmatprep.subr.mxu0 %v346
    %3844 = vmatpush2.msra.mxu0 %v345
    %3845 = vmatprep.mubr.f32.mxu0 %v3541
    %3846 = vmatmul.mubr.f32.gmra.mxu0 %v3707
    %v3847 = vpop.f32.mrf.mxu0
    %v3848 = vadd.f32 %v3367, %v3847
    %v3849 = vpop.f32.mrf.mxu0
    %v3850 = vadd.f32 %v3371, %v3849
    %3851 = vdwg.mxu0
    %v3852 = vxor.u32 %v3777, 2147483648
    %v3853 = vmul.f32 %v3852, 1.442695
    %v3854 = vpow.pop %v3853
    %v3855 = vadd.f32 %v3854, 1.0
    %v3856 = vrcp.pop %v3855
    %v3857 = vmul.f32 1.0, %v3856
    %v3858 = vxor.u32 %v3779, 2147483648
    %v3859 = vmul.f32 %v3858, 1.442695
    %v3860 = vpow.pop %v3859
    %v3861 = vadd.f32 %v3860, 1.0
    %v3862 = vrcp.pop %v3861
    %v3863 = vmul.f32 1.0, %v3862
    %v3864 = vtanh.pop %v3848
    %v3865 = vxor.u32 %v3850, 2147483648
    %v3866 = vmul.f32 %v3865, 1.442695
    %v3867 = vpow.pop %v3866
    %v3868 = vadd.f32 %v3867, 1.0
    %v3869 = vrcp.pop %v3868
    %v3870 = vmul.f32 1.0, %v3869
    %v3871 = vmul.f32 %v3863, %v3539
    %v3872 = vmul.f32 %v3857, %v3864
    %v3873 = vadd.f32 %v3871, %v3872
    %v3874 = vtanh.pop %v3873
    %v3875 = vmul.f32 %v3870, %v3874
    %3876 = vmatprep.subr.mxu0 %v211
    %3877 = vmatpush1.msra.mxu0 %v210
    %3878 = vmatprep.subr.mxu0 %v207
    %3879 = vmatpush1.msra.mxu0 %v206
    %3880 = vmatprep.subr.mxu0 %v203
    %3881 = vmatpush1.msra.mxu0 %v202
    %3882 = vmatprep.subr.mxu0 %v199
    %3883 = vmatpush1.msra.mxu0 %v198
    %3884 = vmatprep.subr.mxu0 %v195
    %3885 = vmatpush1.msra.mxu0 %v194
    %3886 = vmatprep.subr.mxu0 %v191
    %3887 = vmatpush1.msra.mxu0 %v190
    %3888 = vmatprep.subr.mxu0 %v187
    %3889 = vmatpush1.msra.mxu0 %v186
    %3890 = vmatprep.subr.mxu0 %v183
    %3891 = vmatpush1.msra.mxu0 %v182
    %3892 = vmatprep.subr.mxu0 %v179
    %3893 = vmatpush1.msra.mxu0 %v178
    %3894 = vmatprep.subr.mxu0 %v175
    %3895 = vmatpush1.msra.mxu0 %v174
    %3896 = vmatprep.subr.mxu0 %v171
    %3897 = vmatpush1.msra.mxu0 %v170
    %3898 = vmatprep.subr.mxu0 %v167
    %3899 = vmatpush1.msra.mxu0 %v166
    %3900 = vmatprep.subr.mxu0 %v163
    %3901 = vmatpush1.msra.mxu0 %v162
    %3902 = vmatprep.subr.mxu0 %v159
    %3903 = vmatpush1.msra.mxu0 %v158
    %3904 = vmatprep.subr.mxu0 %v155
    %3905 = vmatpush1.msra.mxu0 %v154
    %3906 = vmatprep.subr.mxu0 %v151
    %3907 = vmatpush1.msra.mxu0 %v150
    %3908 = vmatprep.subr.mxu0 %v275
    %3909 = vmatpush2.msra.mxu0 %v274
    %3910 = vmatprep.subr.mxu0 %v271
    %3911 = vmatpush2.msra.mxu0 %v270
    %3912 = vmatprep.subr.mxu0 %v267
    %3913 = vmatpush2.msra.mxu0 %v266
    %3914 = vmatprep.subr.mxu0 %v263
    %3915 = vmatpush2.msra.mxu0 %v262
    %3916 = vmatprep.subr.mxu0 %v259
    %3917 = vmatpush2.msra.mxu0 %v258
    %3918 = vmatprep.subr.mxu0 %v255
    %3919 = vmatpush2.msra.mxu0 %v254
    %3920 = vmatprep.subr.mxu0 %v251
    %3921 = vmatpush2.msra.mxu0 %v250
    %3922 = vmatprep.subr.mxu0 %v247
    %3923 = vmatpush2.msra.mxu0 %v246
    %3924 = vmatprep.subr.mxu0 %v243
    %3925 = vmatpush2.msra.mxu0 %v242
    %3926 = vmatprep.subr.mxu0 %v239
    %3927 = vmatpush2.msra.mxu0 %v238
    %3928 = vmatprep.subr.mxu0 %v235
    %3929 = vmatpush2.msra.mxu0 %v234
    %3930 = vmatprep.subr.mxu0 %v231
    %3931 = vmatpush2.msra.mxu0 %v230
    %3932 = vmatprep.subr.mxu0 %v227
    %3933 = vmatpush2.msra.mxu0 %v226
    %3934 = vmatprep.subr.mxu0 %v223
    %3935 = vmatpush2.msra.mxu0 %v222
    %3936 = vmatprep.subr.mxu0 %v219
    %3937 = vmatpush2.msra.mxu0 %v218
    %3938 = vmatprep.subr.mxu0 %v215
    %3939 = vmatpush2.msra.mxu0 %v214
    %3940 = vmatprep.mubr.f32.mxu0 %v3707
    %3941 = vmatmul.mubr.f32.gmra.mxu0 %v3875
    %v3942 = vpop.f32.mrf.mxu0
    %v3943 = vadd.f32 %v609, %v3942
    %v3944 = vpop.f32.mrf.mxu0
    %v3945 = vadd.f32 %v613, %v3944
    %3946 = vdwg.mxu0
    %3947 = vmatprep.subr.mxu0 %v213
    %3948 = vmatpush1.msra.mxu0 %v212
    %3949 = vmatprep.subr.mxu0 %v209
    %3950 = vmatpush1.msra.mxu0 %v208
    %3951 = vmatprep.subr.mxu0 %v205
    %3952 = vmatpush1.msra.mxu0 %v204
    %3953 = vmatprep.subr.mxu0 %v201
    %3954 = vmatpush1.msra.mxu0 %v200
    %3955 = vmatprep.subr.mxu0 %v197
    %3956 = vmatpush1.msra.mxu0 %v196
    %3957 = vmatprep.subr.mxu0 %v193
    %3958 = vmatpush1.msra.mxu0 %v192
    %3959 = vmatprep.subr.mxu0 %v189
    %3960 = vmatpush1.msra.mxu0 %v188
    %3961 = vmatprep.subr.mxu0 %v185
    %3962 = vmatpush1.msra.mxu0 %v184
    %3963 = vmatprep.subr.mxu0 %v181
    %3964 = vmatpush1.msra.mxu0 %v180
    %3965 = vmatprep.subr.mxu0 %v177
    %3966 = vmatpush1.msra.mxu0 %v176
    %3967 = vmatprep.subr.mxu0 %v173
    %3968 = vmatpush1.msra.mxu0 %v172
    %3969 = vmatprep.subr.mxu0 %v169
    %3970 = vmatpush1.msra.mxu0 %v168
    %3971 = vmatprep.subr.mxu0 %v165
    %3972 = vmatpush1.msra.mxu0 %v164
    %3973 = vmatprep.subr.mxu0 %v161
    %3974 = vmatpush1.msra.mxu0 %v160
    %3975 = vmatprep.subr.mxu0 %v157
    %3976 = vmatpush1.msra.mxu0 %v156
    %3977 = vmatprep.subr.mxu0 %v153
    %3978 = vmatpush1.msra.mxu0 %v152
    %3979 = vmatprep.subr.mxu0 %v277
    %3980 = vmatpush2.msra.mxu0 %v276
    %3981 = vmatprep.subr.mxu0 %v273
    %3982 = vmatpush2.msra.mxu0 %v272
    %3983 = vmatprep.subr.mxu0 %v269
    %3984 = vmatpush2.msra.mxu0 %v268
    %3985 = vmatprep.subr.mxu0 %v265
    %3986 = vmatpush2.msra.mxu0 %v264
    %3987 = vmatprep.subr.mxu0 %v261
    %3988 = vmatpush2.msra.mxu0 %v260
    %3989 = vmatprep.subr.mxu0 %v257
    %3990 = vmatpush2.msra.mxu0 %v256
    %3991 = vmatprep.subr.mxu0 %v253
    %3992 = vmatpush2.msra.mxu0 %v252
    %3993 = vmatprep.subr.mxu0 %v249
    %3994 = vmatpush2.msra.mxu0 %v248
    %3995 = vmatprep.subr.mxu0 %v245
    %3996 = vmatpush2.msra.mxu0 %v244
    %3997 = vmatprep.subr.mxu0 %v241
    %3998 = vmatpush2.msra.mxu0 %v240
    %3999 = vmatprep.subr.mxu0 %v237
    %4000 = vmatpush2.msra.mxu0 %v236
    %4001 = vmatprep.subr.mxu0 %v233
    %4002 = vmatpush2.msra.mxu0 %v232
    %4003 = vmatprep.subr.mxu0 %v229
    %4004 = vmatpush2.msra.mxu0 %v228
    %4005 = vmatprep.subr.mxu0 %v225
    %4006 = vmatpush2.msra.mxu0 %v224
    %4007 = vmatprep.subr.mxu0 %v221
    %4008 = vmatpush2.msra.mxu0 %v220
    %4009 = vmatprep.subr.mxu0 %v217
    %4010 = vmatpush2.msra.mxu0 %v216
    %4011 = vmatprep.mubr.f32.mxu0 %v3707
    %4012 = vmatmul.mubr.f32.gmra.mxu0 %v3875
    %v4013 = vpop.f32.mrf.mxu0
    %v4014 = vadd.f32 %v617, %v4013
    %v4015 = vpop.f32.mrf.mxu0
    %v4016 = vadd.f32 %v621, %v4015
    %4017 = vdwg.mxu0
    %v4018 = vxor.u32 %v3943, 2147483648
    %v4019 = vmul.f32 %v4018, 1.442695
    %v4020 = vpow.pop %v4019
    %v4021 = vadd.f32 %v4020, 1.0
    %v4022 = vrcp.pop %v4021
    %v4023 = vmul.f32 1.0, %v4022
    %v4024 = vxor.u32 %v3945, 2147483648
    %v4025 = vmul.f32 %v4024, 1.442695
    %v4026 = vpow.pop %v4025
    %v4027 = vadd.f32 %v4026, 1.0
    %v4028 = vrcp.pop %v4027
    %v4029 = vmul.f32 1.0, %v4028
    %v4030 = vtanh.pop %v4014
    %v4031 = vxor.u32 %v4016, 2147483648
    %v4032 = vmul.f32 %v4031, 1.442695
    %v4033 = vpow.pop %v4032
    %v4034 = vadd.f32 %v4033, 1.0
    %v4035 = vrcp.pop %v4034
    %v4036 = vmul.f32 1.0, %v4035
    %v4037 = vmul.f32 %v4029, %v3705
    %v4038 = vmul.f32 %v4023, %v4030
    %v4039 = vadd.f32 %v4037, %v4038
    %v4040 = vtanh.pop %v4039
    %v4041 = vmul.f32 %v4036, %v4040
    %s4042 = scalar_lea.vmem [#allocation2], 18
    %4043 = vst [vmem:[%s4042] sm:$0x3] %v4041
    %4044 = vmatprep.subr.mxu0 %v340
    %4045 = vmatpush1.msra.mxu0 %v339
    %4046 = vmatprep.subr.mxu0 %v336
    %4047 = vmatpush1.msra.mxu0 %v335
    %4048 = vmatprep.subr.mxu0 %v332
    %4049 = vmatpush1.msra.mxu0 %v331
    %4050 = vmatprep.subr.mxu0 %v328
    %4051 = vmatpush1.msra.mxu0 %v327
    %4052 = vmatprep.subr.mxu0 %v324
    %4053 = vmatpush1.msra.mxu0 %v323
    %4054 = vmatprep.subr.mxu0 %v320
    %4055 = vmatpush1.msra.mxu0 %v319
    %4056 = vmatprep.subr.mxu0 %v316
    %4057 = vmatpush1.msra.mxu0 %v315
    %4058 = vmatprep.subr.mxu0 %v312
    %4059 = vmatpush1.msra.mxu0 %v311
    %4060 = vmatprep.subr.mxu0 %v308
    %4061 = vmatpush1.msra.mxu0 %v307
    %4062 = vmatprep.subr.mxu0 %v304
    %4063 = vmatpush1.msra.mxu0 %v303
    %4064 = vmatprep.subr.mxu0 %v300
    %4065 = vmatpush1.msra.mxu0 %v299
    %4066 = vmatprep.subr.mxu0 %v296
    %4067 = vmatpush1.msra.mxu0 %v295
    %4068 = vmatprep.subr.mxu0 %v292
    %4069 = vmatpush1.msra.mxu0 %v291
    %4070 = vmatprep.subr.mxu0 %v288
    %4071 = vmatpush1.msra.mxu0 %v287
    %4072 = vmatprep.subr.mxu0 %v284
    %4073 = vmatpush1.msra.mxu0 %v283
    %4074 = vmatprep.subr.mxu0 %v280
    %4075 = vmatpush1.msra.mxu0 %v279
    %4076 = vmatprep.subr.mxu0 %v404
    %4077 = vmatpush2.msra.mxu0 %v403
    %4078 = vmatprep.subr.mxu0 %v400
    %4079 = vmatpush2.msra.mxu0 %v399
    %4080 = vmatprep.subr.mxu0 %v396
    %4081 = vmatpush2.msra.mxu0 %v395
    %4082 = vmatprep.subr.mxu0 %v392
    %4083 = vmatpush2.msra.mxu0 %v391
    %4084 = vmatprep.subr.mxu0 %v388
    %4085 = vmatpush2.msra.mxu0 %v387
    %4086 = vmatprep.subr.mxu0 %v384
    %4087 = vmatpush2.msra.mxu0 %v383
    %4088 = vmatprep.subr.mxu0 %v380
    %4089 = vmatpush2.msra.mxu0 %v379
    %4090 = vmatprep.subr.mxu0 %v376
    %4091 = vmatpush2.msra.mxu0 %v375
    %4092 = vmatprep.subr.mxu0 %v372
    %4093 = vmatpush2.msra.mxu0 %v371
    %4094 = vmatprep.subr.mxu0 %v368
    %4095 = vmatpush2.msra.mxu0 %v367
    %4096 = vmatprep.subr.mxu0 %v364
    %4097 = vmatpush2.msra.mxu0 %v363
    %4098 = vmatprep.subr.mxu0 %v360
    %4099 = vmatpush2.msra.mxu0 %v359
    %4100 = vmatprep.subr.mxu0 %v356
    %4101 = vmatpush2.msra.mxu0 %v355
    %4102 = vmatprep.subr.mxu0 %v352
    %4103 = vmatpush2.msra.mxu0 %v351
    %4104 = vmatprep.subr.mxu0 %v348
    %4105 = vmatpush2.msra.mxu0 %v347
    %4106 = vmatprep.subr.mxu0 %v344
    %4107 = vmatpush2.msra.mxu0 %v343
    %4108 = vmatprep.mubr.f32.mxu0 %v3875
    %4109 = vmatmul.mubr.f32.gmra.mxu0 %v4041
    %v4110 = vpop.f32.mrf.mxu0
    %v4111 = vadd.f32 %v3359, %v4110
    %v4112 = vpop.f32.mrf.mxu0
    %v4113 = vadd.f32 %v3363, %v4112
    %4114 = vdwg.mxu0
    %4115 = vmatprep.subr.mxu0 %v342
    %4116 = vmatpush1.msra.mxu0 %v341
    %4117 = vmatprep.subr.mxu0 %v338
    %4118 = vmatpush1.msra.mxu0 %v337
    %4119 = vmatprep.subr.mxu0 %v334
    %4120 = vmatpush1.msra.mxu0 %v333
    %4121 = vmatprep.subr.mxu0 %v330
    %4122 = vmatpush1.msra.mxu0 %v329
    %4123 = vmatprep.subr.mxu0 %v326
    %4124 = vmatpush1.msra.mxu0 %v325
    %4125 = vmatprep.subr.mxu0 %v322
    %4126 = vmatpush1.msra.mxu0 %v321
    %4127 = vmatprep.subr.mxu0 %v318
    %4128 = vmatpush1.msra.mxu0 %v317
    %4129 = vmatprep.subr.mxu0 %v314
    %4130 = vmatpush1.msra.mxu0 %v313
    %4131 = vmatprep.subr.mxu0 %v310
    %4132 = vmatpush1.msra.mxu0 %v309
    %4133 = vmatprep.subr.mxu0 %v306
    %4134 = vmatpush1.msra.mxu0 %v305
    %4135 = vmatprep.subr.mxu0 %v302
    %4136 = vmatpush1.msra.mxu0 %v301
    %4137 = vmatprep.subr.mxu0 %v298
    %4138 = vmatpush1.msra.mxu0 %v297
    %4139 = vmatprep.subr.mxu0 %v294
    %4140 = vmatpush1.msra.mxu0 %v293
    %4141 = vmatprep.subr.mxu0 %v290
    %4142 = vmatpush1.msra.mxu0 %v289
    %4143 = vmatprep.subr.mxu0 %v286
    %4144 = vmatpush1.msra.mxu0 %v285
    %4145 = vmatprep.subr.mxu0 %v282
    %4146 = vmatpush1.msra.mxu0 %v281
    %4147 = vmatprep.subr.mxu0 %v406
    %4148 = vmatpush2.msra.mxu0 %v405
    %4149 = vmatprep.subr.mxu0 %v402
    %4150 = vmatpush2.msra.mxu0 %v401
    %4151 = vmatprep.subr.mxu0 %v398
    %4152 = vmatpush2.msra.mxu0 %v397
    %4153 = vmatprep.subr.mxu0 %v394
    %4154 = vmatpush2.msra.mxu0 %v393
    %4155 = vmatprep.subr.mxu0 %v390
    %4156 = vmatpush2.msra.mxu0 %v389
    %4157 = vmatprep.subr.mxu0 %v386
    %4158 = vmatpush2.msra.mxu0 %v385
    %4159 = vmatprep.subr.mxu0 %v382
    %4160 = vmatpush2.msra.mxu0 %v381
    %4161 = vmatprep.subr.mxu0 %v378
    %4162 = vmatpush2.msra.mxu0 %v377
    %4163 = vmatprep.subr.mxu0 %v374
    %4164 = vmatpush2.msra.mxu0 %v373
    %4165 = vmatprep.subr.mxu0 %v370
    %4166 = vmatpush2.msra.mxu0 %v369
    %4167 = vmatprep.subr.mxu0 %v366
    %4168 = vmatpush2.msra.mxu0 %v365
    %4169 = vmatprep.subr.mxu0 %v362
    %4170 = vmatpush2.msra.mxu0 %v361
    %4171 = vmatprep.subr.mxu0 %v358
    %4172 = vmatpush2.msra.mxu0 %v357
    %4173 = vmatprep.subr.mxu0 %v354
    %4174 = vmatpush2.msra.mxu0 %v353
    %4175 = vmatprep.subr.mxu0 %v350
    %4176 = vmatpush2.msra.mxu0 %v349
    %4177 = vmatprep.subr.mxu0 %v346
    %4178 = vmatpush2.msra.mxu0 %v345
    %4179 = vmatprep.mubr.f32.mxu0 %v3875
    %4180 = vmatmul.mubr.f32.gmra.mxu0 %v4041
    %v4181 = vpop.f32.mrf.mxu0
    %v4182 = vadd.f32 %v3367, %v4181
    %v4183 = vpop.f32.mrf.mxu0
    %v4184 = vadd.f32 %v3371, %v4183
    %4185 = vdwg.mxu0
    %v4186 = vxor.u32 %v4111, 2147483648
    %v4187 = vmul.f32 %v4186, 1.442695
    %v4188 = vpow.pop %v4187
    %v4189 = vadd.f32 %v4188, 1.0
    %v4190 = vrcp.pop %v4189
    %v4191 = vmul.f32 1.0, %v4190
    %v4192 = vxor.u32 %v4113, 2147483648
    %v4193 = vmul.f32 %v4192, 1.442695
    %v4194 = vpow.pop %v4193
    %v4195 = vadd.f32 %v4194, 1.0
    %v4196 = vrcp.pop %v4195
    %v4197 = vmul.f32 1.0, %v4196
    %v4198 = vtanh.pop %v4182
    %v4199 = vxor.u32 %v4184, 2147483648
    %v4200 = vmul.f32 %v4199, 1.442695
    %v4201 = vpow.pop %v4200
    %v4202 = vadd.f32 %v4201, 1.0
    %v4203 = vrcp.pop %v4202
    %v4204 = vmul.f32 1.0, %v4203
    %v4205 = vmul.f32 %v4197, %v3873
    %v4206 = vmul.f32 %v4191, %v4198
    %v4207 = vadd.f32 %v4205, %v4206
    %v4208 = vtanh.pop %v4207
    %v4209 = vmul.f32 %v4204, %v4208
    %4210 = vmatprep.subr.mxu0 %v211
    %4211 = vmatpush1.msra.mxu0 %v210
    %4212 = vmatprep.subr.mxu0 %v207
    %4213 = vmatpush1.msra.mxu0 %v206
    %4214 = vmatprep.subr.mxu0 %v203
    %4215 = vmatpush1.msra.mxu0 %v202
    %4216 = vmatprep.subr.mxu0 %v199
    %4217 = vmatpush1.msra.mxu0 %v198
    %4218 = vmatprep.subr.mxu0 %v195
    %4219 = vmatpush1.msra.mxu0 %v194
    %4220 = vmatprep.subr.mxu0 %v191
    %4221 = vmatpush1.msra.mxu0 %v190
    %4222 = vmatprep.subr.mxu0 %v187
    %4223 = vmatpush1.msra.mxu0 %v186
    %4224 = vmatprep.subr.mxu0 %v183
    %4225 = vmatpush1.msra.mxu0 %v182
    %4226 = vmatprep.subr.mxu0 %v179
    %4227 = vmatpush1.msra.mxu0 %v178
    %4228 = vmatprep.subr.mxu0 %v175
    %4229 = vmatpush1.msra.mxu0 %v174
    %4230 = vmatprep.subr.mxu0 %v171
    %4231 = vmatpush1.msra.mxu0 %v170
    %4232 = vmatprep.subr.mxu0 %v167
    %4233 = vmatpush1.msra.mxu0 %v166
    %4234 = vmatprep.subr.mxu0 %v163
    %4235 = vmatpush1.msra.mxu0 %v162
    %4236 = vmatprep.subr.mxu0 %v159
    %4237 = vmatpush1.msra.mxu0 %v158
    %4238 = vmatprep.subr.mxu0 %v155
    %4239 = vmatpush1.msra.mxu0 %v154
    %4240 = vmatprep.subr.mxu0 %v151
    %4241 = vmatpush1.msra.mxu0 %v150
    %4242 = vmatprep.subr.mxu0 %v275
    %4243 = vmatpush2.msra.mxu0 %v274
    %4244 = vmatprep.subr.mxu0 %v271
    %4245 = vmatpush2.msra.mxu0 %v270
    %4246 = vmatprep.subr.mxu0 %v267
    %4247 = vmatpush2.msra.mxu0 %v266
    %4248 = vmatprep.subr.mxu0 %v263
    %4249 = vmatpush2.msra.mxu0 %v262
    %4250 = vmatprep.subr.mxu0 %v259
    %4251 = vmatpush2.msra.mxu0 %v258
    %4252 = vmatprep.subr.mxu0 %v255
    %4253 = vmatpush2.msra.mxu0 %v254
    %4254 = vmatprep.subr.mxu0 %v251
    %4255 = vmatpush2.msra.mxu0 %v250
    %4256 = vmatprep.subr.mxu0 %v247
    %4257 = vmatpush2.msra.mxu0 %v246
    %4258 = vmatprep.subr.mxu0 %v243
    %4259 = vmatpush2.msra.mxu0 %v242
    %4260 = vmatprep.subr.mxu0 %v239
    %4261 = vmatpush2.msra.mxu0 %v238
    %4262 = vmatprep.subr.mxu0 %v235
    %4263 = vmatpush2.msra.mxu0 %v234
    %4264 = vmatprep.subr.mxu0 %v231
    %4265 = vmatpush2.msra.mxu0 %v230
    %4266 = vmatprep.subr.mxu0 %v227
    %4267 = vmatpush2.msra.mxu0 %v226
    %4268 = vmatprep.subr.mxu0 %v223
    %4269 = vmatpush2.msra.mxu0 %v222
    %4270 = vmatprep.subr.mxu0 %v219
    %4271 = vmatpush2.msra.mxu0 %v218
    %4272 = vmatprep.subr.mxu0 %v215
    %4273 = vmatpush2.msra.mxu0 %v214
    %4274 = vmatprep.mubr.f32.mxu0 %v4041
    %4275 = vmatmul.mubr.f32.gmra.mxu0 %v4209
    %v4276 = vpop.f32.mrf.mxu0
    %v4277 = vadd.f32 %v609, %v4276
    %v4278 = vpop.f32.mrf.mxu0
    %v4279 = vadd.f32 %v613, %v4278
    %4280 = vdwg.mxu0
    %4281 = vmatprep.subr.mxu0 %v213
    %4282 = vmatpush1.msra.mxu0 %v212
    %4283 = vmatprep.subr.mxu0 %v209
    %4284 = vmatpush1.msra.mxu0 %v208
    %4285 = vmatprep.subr.mxu0 %v205
    %4286 = vmatpush1.msra.mxu0 %v204
    %4287 = vmatprep.subr.mxu0 %v201
    %4288 = vmatpush1.msra.mxu0 %v200
    %4289 = vmatprep.subr.mxu0 %v197
    %4290 = vmatpush1.msra.mxu0 %v196
    %4291 = vmatprep.subr.mxu0 %v193
    %4292 = vmatpush1.msra.mxu0 %v192
    %4293 = vmatprep.subr.mxu0 %v189
    %4294 = vmatpush1.msra.mxu0 %v188
    %4295 = vmatprep.subr.mxu0 %v185
    %4296 = vmatpush1.msra.mxu0 %v184
    %4297 = vmatprep.subr.mxu0 %v181
    %4298 = vmatpush1.msra.mxu0 %v180
    %4299 = vmatprep.subr.mxu0 %v177
    %4300 = vmatpush1.msra.mxu0 %v176
    %4301 = vmatprep.subr.mxu0 %v173
    %4302 = vmatpush1.msra.mxu0 %v172
    %4303 = vmatprep.subr.mxu0 %v169
    %4304 = vmatpush1.msra.mxu0 %v168
    %4305 = vmatprep.subr.mxu0 %v165
    %4306 = vmatpush1.msra.mxu0 %v164
    %4307 = vmatprep.subr.mxu0 %v161
    %4308 = vmatpush1.msra.mxu0 %v160
    %4309 = vmatprep.subr.mxu0 %v157
    %4310 = vmatpush1.msra.mxu0 %v156
    %4311 = vmatprep.subr.mxu0 %v153
    %4312 = vmatpush1.msra.mxu0 %v152
    %4313 = vmatprep.subr.mxu0 %v277
    %4314 = vmatpush2.msra.mxu0 %v276
    %4315 = vmatprep.subr.mxu0 %v273
    %4316 = vmatpush2.msra.mxu0 %v272
    %4317 = vmatprep.subr.mxu0 %v269
    %4318 = vmatpush2.msra.mxu0 %v268
    %4319 = vmatprep.subr.mxu0 %v265
    %4320 = vmatpush2.msra.mxu0 %v264
    %4321 = vmatprep.subr.mxu0 %v261
    %4322 = vmatpush2.msra.mxu0 %v260
    %4323 = vmatprep.subr.mxu0 %v257
    %4324 = vmatpush2.msra.mxu0 %v256
    %4325 = vmatprep.subr.mxu0 %v253
    %4326 = vmatpush2.msra.mxu0 %v252
    %4327 = vmatprep.subr.mxu0 %v249
    %4328 = vmatpush2.msra.mxu0 %v248
    %4329 = vmatprep.subr.mxu0 %v245
    %4330 = vmatpush2.msra.mxu0 %v244
    %4331 = vmatprep.subr.mxu0 %v241
    %4332 = vmatpush2.msra.mxu0 %v240
    %4333 = vmatprep.subr.mxu0 %v237
    %4334 = vmatpush2.msra.mxu0 %v236
    %4335 = vmatprep.subr.mxu0 %v233
    %4336 = vmatpush2.msra.mxu0 %v232
    %4337 = vmatprep.subr.mxu0 %v229
    %4338 = vmatpush2.msra.mxu0 %v228
    %4339 = vmatprep.subr.mxu0 %v225
    %4340 = vmatpush2.msra.mxu0 %v224
    %4341 = vmatprep.subr.mxu0 %v221
    %4342 = vmatpush2.msra.mxu0 %v220
    %4343 = vmatprep.subr.mxu0 %v217
    %4344 = vmatpush2.msra.mxu0 %v216
    %4345 = vmatprep.mubr.f32.mxu0 %v4041
    %4346 = vmatmul.mubr.f32.gmra.mxu0 %v4209
    %v4347 = vpop.f32.mrf.mxu0
    %v4348 = vadd.f32 %v617, %v4347
    %v4349 = vpop.f32.mrf.mxu0
    %v4350 = vadd.f32 %v621, %v4349
    %4351 = vdwg.mxu0
    %v4352 = vxor.u32 %v4277, 2147483648
    %v4353 = vmul.f32 %v4352, 1.442695
    %v4354 = vpow.pop %v4353
    %v4355 = vadd.f32 %v4354, 1.0
    %v4356 = vrcp.pop %v4355
    %v4357 = vmul.f32 1.0, %v4356
    %v4358 = vxor.u32 %v4279, 2147483648
    %v4359 = vmul.f32 %v4358, 1.442695
    %v4360 = vpow.pop %v4359
    %v4361 = vadd.f32 %v4360, 1.0
    %v4362 = vrcp.pop %v4361
    %v4363 = vmul.f32 1.0, %v4362
    %v4364 = vtanh.pop %v4348
    %v4365 = vxor.u32 %v4350, 2147483648
    %v4366 = vmul.f32 %v4365, 1.442695
    %v4367 = vpow.pop %v4366
    %v4368 = vadd.f32 %v4367, 1.0
    %v4369 = vrcp.pop %v4368
    %v4370 = vmul.f32 1.0, %v4369
    %v4371 = vmul.f32 %v4363, %v4039
    %v4372 = vmul.f32 %v4357, %v4364
    %v4373 = vadd.f32 %v4371, %v4372
    %v4374 = vtanh.pop %v4373
    %v4375 = vmul.f32 %v4370, %v4374
    %s4376 = scalar_lea.vmem [#allocation2], 20
    %4377 = vst [vmem:[%s4376] sm:$0x3] %v4375
    %4378 = vmatprep.subr.mxu0 %v340
    %4379 = vmatpush1.msra.mxu0 %v339
    %4380 = vmatprep.subr.mxu0 %v336
    %4381 = vmatpush1.msra.mxu0 %v335
    %4382 = vmatprep.subr.mxu0 %v332
    %4383 = vmatpush1.msra.mxu0 %v331
    %4384 = vmatprep.subr.mxu0 %v328
    %4385 = vmatpush1.msra.mxu0 %v327
    %4386 = vmatprep.subr.mxu0 %v324
    %4387 = vmatpush1.msra.mxu0 %v323
    %4388 = vmatprep.subr.mxu0 %v320
    %4389 = vmatpush1.msra.mxu0 %v319
    %4390 = vmatprep.subr.mxu0 %v316
    %4391 = vmatpush1.msra.mxu0 %v315
    %4392 = vmatprep.subr.mxu0 %v312
    %4393 = vmatpush1.msra.mxu0 %v311
    %4394 = vmatprep.subr.mxu0 %v308
    %4395 = vmatpush1.msra.mxu0 %v307
    %4396 = vmatprep.subr.mxu0 %v304
    %4397 = vmatpush1.msra.mxu0 %v303
    %4398 = vmatprep.subr.mxu0 %v300
    %4399 = vmatpush1.msra.mxu0 %v299
    %4400 = vmatprep.subr.mxu0 %v296
    %4401 = vmatpush1.msra.mxu0 %v295
    %4402 = vmatprep.subr.mxu0 %v292
    %4403 = vmatpush1.msra.mxu0 %v291
    %4404 = vmatprep.subr.mxu0 %v288
    %4405 = vmatpush1.msra.mxu0 %v287
    %4406 = vmatprep.subr.mxu0 %v284
    %4407 = vmatpush1.msra.mxu0 %v283
    %4408 = vmatprep.subr.mxu0 %v280
    %4409 = vmatpush1.msra.mxu0 %v279
    %4410 = vmatprep.subr.mxu0 %v404
    %4411 = vmatpush2.msra.mxu0 %v403
    %4412 = vmatprep.subr.mxu0 %v400
    %4413 = vmatpush2.msra.mxu0 %v399
    %4414 = vmatprep.subr.mxu0 %v396
    %4415 = vmatpush2.msra.mxu0 %v395
    %4416 = vmatprep.subr.mxu0 %v392
    %4417 = vmatpush2.msra.mxu0 %v391
    %4418 = vmatprep.subr.mxu0 %v388
    %4419 = vmatpush2.msra.mxu0 %v387
    %4420 = vmatprep.subr.mxu0 %v384
    %4421 = vmatpush2.msra.mxu0 %v383
    %4422 = vmatprep.subr.mxu0 %v380
    %4423 = vmatpush2.msra.mxu0 %v379
    %4424 = vmatprep.subr.mxu0 %v376
    %4425 = vmatpush2.msra.mxu0 %v375
    %4426 = vmatprep.subr.mxu0 %v372
    %4427 = vmatpush2.msra.mxu0 %v371
    %4428 = vmatprep.subr.mxu0 %v368
    %4429 = vmatpush2.msra.mxu0 %v367
    %4430 = vmatprep.subr.mxu0 %v364
    %4431 = vmatpush2.msra.mxu0 %v363
    %4432 = vmatprep.subr.mxu0 %v360
    %4433 = vmatpush2.msra.mxu0 %v359
    %4434 = vmatprep.subr.mxu0 %v356
    %4435 = vmatpush2.msra.mxu0 %v355
    %4436 = vmatprep.subr.mxu0 %v352
    %4437 = vmatpush2.msra.mxu0 %v351
    %4438 = vmatprep.subr.mxu0 %v348
    %4439 = vmatpush2.msra.mxu0 %v347
    %4440 = vmatprep.subr.mxu0 %v344
    %4441 = vmatpush2.msra.mxu0 %v343
    %4442 = vmatprep.mubr.f32.mxu0 %v4209
    %4443 = vmatmul.mubr.f32.gmra.mxu0 %v4375
    %v4444 = vpop.f32.mrf.mxu0
    %v4445 = vadd.f32 %v3359, %v4444
    %v4446 = vpop.f32.mrf.mxu0
    %v4447 = vadd.f32 %v3363, %v4446
    %4448 = vdwg.mxu0
    %4449 = vmatprep.subr.mxu0 %v342
    %4450 = vmatpush1.msra.mxu0 %v341
    %4451 = vmatprep.subr.mxu0 %v338
    %4452 = vmatpush1.msra.mxu0 %v337
    %4453 = vmatprep.subr.mxu0 %v334
    %4454 = vmatpush1.msra.mxu0 %v333
    %4455 = vmatprep.subr.mxu0 %v330
    %4456 = vmatpush1.msra.mxu0 %v329
    %4457 = vmatprep.subr.mxu0 %v326
    %4458 = vmatpush1.msra.mxu0 %v325
    %4459 = vmatprep.subr.mxu0 %v322
    %4460 = vmatpush1.msra.mxu0 %v321
    %4461 = vmatprep.subr.mxu0 %v318
    %4462 = vmatpush1.msra.mxu0 %v317
    %4463 = vmatprep.subr.mxu0 %v314
    %4464 = vmatpush1.msra.mxu0 %v313
    %4465 = vmatprep.subr.mxu0 %v310
    %4466 = vmatpush1.msra.mxu0 %v309
    %4467 = vmatprep.subr.mxu0 %v306
    %4468 = vmatpush1.msra.mxu0 %v305
    %4469 = vmatprep.subr.mxu0 %v302
    %4470 = vmatpush1.msra.mxu0 %v301
    %4471 = vmatprep.subr.mxu0 %v298
    %4472 = vmatpush1.msra.mxu0 %v297
    %4473 = vmatprep.subr.mxu0 %v294
    %4474 = vmatpush1.msra.mxu0 %v293
    %4475 = vmatprep.subr.mxu0 %v290
    %4476 = vmatpush1.msra.mxu0 %v289
    %4477 = vmatprep.subr.mxu0 %v286
    %4478 = vmatpush1.msra.mxu0 %v285
    %4479 = vmatprep.subr.mxu0 %v282
    %4480 = vmatpush1.msra.mxu0 %v281
    %4481 = vmatprep.subr.mxu0 %v406
    %4482 = vmatpush2.msra.mxu0 %v405
    %4483 = vmatprep.subr.mxu0 %v402
    %4484 = vmatpush2.msra.mxu0 %v401
    %4485 = vmatprep.subr.mxu0 %v398
    %4486 = vmatpush2.msra.mxu0 %v397
    %4487 = vmatprep.subr.mxu0 %v394
    %4488 = vmatpush2.msra.mxu0 %v393
    %4489 = vmatprep.subr.mxu0 %v390
    %4490 = vmatpush2.msra.mxu0 %v389
    %4491 = vmatprep.subr.mxu0 %v386
    %4492 = vmatpush2.msra.mxu0 %v385
    %4493 = vmatprep.subr.mxu0 %v382
    %4494 = vmatpush2.msra.mxu0 %v381
    %4495 = vmatprep.subr.mxu0 %v378
    %4496 = vmatpush2.msra.mxu0 %v377
    %4497 = vmatprep.subr.mxu0 %v374
    %4498 = vmatpush2.msra.mxu0 %v373
    %4499 = vmatprep.subr.mxu0 %v370
    %4500 = vmatpush2.msra.mxu0 %v369
    %4501 = vmatprep.subr.mxu0 %v366
    %4502 = vmatpush2.msra.mxu0 %v365
    %4503 = vmatprep.subr.mxu0 %v362
    %4504 = vmatpush2.msra.mxu0 %v361
    %4505 = vmatprep.subr.mxu0 %v358
    %4506 = vmatpush2.msra.mxu0 %v357
    %4507 = vmatprep.subr.mxu0 %v354
    %4508 = vmatpush2.msra.mxu0 %v353
    %4509 = vmatprep.subr.mxu0 %v350
    %4510 = vmatpush2.msra.mxu0 %v349
    %4511 = vmatprep.subr.mxu0 %v346
    %4512 = vmatpush2.msra.mxu0 %v345
    %4513 = vmatprep.mubr.f32.mxu0 %v4209
    %4514 = vmatmul.mubr.f32.gmra.mxu0 %v4375
    %v4515 = vpop.f32.mrf.mxu0
    %v4516 = vadd.f32 %v3367, %v4515
    %v4517 = vpop.f32.mrf.mxu0
    %v4518 = vadd.f32 %v3371, %v4517
    %4519 = vdwg.mxu0
    %v4520 = vxor.u32 %v4445, 2147483648
    %v4521 = vmul.f32 %v4520, 1.442695
    %v4522 = vpow.pop %v4521
    %v4523 = vadd.f32 %v4522, 1.0
    %v4524 = vrcp.pop %v4523
    %v4525 = vmul.f32 1.0, %v4524
    %v4526 = vxor.u32 %v4447, 2147483648
    %v4527 = vmul.f32 %v4526, 1.442695
    %v4528 = vpow.pop %v4527
    %v4529 = vadd.f32 %v4528, 1.0
    %v4530 = vrcp.pop %v4529
    %v4531 = vmul.f32 1.0, %v4530
    %v4532 = vtanh.pop %v4516
    %v4533 = vxor.u32 %v4518, 2147483648
    %v4534 = vmul.f32 %v4533, 1.442695
    %v4535 = vpow.pop %v4534
    %v4536 = vadd.f32 %v4535, 1.0
    %v4537 = vrcp.pop %v4536
    %v4538 = vmul.f32 1.0, %v4537
    %v4539 = vmul.f32 %v4531, %v4207
    %v4540 = vmul.f32 %v4525, %v4532
    %v4541 = vadd.f32 %v4539, %v4540
    %v4542 = vtanh.pop %v4541
    %v4543 = vmul.f32 %v4538, %v4542
    %4544 = vmatprep.subr.mxu0 %v211
    %4545 = vmatpush1.msra.mxu0 %v210
    %4546 = vmatprep.subr.mxu0 %v207
    %4547 = vmatpush1.msra.mxu0 %v206
    %4548 = vmatprep.subr.mxu0 %v203
    %4549 = vmatpush1.msra.mxu0 %v202
    %4550 = vmatprep.subr.mxu0 %v199
    %4551 = vmatpush1.msra.mxu0 %v198
    %4552 = vmatprep.subr.mxu0 %v195
    %4553 = vmatpush1.msra.mxu0 %v194
    %4554 = vmatprep.subr.mxu0 %v191
    %4555 = vmatpush1.msra.mxu0 %v190
    %4556 = vmatprep.subr.mxu0 %v187
    %4557 = vmatpush1.msra.mxu0 %v186
    %4558 = vmatprep.subr.mxu0 %v183
    %4559 = vmatpush1.msra.mxu0 %v182
    %4560 = vmatprep.subr.mxu0 %v179
    %4561 = vmatpush1.msra.mxu0 %v178
    %4562 = vmatprep.subr.mxu0 %v175
    %4563 = vmatpush1.msra.mxu0 %v174
    %4564 = vmatprep.subr.mxu0 %v171
    %4565 = vmatpush1.msra.mxu0 %v170
    %4566 = vmatprep.subr.mxu0 %v167
    %4567 = vmatpush1.msra.mxu0 %v166
    %4568 = vmatprep.subr.mxu0 %v163
    %4569 = vmatpush1.msra.mxu0 %v162
    %4570 = vmatprep.subr.mxu0 %v159
    %4571 = vmatpush1.msra.mxu0 %v158
    %4572 = vmatprep.subr.mxu0 %v155
    %4573 = vmatpush1.msra.mxu0 %v154
    %4574 = vmatprep.subr.mxu0 %v151
    %4575 = vmatpush1.msra.mxu0 %v150
    %4576 = vmatprep.subr.mxu0 %v275
    %4577 = vmatpush2.msra.mxu0 %v274
    %4578 = vmatprep.subr.mxu0 %v271
    %4579 = vmatpush2.msra.mxu0 %v270
    %4580 = vmatprep.subr.mxu0 %v267
    %4581 = vmatpush2.msra.mxu0 %v266
    %4582 = vmatprep.subr.mxu0 %v263
    %4583 = vmatpush2.msra.mxu0 %v262
    %4584 = vmatprep.subr.mxu0 %v259
    %4585 = vmatpush2.msra.mxu0 %v258
    %4586 = vmatprep.subr.mxu0 %v255
    %4587 = vmatpush2.msra.mxu0 %v254
    %4588 = vmatprep.subr.mxu0 %v251
    %4589 = vmatpush2.msra.mxu0 %v250
    %4590 = vmatprep.subr.mxu0 %v247
    %4591 = vmatpush2.msra.mxu0 %v246
    %4592 = vmatprep.subr.mxu0 %v243
    %4593 = vmatpush2.msra.mxu0 %v242
    %4594 = vmatprep.subr.mxu0 %v239
    %4595 = vmatpush2.msra.mxu0 %v238
    %4596 = vmatprep.subr.mxu0 %v235
    %4597 = vmatpush2.msra.mxu0 %v234
    %4598 = vmatprep.subr.mxu0 %v231
    %4599 = vmatpush2.msra.mxu0 %v230
    %4600 = vmatprep.subr.mxu0 %v227
    %4601 = vmatpush2.msra.mxu0 %v226
    %4602 = vmatprep.subr.mxu0 %v223
    %4603 = vmatpush2.msra.mxu0 %v222
    %4604 = vmatprep.subr.mxu0 %v219
    %4605 = vmatpush2.msra.mxu0 %v218
    %4606 = vmatprep.subr.mxu0 %v215
    %4607 = vmatpush2.msra.mxu0 %v214
    %4608 = vmatprep.mubr.f32.mxu0 %v4375
    %4609 = vmatmul.mubr.f32.gmra.mxu0 %v4543
    %v4610 = vpop.f32.mrf.mxu0
    %v4611 = vadd.f32 %v609, %v4610
    %v4612 = vpop.f32.mrf.mxu0
    %v4613 = vadd.f32 %v613, %v4612
    %4614 = vdwg.mxu0
    %4615 = vmatprep.subr.mxu0 %v213
    %4616 = vmatpush1.msra.mxu0 %v212
    %4617 = vmatprep.subr.mxu0 %v209
    %4618 = vmatpush1.msra.mxu0 %v208
    %4619 = vmatprep.subr.mxu0 %v205
    %4620 = vmatpush1.msra.mxu0 %v204
    %4621 = vmatprep.subr.mxu0 %v201
    %4622 = vmatpush1.msra.mxu0 %v200
    %4623 = vmatprep.subr.mxu0 %v197
    %4624 = vmatpush1.msra.mxu0 %v196
    %4625 = vmatprep.subr.mxu0 %v193
    %4626 = vmatpush1.msra.mxu0 %v192
    %4627 = vmatprep.subr.mxu0 %v189
    %4628 = vmatpush1.msra.mxu0 %v188
    %4629 = vmatprep.subr.mxu0 %v185
    %4630 = vmatpush1.msra.mxu0 %v184
    %4631 = vmatprep.subr.mxu0 %v181
    %4632 = vmatpush1.msra.mxu0 %v180
    %4633 = vmatprep.subr.mxu0 %v177
    %4634 = vmatpush1.msra.mxu0 %v176
    %4635 = vmatprep.subr.mxu0 %v173
    %4636 = vmatpush1.msra.mxu0 %v172
    %4637 = vmatprep.subr.mxu0 %v169
    %4638 = vmatpush1.msra.mxu0 %v168
    %4639 = vmatprep.subr.mxu0 %v165
    %4640 = vmatpush1.msra.mxu0 %v164
    %4641 = vmatprep.subr.mxu0 %v161
    %4642 = vmatpush1.msra.mxu0 %v160
    %4643 = vmatprep.subr.mxu0 %v157
    %4644 = vmatpush1.msra.mxu0 %v156
    %4645 = vmatprep.subr.mxu0 %v153
    %4646 = vmatpush1.msra.mxu0 %v152
    %4647 = vmatprep.subr.mxu0 %v277
    %4648 = vmatpush2.msra.mxu0 %v276
    %4649 = vmatprep.subr.mxu0 %v273
    %4650 = vmatpush2.msra.mxu0 %v272
    %4651 = vmatprep.subr.mxu0 %v269
    %4652 = vmatpush2.msra.mxu0 %v268
    %4653 = vmatprep.subr.mxu0 %v265
    %4654 = vmatpush2.msra.mxu0 %v264
    %4655 = vmatprep.subr.mxu0 %v261
    %4656 = vmatpush2.msra.mxu0 %v260
    %4657 = vmatprep.subr.mxu0 %v257
    %4658 = vmatpush2.msra.mxu0 %v256
    %4659 = vmatprep.subr.mxu0 %v253
    %4660 = vmatpush2.msra.mxu0 %v252
    %4661 = vmatprep.subr.mxu0 %v249
    %4662 = vmatpush2.msra.mxu0 %v248
    %4663 = vmatprep.subr.mxu0 %v245
    %4664 = vmatpush2.msra.mxu0 %v244
    %4665 = vmatprep.subr.mxu0 %v241
    %4666 = vmatpush2.msra.mxu0 %v240
    %4667 = vmatprep.subr.mxu0 %v237
    %4668 = vmatpush2.msra.mxu0 %v236
    %4669 = vmatprep.subr.mxu0 %v233
    %4670 = vmatpush2.msra.mxu0 %v232
    %4671 = vmatprep.subr.mxu0 %v229
    %4672 = vmatpush2.msra.mxu0 %v228
    %4673 = vmatprep.subr.mxu0 %v225
    %4674 = vmatpush2.msra.mxu0 %v224
    %4675 = vmatprep.subr.mxu0 %v221
    %4676 = vmatpush2.msra.mxu0 %v220
    %4677 = vmatprep.subr.mxu0 %v217
    %4678 = vmatpush2.msra.mxu0 %v216
    %4679 = vmatprep.mubr.f32.mxu0 %v4375
    %4680 = vmatmul.mubr.f32.gmra.mxu0 %v4543
    %v4681 = vpop.f32.mrf.mxu0
    %v4682 = vadd.f32 %v617, %v4681
    %v4683 = vpop.f32.mrf.mxu0
    %v4684 = vadd.f32 %v621, %v4683
    %4685 = vdwg.mxu0
    %v4686 = vxor.u32 %v4611, 2147483648
    %v4687 = vmul.f32 %v4686, 1.442695
    %v4688 = vpow.pop %v4687
    %v4689 = vadd.f32 %v4688, 1.0
    %v4690 = vrcp.pop %v4689
    %v4691 = vmul.f32 1.0, %v4690
    %v4692 = vxor.u32 %v4613, 2147483648
    %v4693 = vmul.f32 %v4692, 1.442695
    %v4694 = vpow.pop %v4693
    %v4695 = vadd.f32 %v4694, 1.0
    %v4696 = vrcp.pop %v4695
    %v4697 = vmul.f32 1.0, %v4696
    %v4698 = vtanh.pop %v4682
    %v4699 = vxor.u32 %v4684, 2147483648
    %v4700 = vmul.f32 %v4699, 1.442695
    %v4701 = vpow.pop %v4700
    %v4702 = vadd.f32 %v4701, 1.0
    %v4703 = vrcp.pop %v4702
    %v4704 = vmul.f32 1.0, %v4703
    %v4705 = vmul.f32 %v4697, %v4373
    %v4706 = vmul.f32 %v4691, %v4698
    %v4707 = vadd.f32 %v4705, %v4706
    %v4708 = vtanh.pop %v4707
    %v4709 = vmul.f32 %v4704, %v4708
    %s4710 = scalar_lea.vmem [#allocation2], 22
    %4711 = vst [vmem:[%s4710] sm:$0x3] %v4709
    %v4712 = vld [vmem:[%s6] sm:$0x1]
    %v4713 = vld [vmem:[#allocation2] sm:$0x3]
    %v4714 = vld [vmem:[#allocation2 + $0x2] sm:$0x3]
    %v4715 = vld [vmem:[#allocation2 + $0x4] sm:$0x3]
    %v4716 = vld [vmem:[#allocation2 + $0x6] sm:$0x3]
    %v4717 = vld [vmem:[#allocation2 + $0x8] sm:$0x3]
    %v4718 = vld [vmem:[#allocation2 + $0xa] sm:$0x3]
    %v4719 = vld [vmem:[#allocation2 + $0xc] sm:$0x3]
    %v4720 = vld [vmem:[#allocation2 + $0xe] sm:$0x3]
    %v4721 = vld [vmem:[#allocation2 + $0x10] sm:$0x3]
    %v4722 = vld [vmem:[#allocation2 + $0x12] sm:$0x3]
    %v4723 = vld [vmem:[#allocation2 + $0x14] sm:$0x3]
    %v4724 = vld [vmem:[#allocation2 + $0x16] sm:$0x3]
    %v4726 = vlaneseq
    %v4727 = vshrl.u32 %v4726, 7
    %v4728 = vsub.s32 0, %v4727
    %v4729 = vrot.slane %v4712, %v4728
    %v4731 = vmul.f32 %v4713, %v4729
    %v4732 = vmul.f32 %v4714, %v4729
    %v4733 = vmul.f32 %v4715, %v4729
    %v4734 = vmul.f32 %v4716, %v4729
    %v4735 = vmul.f32 %v4717, %v4729
    %v4736 = vmul.f32 %v4718, %v4729
    %v4737 = vmul.f32 %v4719, %v4729
    %v4738 = vmul.f32 %v4720, %v4729
    %v4739 = vmul.f32 %v4721, %v4729
    %v4740 = vmul.f32 %v4722, %v4729
    %v4741 = vmul.f32 %v4723, %v4729
    %v4742 = vmul.f32 %v4724, %v4729
    %vm4743 = vcmask 1041408
    %v4744 = vsel %vm4743, %v4731, 0.0
    %4745 = vadd.xlane.f32.xlu0 %v4744
    %v4746 = vpop.xlane.xlu0 %4745
    %v4747 = vsel %vm4743, %v4732, 0.0
    %4748 = vadd.xlane.f32.xlu0 %v4747
    %v4749 = vpop.xlane.xlu0 %4748
    %v4750 = vsel %vm4743, %v4733, 0.0
    %4751 = vadd.xlane.f32.xlu0 %v4750
    %v4752 = vpop.xlane.xlu0 %4751
    %v4753 = vsel %vm4743, %v4734, 0.0
    %4754 = vadd.xlane.f32.xlu0 %v4753
    %v4755 = vpop.xlane.xlu0 %4754
    %v4756 = vsel %vm4743, %v4735, 0.0
    %4757 = vadd.xlane.f32.xlu0 %v4756
    %v4758 = vpop.xlane.xlu0 %4757
    %v4759 = vsel %vm4743, %v4736, 0.0
    %4760 = vadd.xlane.f32.xlu0 %v4759
    %v4761 = vpop.xlane.xlu0 %4760
    %v4762 = vsel %vm4743, %v4737, 0.0
    %4763 = vadd.xlane.f32.xlu0 %v4762
    %v4764 = vpop.xlane.xlu0 %4763
    %v4765 = vsel %vm4743, %v4738, 0.0
    %4766 = vadd.xlane.f32.xlu0 %v4765
    %v4767 = vpop.xlane.xlu0 %4766
    %v4768 = vsel %vm4743, %v4739, 0.0
    %4769 = vadd.xlane.f32.xlu0 %v4768
    %v4770 = vpop.xlane.xlu0 %4769
    %v4771 = vsel %vm4743, %v4740, 0.0
    %4772 = vadd.xlane.f32.xlu0 %v4771
    %v4773 = vpop.xlane.xlu0 %4772
    %v4774 = vsel %vm4743, %v4741, 0.0
    %4775 = vadd.xlane.f32.xlu0 %v4774
    %v4776 = vpop.xlane.xlu0 %4775
    %v4777 = vsel %vm4743, %v4742, 0.0
    %4778 = vadd.xlane.f32.xlu0 %v4777
    %v4779 = vpop.xlane.xlu0 %4778
    %v4780 = vld [vmem:[#allocation3] sm:$0x1]
    %v4782 = vlaneseq
    %v4783 = vshrl.u32 %v4782, 7
    %v4784 = vsub.s32 0, %v4783
    %v4785 = vrot.slane %v4780, %v4784
    %4786 = vset.pattern.permute.xlu0 0
    %4787 = vperm.xlu0 %4786, %v4785
    %v4788 = vpop.permute.xlu0 %4787
    %v4790 = vadd.f32 %v4746, %v4788
    %v4791 = vadd.f32 %v4749, %v4788
    %v4792 = vadd.f32 %v4752, %v4788
    %v4793 = vadd.f32 %v4755, %v4788
    %v4794 = vadd.f32 %v4758, %v4788
    %v4795 = vadd.f32 %v4761, %v4788
    %v4796 = vadd.f32 %v4764, %v4788
    %v4797 = vadd.f32 %v4767, %v4788
    %v4798 = vadd.f32 %v4770, %v4788
    %v4799 = vadd.f32 %v4773, %v4788
    %v4800 = vadd.f32 %v4776, %v4788
    %v4801 = vadd.f32 %v4779, %v4788
    %v4814 = vlaneseq
    %v4815 = vand.u32 %v4814, 127
    %v4816 = vlaneseq
    %v4817 = vshrl.u32 %v4816, 7
    %v4818 = vsub.s32 %v4815, %v4817
    %v4819 = vrot.slane %v4790, %v4818
    %v4820 = vlaneseq
    %v4821 = vshrl.u32 %v4820, 7
    %v4822 = vsub.s32 %v4815, %v4821
    %v4823 = vrot.slane %v4791, %v4822
    %v4824 = vlaneseq
    %v4825 = vshrl.u32 %v4824, 7
    %v4826 = vsub.s32 %v4815, %v4825
    %v4827 = vrot.slane %v4792, %v4826
    %v4828 = vlaneseq
    %v4829 = vshrl.u32 %v4828, 7
    %v4830 = vsub.s32 %v4815, %v4829
    %v4831 = vrot.slane %v4793, %v4830
    %v4832 = vlaneseq
    %v4833 = vshrl.u32 %v4832, 7
    %v4834 = vsub.s32 %v4815, %v4833
    %v4835 = vrot.slane %v4794, %v4834
    %v4836 = vlaneseq
    %v4837 = vshrl.u32 %v4836, 7
    %v4838 = vsub.s32 %v4815, %v4837
    %v4839 = vrot.slane %v4795, %v4838
    %v4840 = vlaneseq
    %v4841 = vshrl.u32 %v4840, 7
    %v4842 = vsub.s32 %v4815, %v4841
    %v4843 = vrot.slane %v4796, %v4842
    %v4844 = vlaneseq
    %v4845 = vshrl.u32 %v4844, 7
    %v4846 = vsub.s32 %v4815, %v4845
    %v4847 = vrot.slane %v4797, %v4846
    %v4848 = vlaneseq
    %v4849 = vshrl.u32 %v4848, 7
    %v4850 = vsub.s32 %v4815, %v4849
    %v4851 = vrot.slane %v4798, %v4850
    %v4852 = vlaneseq
    %v4853 = vshrl.u32 %v4852, 7
    %v4854 = vsub.s32 %v4815, %v4853
    %v4855 = vrot.slane %v4799, %v4854
    %v4856 = vlaneseq
    %v4857 = vshrl.u32 %v4856, 7
    %v4858 = vsub.s32 %v4815, %v4857
    %v4859 = vrot.slane %v4800, %v4858
    %v4860 = vlaneseq
    %v4861 = vshrl.u32 %v4860, 7
    %v4862 = vsub.s32 %v4815, %v4861
    %v4863 = vrot.slane %v4801, %v4862
    %vm4864 = vcmask 1041409
    %v4865 = vsel %vm4864, %v4823, %v4819
    %vm4866 = vcmask 1042434
    %v4867 = vsel %vm4866, %v4827, %v4865
    %vm4868 = vcmask 1043459
    %v4869 = vsel %vm4868, %v4831, %v4867
    %vm4870 = vcmask 1044484
    %v4871 = vsel %vm4870, %v4835, %v4869
    %vm4872 = vcmask 1045509
    %v4873 = vsel %vm4872, %v4839, %v4871
    %vm4874 = vcmask 1046534
    %v4875 = vsel %vm4874, %v4843, %v4873
    %vm4876 = vcmask 1047559
    %v4877 = vsel %vm4876, %v4847, %v4875
    %v4878 = vsel %vm4864, %v4855, %v4851
    %v4879 = vsel %vm4866, %v4859, %v4878
    %v4880 = vsel %vm4868, %v4863, %v4879
    %vm4883 = vcmask 15360
    %4884 = vst.msk [vmem:[%s8] sm:$0xff] %vm4883, %v4877
    %vm4885 = vcmask 11264
    %4886 = vst.msk [vmem:[%s8 + $0x8] sm:$0xf] %vm4885, %v4880
    // Predicated region
    $region50: #{tpu_custom_call.1} parent=1 // pred_check
      _
    $region51: #{tpu_custom_call.1} parent=1 // pred_check_branch
      %4888 = sbr.rel (0) target = $region53
    $region52: #{tpu_custom_call.1} parent=1 // pred_region
      _
    $region53: #{tpu_custom_call.1} parent=1 // pred_fallthru
      _
    // Predicated region
    $region54: #{tpu_custom_call.1} parent=1 // pred_check
      _
    $region55: #{tpu_custom_call.1} parent=1 // pred_check_branch
      %4890 = sbr.rel (0) target = $region57
    $region56: #{tpu_custom_call.1} parent=1 // pred_region
      _
    $region57: #{tpu_custom_call.1} parent=1 // pred_fallthru
      _
    %4891 = vsyncpa [#allocation5], 1
    %4892 = vsyncpa [#allocation7], 1
    %4893 = vsyncpa [#allocation10], 1

</llo_original>
